<compile_context>
chip_gen: v7x
topology: tpu7x:2x2x1
jax: 0.10.0
libtpu: 0.0.40
codegen_flags: <defaults>
</compile_context>

<pallas_src>
import functools

import jax
import jax.numpy as jnp
from jax.experimental import pallas as pl
from jax.experimental.pallas import tpu as pltpu


def _resize_conv_kernel(x_ref, w_ref, b_ref, o_ref, acc_ref, *, KH, KW, Wp, tile_h):
    """One (batch, row-tile, cout-tile) grid step.

    x_ref:   (tile_h + KH, Wp, Cin)   compute dtype (bf16/f32) haloed input slab
    w_ref:   (KH*KW, Cin, tile_co)    compute dtype
    b_ref:   (1, tile_co)             f32
    o_ref:   (tile_h*Wp, tile_co)     output dtype (lane-dense, Cout padded to 128)
    acc_ref: (tile_h*Wp, tile_co)     f32 VMEM scratch accumulator
    """
    M = tile_h * Wp
    cin = x_ref.shape[-1]

    # Single relayout for the whole slab. Each conv tap is then just a contiguous row
    # window at flat offset ky*Wp + kx (the slab carries one spare trailing row so all
    # slices are in-bounds; the tail entries only feed discarded pad columns).
    x_flat = x_ref[...].reshape((tile_h + KH) * Wp, cin)

    acc_ref[...] = jnp.zeros_like(acc_ref)
    for ky in range(KH):                      # static unrolled tap loop
        for kx in range(KW):
            off = ky * Wp + kx
            patch = x_flat[off:off + M]       # (M, Cin), pure row offset, no 2-D crop
            acc_ref[...] += jnp.dot(patch, w_ref[ky * KW + kx],
                                    preferred_element_type=jnp.float32)  # MXU, f32 acc

    # f32 epilogue (bias add) and a single lane-dense store.
    o_ref[...] = (acc_ref[...] + b_ref[...]).astype(o_ref.dtype)


def resize_conv2d(x_nchw, weight_oihw, bias, *, scale_factor, tile_h=None,
                  compute_dtype=jnp.bfloat16):
    """Nearest upsample by `scale_factor`, then Conv2d(stride=1, padding=1).

    x_nchw:      (N, Cin, H, W)
    weight_oihw: (Cout, Cin, KH, KW)
    bias:        (Cout,)
    returns:     (N, Cout, Ho, Wo) with Ho = H*s + 2 - KH + 1, Wo = W*s + 2 - KW + 1
                 (== H*s, W*s for the module's 3x3 usage).
    """
    N, Cin, H, W = x_nchw.shape
    Cout, Cin_w, KH, KW = weight_oihw.shape
    assert Cin_w == Cin, (Cin_w, Cin)
    pad = 1                       # nn.Conv2d(..., padding=1) is fixed in the module
    s = int(scale_factor)         # TODO(synk): only integer scale + mode='nearest'
    out_dtype = x_nchw.dtype

    Hu, Wu = H * s, W * s
    Hp, Wp = Hu + 2 * pad, Wu + 2 * pad
    Ho, Wo = Hp - KH + 1, Wp - KW + 1
    assert Ho > 0 and Wo > 0 and Wp >= KW, (Ho, Wo, Wp, KW)

    # ---- nearest upsample (matches F.interpolate for integer scale), NCHW -> NHWC ----
    x = jnp.repeat(jnp.repeat(x_nchw, s, axis=2), s, axis=3)
    x = jnp.transpose(x, (0, 2, 3, 1)).astype(compute_dtype)
    # Conv halo zero pad; one extra bottom row keeps the kernel's flat tap slices
    # in-bounds (the spare row only ever feeds discarded pad columns).
    x = jnp.pad(x, ((0, 0), (pad, pad + 1), (pad, pad), (0, 0)))

    # ---- row-tile size: largest divisor of Ho keeping the slab <= ~1024 flat rows ----
    if tile_h is None:
        tile_h = 1
        for cand in range(1, Ho + 1):
            if Ho % cand == 0 and cand * Wp <= 1024:
                tile_h = cand
    assert Ho % tile_h == 0, f"tile_h={tile_h} must divide Ho={Ho}"
    T = Ho // tile_h
    halo_rows = tile_h + KH        # (KH-1) halo rows + 1 spare row
    M = tile_h * Wp                # flattened output rows produced per grid step

    # Overlapping row slabs materialized once (keeps BlockSpecs plain Blocked indexing;
    # only duplicates KH rows per slab in HBM).
    x_tiles = jnp.stack(
        [x[:, t * tile_h: t * tile_h + halo_rows] for t in range(T)], axis=1)
    # x_tiles: (N, T, halo_rows, Wp, Cin)

    # ---- weights / bias: (tap, Cin, Cout) with Cout padded to a 128 multiple ----
    LANE = 128
    Cout_p = ((Cout + LANE - 1) // LANE) * LANE
    w = jnp.transpose(weight_oihw, (2, 3, 1, 0)).reshape(KH * KW, Cin, Cout)
    w = jnp.pad(w, ((0, 0), (0, 0), (0, Cout_p - Cout))).astype(compute_dtype)
    b_vec = jnp.pad(bias.astype(jnp.float32), (0, Cout_p - Cout)).reshape(1, Cout_p)

    tile_co = 256 if Cout_p % 256 == 0 else 128     # fills 256-wide MXU on v6e/v7x
    CO_T = Cout_p // tile_co

    # ---- VMEM budget / cost hints ----
    cbytes = jnp.dtype(compute_dtype).itemsize
    obytes = jnp.dtype(out_dtype).itemsize
    blk_bytes = (halo_rows * Wp * Cin * cbytes          # input slab
                 + KH * KW * Cin * tile_co * cbytes     # weight tile
                 + M * tile_co * obytes                 # output tile
                 + tile_co * 4)                         # bias tile
    vmem_est = 2 * blk_bytes + M * tile_co * 4          # double buffers + accumulator
    vmem_limit = int(min(max(4 * vmem_est, 32 << 20), 48 << 20))   # v7x-safe cap

    cost = pl.CostEstimate(
        flops=int(2 * N * T * M * KH * KW * Cin * Cout_p),
        transcendentals=0,
        bytes_accessed=int(x_tiles.size * cbytes + w.size * cbytes
                           + N * T * M * Cout_p * obytes),
    )

    kernel = functools.partial(_resize_conv_kernel, KH=KH, KW=KW, Wp=Wp, tile_h=tile_h)
    out_flat = pl.pallas_call(
        kernel,
        out_shape=jax.ShapeDtypeStruct((N, T, M, Cout_p), out_dtype),
        grid_spec=pltpu.PrefetchScalarGridSpec(
            num_scalar_prefetch=0,
            grid=(N, T, CO_T),
            in_specs=[
                pl.BlockSpec((None, None, halo_rows, Wp, Cin),
                             lambda b_, t_, c_: (b_, t_, 0, 0, 0)),
                pl.BlockSpec((KH * KW, Cin, tile_co),
                             lambda b_, t_, c_: (0, 0, c_)),
                pl.BlockSpec((1, tile_co),
                             lambda b_, t_, c_: (0, c_)),
            ],
            out_specs=pl.BlockSpec((None, None, M, tile_co),
                                   lambda b_, t_, c_: (b_, t_, 0, c_)),
            scratch_shapes=[pltpu.VMEM((M, tile_co), jnp.float32)],
        ),
        compiler_params=pltpu.CompilerParams(
            dimension_semantics=("parallel", "parallel", "parallel"),
            vmem_limit_bytes=vmem_limit),
        cost_estimate=cost,
    )(x_tiles, w, b_vec)

    # (N, T, M, Cout_p) -> (N, Ho, Wp, Cout_p) -> crop pad columns/channels -> NCHW
    out = out_flat.reshape(N, Ho, Wp, Cout_p)[:, :, :Wo, :Cout]
    return jnp.transpose(out, (0, 3, 1, 2))


def _reference(x_nchw, weight_oihw, bias, scale_factor, compute_dtype):
    """jax.lax reference with the same compute precision as the kernel."""
    s = int(scale_factor)
    x = jnp.repeat(jnp.repeat(x_nchw, s, axis=2), s, axis=3).astype(compute_dtype)
    y = jax.lax.conv_general_dilated(
        x, weight_oihw.astype(compute_dtype), window_strides=(1, 1),
        padding=((1, 1), (1, 1)),
        dimension_numbers=("NCHW", "OIHW", "NCHW"),
        preferred_element_type=jnp.float32)
    return (y + bias.reshape(1, -1, 1, 1)).astype(x_nchw.dtype)


if __name__ == "__main__":
    key = jax.random.PRNGKey(0)
    k_x, k_w, k_b = jax.random.split(key, 3)

    # Small shapes consistent with the module: batch=2, in_ch=4, out_ch=8,
    # spatial 8x8, scale_factor=2, kernel_size=3.
    N, Cin, Cout, H, W, KS, SCALE = 2, 4, 8, 8, 8, 3, 2

    x = jax.random.normal(k_x, (N, Cin, H, W), dtype=jnp.float32)
    weight = jax.random.normal(k_w, (Cout, Cin, KS, KS), dtype=jnp.float32) * 0.1
    bias = jax.random.normal(k_b, (Cout,), dtype=jnp.float32) * 0.1

    # Default bf16 MXU path; tile_h=8 forces 2 row tiles to exercise the halo logic.
    out_bf16 = jax.block_until_ready(
        resize_conv2d(x, weight, bias, scale_factor=SCALE, tile_h=8))
    ref_bf16 = jax.block_until_ready(_reference(x, weight, bias, SCALE, jnp.bfloat16))
    assert out_bf16.shape == (N, Cout, H * SCALE, W * SCALE), out_bf16.shape
    assert jnp.allclose(out_bf16, ref_bf16, atol=2e-3, rtol=2e-3), \
        float(jnp.max(jnp.abs(out_bf16 - ref_bf16)))

    # f32 compute path (auto tile size) against a pure-f32 reference, tight tolerance.
    out_f32 = jax.block_until_ready(
        resize_conv2d(x, weight, bias, scale_factor=SCALE,
                      compute_dtype=jnp.float32))
    ref_f32 = jax.block_until_ready(_reference(x, weight, bias, SCALE, jnp.float32))
    assert jnp.allclose(out_f32, ref_f32, atol=1e-4, rtol=1e-4), \
        float(jnp.max(jnp.abs(out_f32 - ref_f32)))

    print("KERNEL_OK")
</pallas_src>

<mosaic_0001>
module attributes {stable_mosaic.version = 11 : i64} {
  func.func @_resize_conv_kernel(%arg0: i32, %arg1: i32, %arg2: i32, %arg3: memref<1x1x11x18x4xbf16, #tpu.memory_space<vmem>>, %arg4: memref<9x4x128xbf16, #tpu.memory_space<vmem>>, %arg5: memref<1x128xf32, #tpu.memory_space<vmem>>, %arg6: memref<1x1x144x128xf32, #tpu.memory_space<vmem>>, %arg7: memref<144x128xf32, #tpu.memory_space<vmem>>) attributes {dimension_semantics = [#tpu.dimension_semantics<parallel>, #tpu.dimension_semantics<parallel>, #tpu.dimension_semantics<parallel>], iteration_bounds = array<i64: 2, 2, 1>, scalar_prefetch = 0 : i64, scratch_operands = 1 : i64, tpu.core_type = #tpu.core_type<tc>, window_params = [{transform_indices = @transform_0, window_bounds = array<i64: 1, 1, 11, 18, 4>}, {transform_indices = @transform_1, window_bounds = array<i64: 9, 4, 128>}, {transform_indices = @transform_2, window_bounds = array<i64: 1, 128>}, {transform_indices = @transform_3, window_bounds = array<i64: 1, 1, 144, 128>}]} {
    %c0 = arith.constant 0 : index
    %c0_0 = arith.constant 0 : index
    %c0_1 = arith.constant 0 : index
    %c0_2 = arith.constant 0 : index
    %c0_3 = arith.constant 0 : index
    %0 = vector.load %arg3[%c0, %c0_0, %c0_1, %c0_2, %c0_3] : memref<1x1x11x18x4xbf16, #tpu.memory_space<vmem>>, vector<1x1x11x18x4xbf16>
    %1 = vector.shape_cast %0 : vector<1x1x11x18x4xbf16> to vector<11x18x4xbf16>
    %2 = vector.shape_cast %1 : vector<11x18x4xbf16> to vector<198x4xbf16>
    %cst = arith.constant 0.000000e+00 : f32
    %3 = vector.broadcast %cst : f32 to vector<144x128xf32>
    %c0_4 = arith.constant 0 : index
    %c0_5 = arith.constant 0 : index
    %4 = vector.load %arg7[%c0_4, %c0_5] : memref<144x128xf32, #tpu.memory_space<vmem>>, vector<144x128xf32>
    tpu.vector_store %arg7[%c0_4, %c0_5], %3 {strides = array<i32>} : memref<144x128xf32, #tpu.memory_space<vmem>>, vector<144x128xf32>,
    %5 = vector.extract_strided_slice %2 {offsets = [0, 0], sizes = [144, 4], strides = [1, 1]} : vector<198x4xbf16> to vector<144x4xbf16>
    %c0_6 = arith.constant 0 : index
    %c0_7 = arith.constant 0 : index
    %6 = vector.load %arg7[%c0_6, %c0_7] : memref<144x128xf32, #tpu.memory_space<vmem>>, vector<144x128xf32>
    %c0_8 = arith.constant 0 : index
    %c0_9 = arith.constant 0 : index
    %c0_10 = arith.constant 0 : index
    %7 = vector.load %arg4[%c0_8, %c0_9, %c0_10] : memref<9x4x128xbf16, #tpu.memory_space<vmem>>, vector<1x4x128xbf16>
    %8 = vector.shape_cast %7 : vector<1x4x128xbf16> to vector<4x128xbf16>
    %cst_11 = arith.constant dense<0.000000e+00> : vector<144x128xf32>
    %9 = tpu.matmul %5, %8, %cst_11 {dimension_numbers = #tpu.dot_dimension_numbers<[1], [0], [0], [1], [0, 0, 1, 1], [], []>} : vector<144x4xbf16>, vector<4x128xbf16>, vector<144x128xf32> -> vector<144x128xf32>
    %10 = arith.addf %6, %9 : vector<144x128xf32>
    %c0_12 = arith.constant 0 : index
    %c0_13 = arith.constant 0 : index
    %11 = vector.load %arg7[%c0_12, %c0_13] : memref<144x128xf32, #tpu.memory_space<vmem>>, vector<144x128xf32>
    tpu.vector_store %arg7[%c0_12, %c0_13], %10 {strides = array<i32>} : memref<144x128xf32, #tpu.memory_space<vmem>>, vector<144x128xf32>,
    %12 = vector.extract_strided_slice %2 {offsets = [1, 0], sizes = [144, 4], strides = [1, 1]} : vector<198x4xbf16> to vector<144x4xbf16>
    %c0_14 = arith.constant 0 : index
    %c0_15 = arith.constant 0 : index
    %13 = vector.load %arg7[%c0_14, %c0_15] : memref<144x128xf32, #tpu.memory_space<vmem>>, vector<144x128xf32>
    %c1 = arith.constant 1 : index
    %c0_16 = arith.constant 0 : index
    %c0_17 = arith.constant 0 : index
    %14 = vector.load %arg4[%c1, %c0_16, %c0_17] : memref<9x4x128xbf16, #tpu.memory_space<vmem>>, vector<1x4x128xbf16>
    %15 = vector.shape_cast %14 : vector<1x4x128xbf16> to vector<4x128xbf16>
    %cst_18 = arith.constant dense<0.000000e+00> : vector<144x128xf32>
    %16 = tpu.matmul %12, %15, %cst_18 {dimension_numbers = #tpu.dot_dimension_numbers<[1], [0], [0], [1], [0, 0, 1, 1], [], []>} : vector<144x4xbf16>, vector<4x128xbf16>, vector<144x128xf32> -> vector<144x128xf32>
    %17 = arith.addf %13, %16 : vector<144x128xf32>
    %c0_19 = arith.constant 0 : index
    %c0_20 = arith.constant 0 : index
    %18 = vector.load %arg7[%c0_19, %c0_20] : memref<144x128xf32, #tpu.memory_space<vmem>>, vector<144x128xf32>
    tpu.vector_store %arg7[%c0_19, %c0_20], %17 {strides = array<i32>} : memref<144x128xf32, #tpu.memory_space<vmem>>, vector<144x128xf32>,
    %19 = vector.extract_strided_slice %2 {offsets = [2, 0], sizes = [144, 4], strides = [1, 1]} : vector<198x4xbf16> to vector<144x4xbf16>
    %c0_21 = arith.constant 0 : index
    %c0_22 = arith.constant 0 : index
    %20 = vector.load %arg7[%c0_21, %c0_22] : memref<144x128xf32, #tpu.memory_space<vmem>>, vector<144x128xf32>
    %c2 = arith.constant 2 : index
    %c0_23 = arith.constant 0 : index
    %c0_24 = arith.constant 0 : index
    %21 = vector.load %arg4[%c2, %c0_23, %c0_24] : memref<9x4x128xbf16, #tpu.memory_space<vmem>>, vector<1x4x128xbf16>
    %22 = vector.shape_cast %21 : vector<1x4x128xbf16> to vector<4x128xbf16>
    %cst_25 = arith.constant dense<0.000000e+00> : vector<144x128xf32>
    %23 = tpu.matmul %19, %22, %cst_25 {dimension_numbers = #tpu.dot_dimension_numbers<[1], [0], [0], [1], [0, 0, 1, 1], [], []>} : vector<144x4xbf16>, vector<4x128xbf16>, vector<144x128xf32> -> vector<144x128xf32>
    %24 = arith.addf %20, %23 : vector<144x128xf32>
    %c0_26 = arith.constant 0 : index
    %c0_27 = arith.constant 0 : index
    %25 = vector.load %arg7[%c0_26, %c0_27] : memref<144x128xf32, #tpu.memory_space<vmem>>, vector<144x128xf32>
    tpu.vector_store %arg7[%c0_26, %c0_27], %24 {strides = array<i32>} : memref<144x128xf32, #tpu.memory_space<vmem>>, vector<144x128xf32>,
    %26 = vector.extract_strided_slice %2 {offsets = [18, 0], sizes = [144, 4], strides = [1, 1]} : vector<198x4xbf16> to vector<144x4xbf16>
    %c0_28 = arith.constant 0 : index
    %c0_29 = arith.constant 0 : index
    %27 = vector.load %arg7[%c0_28, %c0_29] : memref<144x128xf32, #tpu.memory_space<vmem>>, vector<144x128xf32>
    %c3 = arith.constant 3 : index
    %c0_30 = arith.constant 0 : index
    %c0_31 = arith.constant 0 : index
    %28 = vector.load %arg4[%c3, %c0_30, %c0_31] : memref<9x4x128xbf16, #tpu.memory_space<vmem>>, vector<1x4x128xbf16>
    %29 = vector.shape_cast %28 : vector<1x4x128xbf16> to vector<4x128xbf16>
    %cst_32 = arith.constant dense<0.000000e+00> : vector<144x128xf32>
    %30 = tpu.matmul %26, %29, %cst_32 {dimension_numbers = #tpu.dot_dimension_numbers<[1], [0], [0], [1], [0, 0, 1, 1], [], []>} : vector<144x4xbf16>, vector<4x128xbf16>, vector<144x128xf32> -> vector<144x128xf32>
    %31 = arith.addf %27, %30 : vector<144x128xf32>
    %c0_33 = arith.constant 0 : index
    %c0_34 = arith.constant 0 : index
    %32 = vector.load %arg7[%c0_33, %c0_34] : memref<144x128xf32, #tpu.memory_space<vmem>>, vector<144x128xf32>
    tpu.vector_store %arg7[%c0_33, %c0_34], %31 {strides = array<i32>} : memref<144x128xf32, #tpu.memory_space<vmem>>, vector<144x128xf32>,
    %33 = vector.extract_strided_slice %2 {offsets = [19, 0], sizes = [144, 4], strides = [1, 1]} : vector<198x4xbf16> to vector<144x4xbf16>
    %c0_35 = arith.constant 0 : index
    %c0_36 = arith.constant 0 : index
    %34 = vector.load %arg7[%c0_35, %c0_36] : memref<144x128xf32, #tpu.memory_space<vmem>>, vector<144x128xf32>
    %c4 = arith.constant 4 : index
    %c0_37 = arith.constant 0 : index
    %c0_38 = arith.constant 0 : index
    %35 = vector.load %arg4[%c4, %c0_37, %c0_38] : memref<9x4x128xbf16, #tpu.memory_space<vmem>>, vector<1x4x128xbf16>
    %36 = vector.shape_cast %35 : vector<1x4x128xbf16> to vector<4x128xbf16>
    %cst_39 = arith.constant dense<0.000000e+00> : vector<144x128xf32>
    %37 = tpu.matmul %33, %36, %cst_39 {dimension_numbers = #tpu.dot_dimension_numbers<[1], [0], [0], [1], [0, 0, 1, 1], [], []>} : vector<144x4xbf16>, vector<4x128xbf16>, vector<144x128xf32> -> vector<144x128xf32>
    %38 = arith.addf %34, %37 : vector<144x128xf32>
    %c0_40 = arith.constant 0 : index
    %c0_41 = arith.constant 0 : index
    %39 = vector.load %arg7[%c0_40, %c0_41] : memref<144x128xf32, #tpu.memory_space<vmem>>, vector<144x128xf32>
    tpu.vector_store %arg7[%c0_40, %c0_41], %38 {strides = array<i32>} : memref<144x128xf32, #tpu.memory_space<vmem>>, vector<144x128xf32>,
    %40 = vector.extract_strided_slice %2 {offsets = [20, 0], sizes = [144, 4], strides = [1, 1]} : vector<198x4xbf16> to vector<144x4xbf16>
    %c0_42 = arith.constant 0 : index
    %c0_43 = arith.constant 0 : index
    %41 = vector.load %arg7[%c0_42, %c0_43] : memref<144x128xf32, #tpu.memory_space<vmem>>, vector<144x128xf32>
    %c5 = arith.constant 5 : index
    %c0_44 = arith.constant 0 : index
    %c0_45 = arith.constant 0 : index
    %42 = vector.load %arg4[%c5, %c0_44, %c0_45] : memref<9x4x128xbf16, #tpu.memory_space<vmem>>, vector<1x4x128xbf16>
    %43 = vector.shape_cast %42 : vector<1x4x128xbf16> to vector<4x128xbf16>
    %cst_46 = arith.constant dense<0.000000e+00> : vector<144x128xf32>
    %44 = tpu.matmul %40, %43, %cst_46 {dimension_numbers = #tpu.dot_dimension_numbers<[1], [0], [0], [1], [0, 0, 1, 1], [], []>} : vector<144x4xbf16>, vector<4x128xbf16>, vector<144x128xf32> -> vector<144x128xf32>
    %45 = arith.addf %41, %44 : vector<144x128xf32>
    %c0_47 = arith.constant 0 : index
    %c0_48 = arith.constant 0 : index
    %46 = vector.load %arg7[%c0_47, %c0_48] : memref<144x128xf32, #tpu.memory_space<vmem>>, vector<144x128xf32>
    tpu.vector_store %arg7[%c0_47, %c0_48], %45 {strides = array<i32>} : memref<144x128xf32, #tpu.memory_space<vmem>>, vector<144x128xf32>,
    %47 = vector.extract_strided_slice %2 {offsets = [36, 0], sizes = [144, 4], strides = [1, 1]} : vector<198x4xbf16> to vector<144x4xbf16>
    %c0_49 = arith.constant 0 : index
    %c0_50 = arith.constant 0 : index
    %48 = vector.load %arg7[%c0_49, %c0_50] : memref<144x128xf32, #tpu.memory_space<vmem>>, vector<144x128xf32>
    %c6 = arith.constant 6 : index
    %c0_51 = arith.constant 0 : index
    %c0_52 = arith.constant 0 : index
    %49 = vector.load %arg4[%c6, %c0_51, %c0_52] : memref<9x4x128xbf16, #tpu.memory_space<vmem>>, vector<1x4x128xbf16>
    %50 = vector.shape_cast %49 : vector<1x4x128xbf16> to vector<4x128xbf16>
    %cst_53 = arith.constant dense<0.000000e+00> : vector<144x128xf32>
    %51 = tpu.matmul %47, %50, %cst_53 {dimension_numbers = #tpu.dot_dimension_numbers<[1], [0], [0], [1], [0, 0, 1, 1], [], []>} : vector<144x4xbf16>, vector<4x128xbf16>, vector<144x128xf32> -> vector<144x128xf32>
    %52 = arith.addf %48, %51 : vector<144x128xf32>
    %c0_54 = arith.constant 0 : index
    %c0_55 = arith.constant 0 : index
    %53 = vector.load %arg7[%c0_54, %c0_55] : memref<144x128xf32, #tpu.memory_space<vmem>>, vector<144x128xf32>
    tpu.vector_store %arg7[%c0_54, %c0_55], %52 {strides = array<i32>} : memref<144x128xf32, #tpu.memory_space<vmem>>, vector<144x128xf32>,
    %54 = vector.extract_strided_slice %2 {offsets = [37, 0], sizes = [144, 4], strides = [1, 1]} : vector<198x4xbf16> to vector<144x4xbf16>
    %c0_56 = arith.constant 0 : index
    %c0_57 = arith.constant 0 : index
    %55 = vector.load %arg7[%c0_56, %c0_57] : memref<144x128xf32, #tpu.memory_space<vmem>>, vector<144x128xf32>
    %c7 = arith.constant 7 : index
    %c0_58 = arith.constant 0 : index
    %c0_59 = arith.constant 0 : index
    %56 = vector.load %arg4[%c7, %c0_58, %c0_59] : memref<9x4x128xbf16, #tpu.memory_space<vmem>>, vector<1x4x128xbf16>
    %57 = vector.shape_cast %56 : vector<1x4x128xbf16> to vector<4x128xbf16>
    %cst_60 = arith.constant dense<0.000000e+00> : vector<144x128xf32>
    %58 = tpu.matmul %54, %57, %cst_60 {dimension_numbers = #tpu.dot_dimension_numbers<[1], [0], [0], [1], [0, 0, 1, 1], [], []>} : vector<144x4xbf16>, vector<4x128xbf16>, vector<144x128xf32> -> vector<144x128xf32>
    %59 = arith.addf %55, %58 : vector<144x128xf32>
    %c0_61 = arith.constant 0 : index
    %c0_62 = arith.constant 0 : index
    %60 = vector.load %arg7[%c0_61, %c0_62] : memref<144x128xf32, #tpu.memory_space<vmem>>, vector<144x128xf32>
    tpu.vector_store %arg7[%c0_61, %c0_62], %59 {strides = array<i32>} : memref<144x128xf32, #tpu.memory_space<vmem>>, vector<144x128xf32>,
    %61 = vector.extract_strided_slice %2 {offsets = [38, 0], sizes = [144, 4], strides = [1, 1]} : vector<198x4xbf16> to vector<144x4xbf16>
    %c0_63 = arith.constant 0 : index
    %c0_64 = arith.constant 0 : index
    %62 = vector.load %arg7[%c0_63, %c0_64] : memref<144x128xf32, #tpu.memory_space<vmem>>, vector<144x128xf32>
    %c8 = arith.constant 8 : index
    %c0_65 = arith.constant 0 : index
    %c0_66 = arith.constant 0 : index
    %63 = vector.load %arg4[%c8, %c0_65, %c0_66] : memref<9x4x128xbf16, #tpu.memory_space<vmem>>, vector<1x4x128xbf16>
    %64 = vector.shape_cast %63 : vector<1x4x128xbf16> to vector<4x128xbf16>
    %cst_67 = arith.constant dense<0.000000e+00> : vector<144x128xf32>
    %65 = tpu.matmul %61, %64, %cst_67 {dimension_numbers = #tpu.dot_dimension_numbers<[1], [0], [0], [1], [0, 0, 1, 1], [], []>} : vector<144x4xbf16>, vector<4x128xbf16>, vector<144x128xf32> -> vector<144x128xf32>
    %66 = arith.addf %62, %65 : vector<144x128xf32>
    %c0_68 = arith.constant 0 : index
    %c0_69 = arith.constant 0 : index
    %67 = vector.load %arg7[%c0_68, %c0_69] : memref<144x128xf32, #tpu.memory_space<vmem>>, vector<144x128xf32>
    tpu.vector_store %arg7[%c0_68, %c0_69], %66 {strides = array<i32>} : memref<144x128xf32, #tpu.memory_space<vmem>>, vector<144x128xf32>,
    %c0_70 = arith.constant 0 : index
    %c0_71 = arith.constant 0 : index
    %68 = vector.load %arg7[%c0_70, %c0_71] : memref<144x128xf32, #tpu.memory_space<vmem>>, vector<144x128xf32>
    %c0_72 = arith.constant 0 : index
    %c0_73 = arith.constant 0 : index
    %69 = vector.load %arg5[%c0_72, %c0_73] : memref<1x128xf32, #tpu.memory_space<vmem>>, vector<1x128xf32>
    %70 = vector.broadcast %69 : vector<1x128xf32> to vector<144x128xf32>
    %71 = arith.addf %68, %70 : vector<144x128xf32>
    %c0_74 = arith.constant 0 : index
    %c0_75 = arith.constant 0 : index
    %c0_76 = arith.constant 0 : index
    %c0_77 = arith.constant 0 : index
    %72 = vector.load %arg6[%c0_74, %c0_75, %c0_76, %c0_77] : memref<1x1x144x128xf32, #tpu.memory_space<vmem>>, vector<1x1x144x128xf32>
    %73 = vector.shape_cast %72 : vector<1x1x144x128xf32> to vector<144x128xf32>
    %74 = vector.shape_cast %71 : vector<144x128xf32> to vector<1x1x144x128xf32>
    tpu.vector_store %arg6[%c0_74, %c0_75, %c0_76, %c0_77], %74 {strides = array<i32>} : memref<1x1x144x128xf32, #tpu.memory_space<vmem>>, vector<1x1x144x128xf32>,
    return
  }
  func.func @transform_0(%arg0: i32, %arg1: i32, %arg2: i32) -> (i32, i32, i32, i32, i32) {
    %c0_i32 = arith.constant 0 : i32
    %c0_i32_0 = arith.constant 0 : i32
    %c0_i32_1 = arith.constant 0 : i32
    %c0_i32_2 = arith.constant 0 : i32
    return %arg0, %arg1, %c0_i32, %c0_i32_0, %c0_i32_1 : i32, i32, i32, i32, i32
  }
  func.func @transform_1(%arg0: i32, %arg1: i32, %arg2: i32) -> (i32, i32, i32) {
    %c0_i32 = arith.constant 0 : i32
    %c0_i32_0 = arith.constant 0 : i32
    %c0_i32_1 = arith.constant 0 : i32
    return %c0_i32, %c0_i32_0, %arg2 : i32, i32, i32
  }
  func.func @transform_2(%arg0: i32, %arg1: i32, %arg2: i32) -> (i32, i32) {
    %c0_i32 = arith.constant 0 : i32
    %c0_i32_0 = arith.constant 0 : i32
    return %c0_i32, %arg2 : i32, i32
  }
  func.func @transform_3(%arg0: i32, %arg1: i32, %arg2: i32) -> (i32, i32, i32, i32) {
    %c0_i32 = arith.constant 0 : i32
    %c0_i32_0 = arith.constant 0 : i32
    return %arg0, %arg1, %c0_i32, %arg2 : i32, i32, i32, i32
  }
}

</mosaic_0001>

<llo_original>
// kernel: tpu_custom_call.1
$region0: #{tpu_custom_call.1}
  #allocation0 [shape = 'u32[]', space=smem, size = 0x4, offset = 0x4, fixed_abs, tag = 'smem constant byte address 0x4 - core index']
  #allocation1 [shape = 'u32[144,128]{1,0:T(1,128)}', space=vmem, size = 0x12000, scoped, tag = 'internal scratch']
  #allocation2 [shape = 'f32[144,128]{1,0:T(8,128)}', space=vmem, size = 0x12000, scoped, tag = 'scratch operand']
  %s0 = inlined_call_operand.vmem [shape: bf16[2,2,11,18,4], index: 0, kind: input, shape index: {}]
  %s1 = inlined_call_operand.vmem [shape: bf16[9,4,128], index: 1, kind: input, shape index: {}]
  %s2 = inlined_call_operand.vmem [shape: f32[1,128], index: 2, kind: input, shape index: {}]
  %s3 = inlined_call_operand.hbm [shape: f32[2,2,144,128], index: 3, kind: output, shape index: {}]
  %s4 = sld [smem:[#allocation0]]
  $region45: #{tpu_custom_call.1} parent=0
    _
  %s6 = ssub.s32 1, %s4
  %s7 = scalar_select 0, %s6, %s4
  $region1: #{tpu_custom_call.1} parent=0
    #allocation3 [shape = 'u8[147456]{0}', space=vmem, size = 0x24000, scoped, tag = 'output window, operand 0']
    #allocation4 [shape = 's32[2]{0}', space=sflag, size = 0x8, scoped, tag = 'scoped memory for tpu_custom_call.1']
    %8 = vsyncpa [#allocation4], 0
    %s9 = scalar_lea.sflag [#allocation4], 1
    %10 = vsyncpa %s9, 0
    loop: start=0, step=1, limit=6
    $region2: #{tpu_custom_call.1} parent=1 // loop_pre_header
      _
    $region3: #{tpu_custom_call.1} parent=1 // loop_header
      %s12 = sphi 0, %s16
      %p13 = scmp.ge.s32.totalorder %s12, 6
      %s19 = sphi 0, %s38
      %s20 = sphi 0, %s34
      %s21 = sphi 0, %s30
      %s22 = sphi 0, %s19
      %s23 = sphi 0, %s20
      %s24 = sphi 0, %s21
      %s25 = sphi 0, %s22
      %s26 = sphi 0, %s23
      %s27 = sphi 0, %s24
      %s43 = sphi 0, %s45
      %s46 = sphi 0, %s43
      %s47 = sphi 0, %s46
      %s63 = sphi 0, %s47
      %s69 = sphi 0, %s71
      %s72 = sphi 0, %s69
      %s73 = sphi 0, %s72
      %s89 = sphi 0, %s73
      %s95 = sphi 0, %s97
      %s98 = sphi 0, %s95
      %s99 = sphi 0, %s98
      %s115 = sphi 0, %s99
      %s125 = sphi 0, %s127
      %s128 = sphi 0, %s125
      %s129 = sphi 0, %s128
      %s145 = sphi 0, %s129
    $region4: #{tpu_custom_call.1} parent=1 // loop_header_branch
      %15 = sbr.rel (%p13) target = $region8
    $region5: #{tpu_custom_call.1} parent=1 // loop_body
      %s17 = ssub.s32 %s12, 1
      %s18 = ssub.s32 %s12, 2
      %s28 = sadd.s32 1, %s21
      %p29 = scmp.ge.s32.totalorder %s28, 1
      %s30 = scalar_select %p29, 0, %s28
      %s31 = sadd.s32 1, %s20
      %s32 = scalar_select %p29, %s31, %s20
      %p33 = scmp.ge.s32.totalorder %s32, 2
      %s34 = scalar_select %p33, 0, %s32
      %s35 = sadd.s32 1, %s19
      %s36 = scalar_select %p33, %s35, %s19
      %p37 = scmp.ge.s32.totalorder %s36, 2
      %s38 = scalar_select %p37, 0, %s36
      %s39 = ssub.s32 %s19, %s38
      %s40 = ssub.s32 %s20, %s34
      %s41 = sor.u32 %s39, %s40
      %p42 = scmp.eq.s32.totalorder %s41, 0
      %s44 = sadd.s32 %s43, 1
      %s45 = scalar_select %p42, %s43, %s44
      %p48 = pneg %p42
      %p49 = scmp.eq.s32.totalorder %s12, 3
      %p50 = por %p48, %p49
      %p51 = scmp.ne.s32.totalorder %s43, %s46
      %p52 = scmp.eq.s32.totalorder %s12, 0
      %p53 = por %p51, %p52
      %p54 = scmp.ne.s32.totalorder %s43, %s46
      %p55 = scmp.eq.s32.totalorder %s17, 3
      %p56 = por %p54, %p55
      %p57 = scmp.ne.s32.totalorder %s46, %s47
      %p58 = scmp.eq.s32.totalorder %s17, 0
      %p59 = por %p57, %p58
      %p60 = scmp.ne.s32.totalorder %s46, %s47
      %p61 = scmp.eq.s32.totalorder %s18, 3
      %p62 = por %p60, %p61
      %p64 = scmp.ne.s32.totalorder %s47, %s63
      %p65 = scmp.eq.s32.totalorder %s18, 0
      %p66 = por %p64, %p65
      %s67 = ssub.s32 %s21, %s30
      %p68 = scmp.eq.s32.totalorder %s67, 0
      %s70 = sadd.s32 %s69, 1
      %s71 = scalar_select %p68, %s69, %s70
      %p74 = pneg %p68
      %p75 = scmp.eq.s32.totalorder %s12, 3
      %p76 = por %p74, %p75
      %p77 = scmp.ne.s32.totalorder %s69, %s72
      %p78 = scmp.eq.s32.totalorder %s12, 0
      %p79 = por %p77, %p78
      %p80 = scmp.ne.s32.totalorder %s69, %s72
      %p81 = scmp.eq.s32.totalorder %s17, 3
      %p82 = por %p80, %p81
      %p83 = scmp.ne.s32.totalorder %s72, %s73
      %p84 = scmp.eq.s32.totalorder %s17, 0
      %p85 = por %p83, %p84
      %p86 = scmp.ne.s32.totalorder %s72, %s73
      %p87 = scmp.eq.s32.totalorder %s18, 3
      %p88 = por %p86, %p87
      %p90 = scmp.ne.s32.totalorder %s73, %s89
      %p91 = scmp.eq.s32.totalorder %s18, 0
      %p92 = por %p90, %p91
      %s93 = ssub.s32 %s21, %s30
      %p94 = scmp.eq.s32.totalorder %s93, 0
      %s96 = sadd.s32 %s95, 1
      %s97 = scalar_select %p94, %s95, %s96
      %p100 = pneg %p94
      %p101 = scmp.eq.s32.totalorder %s12, 3
      %p102 = por %p100, %p101
      %p103 = scmp.ne.s32.totalorder %s95, %s98
      %p104 = scmp.eq.s32.totalorder %s12, 0
      %p105 = por %p103, %p104
      %p106 = scmp.ne.s32.totalorder %s95, %s98
      %p107 = scmp.eq.s32.totalorder %s17, 3
      %p108 = por %p106, %p107
      %p109 = scmp.ne.s32.totalorder %s98, %s99
      %p110 = scmp.eq.s32.totalorder %s17, 0
      %p111 = por %p109, %p110
      %p112 = scmp.ne.s32.totalorder %s98, %s99
      %p113 = scmp.eq.s32.totalorder %s18, 3
      %p114 = por %p112, %p113
      %p116 = scmp.ne.s32.totalorder %s99, %s115
      %p117 = scmp.eq.s32.totalorder %s18, 0
      %p118 = por %p116, %p117
      %s119 = ssub.s32 %s19, %s38
      %s120 = ssub.s32 %s20, %s34
      %s121 = sor.u32 %s119, %s120
      %s122 = ssub.s32 %s21, %s30
      %s123 = sor.u32 %s121, %s122
      %p124 = scmp.eq.s32.totalorder %s123, 0
      %s126 = sadd.s32 %s125, 1
      %s127 = scalar_select %p124, %s125, %s126
      %p130 = pneg %p124
      %p131 = scmp.eq.s32.totalorder %s12, 3
      %p132 = por %p130, %p131
      %p133 = scmp.ne.s32.totalorder %s125, %s128
      %p134 = scmp.eq.s32.totalorder %s12, 0
      %p135 = por %p133, %p134
      %p136 = scmp.ne.s32.totalorder %s125, %s128
      %p137 = scmp.eq.s32.totalorder %s17, 3
      %p138 = por %p136, %p137
      %p139 = scmp.ne.s32.totalorder %s128, %s129
      %p140 = scmp.eq.s32.totalorder %s17, 0
      %p141 = por %p139, %p140
      %p142 = scmp.ne.s32.totalorder %s128, %s129
      %p143 = scmp.eq.s32.totalorder %s18, 3
      %p144 = por %p142, %p143
      %p146 = scmp.ne.s32.totalorder %s129, %s145
      %p147 = scmp.eq.s32.totalorder %s18, 0
      %p148 = por %p146, %p147
      %p149 = scmp.le.s32.totalorder 1, %s12
      %p150 = scmp.lt.s32.totalorder %s12, 5
      %p151 = pnand %p149, %p150
      %p152 = pneg %p151
      // Predicated region
      $region9: #{tpu_custom_call.1} parent=5 // pred_check
        _
      $region10: #{tpu_custom_call.1} parent=5 // pred_check_branch
        %154 = sbr.rel (%p151) target = $region12
      $region11: #{tpu_custom_call.1} parent=5 // pred_region
        %s155 = ssub.s32 %s12, 1
        // Predicated region
        $region13: #{tpu_custom_call.1} parent=11 // pred_check
          %p156 = pneg %p85
        $region14: #{tpu_custom_call.1} parent=11 // pred_check_branch
          %158 = sbr.rel (%p156) target = $region16
        $region15: #{tpu_custom_call.1} parent=11 // pred_region
          %p159 = scmp.lt.s32.totalorder %s24, 0
          %s160 = scalar_select %p159, %s24, 0
          %s161 = smul.addr %s160, 2
          %s162 = scalar_lea.vmem %s1, %s161
        $region16: #{tpu_custom_call.1} parent=11 // pred_fallthru
          _
        // Predicated region
        $region17: #{tpu_custom_call.1} parent=11 // pred_check
          %p163 = pneg %p111
        $region18: #{tpu_custom_call.1} parent=11 // pred_check_branch
          %165 = sbr.rel (%p163) target = $region20
        $region19: #{tpu_custom_call.1} parent=11 // pred_region
          %p166 = scmp.lt.s32.totalorder %s24, 0
          %s167 = scalar_select %p166, %s24, 0
          %s168 = scalar_lea.vmem %s2, %s167
        $region20: #{tpu_custom_call.1} parent=11 // pred_fallthru
          _
      $region12: #{tpu_custom_call.1} parent=5 // pred_fallthru
        _
      %p169 = scmp.lt.s32.totalorder %s12, 4
      // Predicated region
      $region21: #{tpu_custom_call.1} parent=5 // pred_check
        %p170 = pneg %p169
      $region22: #{tpu_custom_call.1} parent=5 // pred_check_branch
        %172 = sbr.rel (%p170) target = $region24
      $region23: #{tpu_custom_call.1} parent=5 // pred_region
        // Predicated region
        $region25: #{tpu_custom_call.1} parent=23 // pred_check
          %p173 = pneg %p53
        $region26: #{tpu_custom_call.1} parent=23 // pred_check_branch
          %175 = sbr.rel (%p173) target = $region28
        $region27: #{tpu_custom_call.1} parent=23 // pred_region
          %p176 = scmp.lt.s32.totalorder %s19, 1
          %s177 = scalar_select %p176, %s19, 1
          %p178 = scmp.lt.s32.totalorder %s20, 1
          %s179 = scalar_select %p178, %s20, 1
          %s180 = smul.addr %s179, 33
          %s181 = smul.addr %s177, 66
          %s182 = sadd.s32 %s180, %s181
          %s183 = smul.addr %s182, 4
          %s184 = scalar_lea.vmem %s0, %s183
        $region28: #{tpu_custom_call.1} parent=23 // pred_fallthru
          _
      $region24: #{tpu_custom_call.1} parent=5 // pred_fallthru
        _
      %p185 = scmp.le.s32.totalorder 1, %s12
      %p186 = scmp.lt.s32.totalorder %s12, 5
      %p187 = pnand %p185, %p186
      %p188 = pneg %p187
      // Predicated region
      $region29: #{tpu_custom_call.1} parent=5 // pred_check
        _
      $region30: #{tpu_custom_call.1} parent=5 // pred_check_branch
        %190 = sbr.rel (%p187) target = $region32
      $region31: #{tpu_custom_call.1} parent=5 // pred_region
        %s191 = ssub.s32 %s12, 1
        %p192 = scmp.lt.s32.totalorder %s22, 1
        %s193 = scalar_select %p192, %s22, 1
        %p194 = scmp.lt.s32.totalorder %s23, 1
        %s195 = scalar_select %p194, %s23, 1
        %s196 = smul.addr %s195, 33
        %s197 = smul.addr %s193, 66
        %s198 = sadd.s32 %s196, %s197
        %s199 = smul.addr %s198, 4
        %s200 = scalar_lea.vmem %s0, %s199
        %p201 = pneg %p59
        %p202 = pneg %p56
        %p203 = scmp.lt.s32.totalorder %s24, 0
        %s204 = scalar_select %p203, %s24, 0
        %s205 = smul.addr %s204, 2
        %s206 = scalar_lea.vmem %s1, %s205
        %p207 = pneg %p85
        %p208 = pneg %p82
        %p209 = scmp.lt.s32.totalorder %s24, 0
        %s210 = scalar_select %p209, %s24, 0
        %s211 = scalar_lea.vmem %s2, %s210
        %p212 = pneg %p111
        %p213 = pneg %p108
        %p214 = pneg %p141
        %p215 = pneg %p138
        %s216 = sand.u32 %s128, 1
        %s217 = scalar_lea.sflag [#allocation4], %s216
        %s218 = sand.u32 %s128, 1
        %s219 = smul.addr %s218, 144
        %s220 = scalar_lea.vmem [#allocation3], %s219
        %p221 = scmp.lt.s32.totalorder %s22, 1
        %s222 = scalar_select %p221, %s22, 1
        %p223 = scmp.lt.s32.totalorder %s23, 1
        %s224 = scalar_select %p223, %s23, 1
        %s225 = smul.addr %s224, 33
        %s226 = smul.addr %s222, 66
        %s227 = sadd.s32 %s225, %s226
        %s228 = smul.addr %s227, 4
        %s229 = scalar_lea.vmem %s0, %s228
        %p230 = scmp.lt.s32.totalorder %s24, 0
        %s231 = scalar_select %p230, %s24, 0
        %s232 = smul.addr %s231, 2
        %s233 = scalar_lea.vmem %s1, %s232
        %p234 = scmp.lt.s32.totalorder %s24, 0
        %s235 = scalar_select %p234, %s24, 0
        %s236 = scalar_lea.vmem %s2, %s235
        %v238 = vld [vmem:[%s229] sm:$0xf]
        %v239 = vld [vmem:[%s229 + $0x4] sm:$0xf]
        %v240 = vld [vmem:[%s229 + $0x8] sm:$0x1]
        %v241 = vld [vmem:[%s229 + $0xc] sm:$0xf]
        %v242 = vld [vmem:[%s229 + $0x10] sm:$0xf]
        %v243 = vld [vmem:[%s229 + $0x14] sm:$0x1]
        %v244 = vld [vmem:[%s229 + $0x18] sm:$0xf]
        %v245 = vld [vmem:[%s229 + $0x1c] sm:$0xf]
        %v246 = vld [vmem:[%s229 + $0x20] sm:$0x1]
        %v247 = vld [vmem:[%s229 + $0x24] sm:$0xf]
        %v248 = vld [vmem:[%s229 + $0x28] sm:$0xf]
        %v249 = vld [vmem:[%s229 + $0x2c] sm:$0x1]
        %v250 = vld [vmem:[%s229 + $0x30] sm:$0xf]
        %v251 = vld [vmem:[%s229 + $0x34] sm:$0xf]
        %v252 = vld [vmem:[%s229 + $0x38] sm:$0x1]
        %v253 = vld [vmem:[%s229 + $0x3c] sm:$0xf]
        %v254 = vld [vmem:[%s229 + $0x40] sm:$0xf]
        %v255 = vld [vmem:[%s229 + $0x44] sm:$0x1]
        %v256 = vld [vmem:[%s229 + $0x48] sm:$0xf]
        %v257 = vld [vmem:[%s229 + $0x4c] sm:$0xf]
        %v258 = vld [vmem:[%s229 + $0x50] sm:$0x1]
        %v259 = vld [vmem:[%s229 + $0x54] sm:$0xf]
        %v260 = vld [vmem:[%s229 + $0x58] sm:$0xf]
        %v261 = vld [vmem:[%s229 + $0x5c] sm:$0x1]
        %v262 = vld [vmem:[%s229 + $0x60] sm:$0xf]
        %v263 = vld [vmem:[%s229 + $0x64] sm:$0xf]
        %v264 = vld [vmem:[%s229 + $0x68] sm:$0x1]
        %v265 = vld [vmem:[%s229 + $0x6c] sm:$0xf]
        %v266 = vld [vmem:[%s229 + $0x70] sm:$0xf]
        %v267 = vld [vmem:[%s229 + $0x74] sm:$0x1]
        %v268 = vld [vmem:[%s229 + $0x78] sm:$0xf]
        %v301 = vunpack.c.l.s4 1966171168
        %v302 = vunpack.c.0.s8 %v301
        %v303 = vlaneseq
        %v304 = vshrl.u32 %v303, 7
        %v305 = vsub.s32 %v302, %v304
        %v306 = vrot.slane %v238, %v305
        %v307 = vcombine.high %v306, %v306
        %v309 = vunpack.c.l.s4 1966171168
        %v310 = vunpack.c.0.s8 %v309
        %v311 = vlaneseq
        %v312 = vshrl.u32 %v311, 7
        %v313 = vsub.s32 %v310, %v312
        %v314 = vrot.slane %v306, %v313
        %v316 = vunpack.c.l.s4 1966171168
        %v317 = vunpack.c.0.s8 %v316
        %v318 = vlaneseq
        %v319 = vshrl.u32 %v318, 7
        %v320 = vsub.s32 %v317, %v319
        %v321 = vrot.slane %v307, %v320
        %v322 = vcombine.high %v314, %v314
        %v323 = vcombine.high %v321, %v321
        %v325 = vunpack.c.l.s4 1966171168
        %v326 = vunpack.c.0.s8 %v325
        %v327 = vlaneseq
        %v328 = vshrl.u32 %v327, 7
        %v329 = vsub.s32 %v326, %v328
        %v330 = vrot.slane %v239, %v329
        %v331 = vcombine.high %v330, %v330
        %v333 = vunpack.c.l.s4 1966171168
        %v334 = vunpack.c.0.s8 %v333
        %v335 = vlaneseq
        %v336 = vshrl.u32 %v335, 7
        %v337 = vsub.s32 %v334, %v336
        %v338 = vrot.slane %v330, %v337
        %v340 = vunpack.c.l.s4 1966171168
        %v341 = vunpack.c.0.s8 %v340
        %v342 = vlaneseq
        %v343 = vshrl.u32 %v342, 7
        %v344 = vsub.s32 %v341, %v343
        %v345 = vrot.slane %v331, %v344
        %v346 = vcombine.high %v338, %v338
        %v347 = vcombine.high %v345, %v345
        %v349 = vunpack.c.l.s4 1966171168
        %v350 = vunpack.c.0.s8 %v349
        %v351 = vlaneseq
        %v352 = vshrl.u32 %v351, 7
        %v353 = vsub.s32 %v350, %v352
        %v354 = vrot.slane %v240, %v353
        %v356 = vunpack.c.l.s4 1966171168
        %v357 = vunpack.c.0.s8 %v356
        %v358 = vlaneseq
        %v359 = vshrl.u32 %v358, 7
        %v360 = vsub.s32 %v357, %v359
        %v361 = vrot.slane %v354, %v360
        %v363 = vunpack.c.l.s4 1966171168
        %v364 = vunpack.c.0.s8 %v363
        %v365 = vlaneseq
        %v366 = vshrl.u32 %v365, 7
        %v367 = vsub.s32 %v364, %v366
        %v368 = vrot.slane %v241, %v367
        %v369 = vcombine.high %v368, %v368
        %v371 = vunpack.c.l.s4 1966171168
        %v372 = vunpack.c.0.s8 %v371
        %v373 = vlaneseq
        %v374 = vshrl.u32 %v373, 7
        %v375 = vsub.s32 %v372, %v374
        %v376 = vrot.slane %v368, %v375
        %v378 = vunpack.c.l.s4 1966171168
        %v379 = vunpack.c.0.s8 %v378
        %v380 = vlaneseq
        %v381 = vshrl.u32 %v380, 7
        %v382 = vsub.s32 %v379, %v381
        %v383 = vrot.slane %v369, %v382
        %v384 = vcombine.high %v376, %v376
        %v385 = vcombine.high %v383, %v383
        %v387 = vunpack.c.l.s4 1966171168
        %v388 = vunpack.c.0.s8 %v387
        %v389 = vlaneseq
        %v390 = vshrl.u32 %v389, 7
        %v391 = vsub.s32 %v388, %v390
        %v392 = vrot.slane %v242, %v391
        %v393 = vcombine.high %v392, %v392
        %v395 = vunpack.c.l.s4 1966171168
        %v396 = vunpack.c.0.s8 %v395
        %v397 = vlaneseq
        %v398 = vshrl.u32 %v397, 7
        %v399 = vsub.s32 %v396, %v398
        %v400 = vrot.slane %v392, %v399
        %v402 = vunpack.c.l.s4 1966171168
        %v403 = vunpack.c.0.s8 %v402
        %v404 = vlaneseq
        %v405 = vshrl.u32 %v404, 7
        %v406 = vsub.s32 %v403, %v405
        %v407 = vrot.slane %v393, %v406
        %v408 = vcombine.high %v400, %v400
        %v409 = vcombine.high %v407, %v407
        %v411 = vunpack.c.l.s4 1966171168
        %v412 = vunpack.c.0.s8 %v411
        %v413 = vlaneseq
        %v414 = vshrl.u32 %v413, 7
        %v415 = vsub.s32 %v412, %v414
        %v416 = vrot.slane %v243, %v415
        %v418 = vunpack.c.l.s4 1966171168
        %v419 = vunpack.c.0.s8 %v418
        %v420 = vlaneseq
        %v421 = vshrl.u32 %v420, 7
        %v422 = vsub.s32 %v419, %v421
        %v423 = vrot.slane %v416, %v422
        %v425 = vunpack.c.l.s4 1966171168
        %v426 = vunpack.c.0.s8 %v425
        %v427 = vlaneseq
        %v428 = vshrl.u32 %v427, 7
        %v429 = vsub.s32 %v426, %v428
        %v430 = vrot.slane %v244, %v429
        %v431 = vcombine.high %v430, %v430
        %v433 = vunpack.c.l.s4 1966171168
        %v434 = vunpack.c.0.s8 %v433
        %v435 = vlaneseq
        %v436 = vshrl.u32 %v435, 7
        %v437 = vsub.s32 %v434, %v436
        %v438 = vrot.slane %v430, %v437
        %v440 = vunpack.c.l.s4 1966171168
        %v441 = vunpack.c.0.s8 %v440
        %v442 = vlaneseq
        %v443 = vshrl.u32 %v442, 7
        %v444 = vsub.s32 %v441, %v443
        %v445 = vrot.slane %v431, %v444
        %v446 = vcombine.high %v438, %v438
        %v447 = vcombine.high %v445, %v445
        %v449 = vunpack.c.l.s4 1966171168
        %v450 = vunpack.c.0.s8 %v449
        %v451 = vlaneseq
        %v452 = vshrl.u32 %v451, 7
        %v453 = vsub.s32 %v450, %v452
        %v454 = vrot.slane %v245, %v453
        %v455 = vcombine.high %v454, %v454
        %v457 = vunpack.c.l.s4 1966171168
        %v458 = vunpack.c.0.s8 %v457
        %v459 = vlaneseq
        %v460 = vshrl.u32 %v459, 7
        %v461 = vsub.s32 %v458, %v460
        %v462 = vrot.slane %v454, %v461
        %v464 = vunpack.c.l.s4 1966171168
        %v465 = vunpack.c.0.s8 %v464
        %v466 = vlaneseq
        %v467 = vshrl.u32 %v466, 7
        %v468 = vsub.s32 %v465, %v467
        %v469 = vrot.slane %v455, %v468
        %v470 = vcombine.high %v462, %v462
        %v471 = vcombine.high %v469, %v469
        %v473 = vunpack.c.l.s4 1966171168
        %v474 = vunpack.c.0.s8 %v473
        %v475 = vlaneseq
        %v476 = vshrl.u32 %v475, 7
        %v477 = vsub.s32 %v474, %v476
        %v478 = vrot.slane %v246, %v477
        %v480 = vunpack.c.l.s4 1966171168
        %v481 = vunpack.c.0.s8 %v480
        %v482 = vlaneseq
        %v483 = vshrl.u32 %v482, 7
        %v484 = vsub.s32 %v481, %v483
        %v485 = vrot.slane %v478, %v484
        %v487 = vunpack.c.l.s4 1966171168
        %v488 = vunpack.c.0.s8 %v487
        %v489 = vlaneseq
        %v490 = vshrl.u32 %v489, 7
        %v491 = vsub.s32 %v488, %v490
        %v492 = vrot.slane %v247, %v491
        %v493 = vcombine.high %v492, %v492
        %v495 = vunpack.c.l.s4 1966171168
        %v496 = vunpack.c.0.s8 %v495
        %v497 = vlaneseq
        %v498 = vshrl.u32 %v497, 7
        %v499 = vsub.s32 %v496, %v498
        %v500 = vrot.slane %v492, %v499
        %v502 = vunpack.c.l.s4 1966171168
        %v503 = vunpack.c.0.s8 %v502
        %v504 = vlaneseq
        %v505 = vshrl.u32 %v504, 7
        %v506 = vsub.s32 %v503, %v505
        %v507 = vrot.slane %v493, %v506
        %v508 = vcombine.high %v500, %v500
        %v509 = vcombine.high %v507, %v507
        %v511 = vunpack.c.l.s4 1966171168
        %v512 = vunpack.c.0.s8 %v511
        %v513 = vlaneseq
        %v514 = vshrl.u32 %v513, 7
        %v515 = vsub.s32 %v512, %v514
        %v516 = vrot.slane %v248, %v515
        %v517 = vcombine.high %v516, %v516
        %v519 = vunpack.c.l.s4 1966171168
        %v520 = vunpack.c.0.s8 %v519
        %v521 = vlaneseq
        %v522 = vshrl.u32 %v521, 7
        %v523 = vsub.s32 %v520, %v522
        %v524 = vrot.slane %v516, %v523
        %v526 = vunpack.c.l.s4 1966171168
        %v527 = vunpack.c.0.s8 %v526
        %v528 = vlaneseq
        %v529 = vshrl.u32 %v528, 7
        %v530 = vsub.s32 %v527, %v529
        %v531 = vrot.slane %v517, %v530
        %v532 = vcombine.high %v524, %v524
        %v533 = vcombine.high %v531, %v531
        %v535 = vunpack.c.l.s4 1966171168
        %v536 = vunpack.c.0.s8 %v535
        %v537 = vlaneseq
        %v538 = vshrl.u32 %v537, 7
        %v539 = vsub.s32 %v536, %v538
        %v540 = vrot.slane %v249, %v539
        %v542 = vunpack.c.l.s4 1966171168
        %v543 = vunpack.c.0.s8 %v542
        %v544 = vlaneseq
        %v545 = vshrl.u32 %v544, 7
        %v546 = vsub.s32 %v543, %v545
        %v547 = vrot.slane %v540, %v546
        %v549 = vunpack.c.l.s4 1966171168
        %v550 = vunpack.c.0.s8 %v549
        %v551 = vlaneseq
        %v552 = vshrl.u32 %v551, 7
        %v553 = vsub.s32 %v550, %v552
        %v554 = vrot.slane %v250, %v553
        %v555 = vcombine.high %v554, %v554
        %v557 = vunpack.c.l.s4 1966171168
        %v558 = vunpack.c.0.s8 %v557
        %v559 = vlaneseq
        %v560 = vshrl.u32 %v559, 7
        %v561 = vsub.s32 %v558, %v560
        %v562 = vrot.slane %v554, %v561
        %v564 = vunpack.c.l.s4 1966171168
        %v565 = vunpack.c.0.s8 %v564
        %v566 = vlaneseq
        %v567 = vshrl.u32 %v566, 7
        %v568 = vsub.s32 %v565, %v567
        %v569 = vrot.slane %v555, %v568
        %v570 = vcombine.high %v562, %v562
        %v571 = vcombine.high %v569, %v569
        %v573 = vunpack.c.l.s4 1966171168
        %v574 = vunpack.c.0.s8 %v573
        %v575 = vlaneseq
        %v576 = vshrl.u32 %v575, 7
        %v577 = vsub.s32 %v574, %v576
        %v578 = vrot.slane %v251, %v577
        %v579 = vcombine.high %v578, %v578
        %v581 = vunpack.c.l.s4 1966171168
        %v582 = vunpack.c.0.s8 %v581
        %v583 = vlaneseq
        %v584 = vshrl.u32 %v583, 7
        %v585 = vsub.s32 %v582, %v584
        %v586 = vrot.slane %v578, %v585
        %v588 = vunpack.c.l.s4 1966171168
        %v589 = vunpack.c.0.s8 %v588
        %v590 = vlaneseq
        %v591 = vshrl.u32 %v590, 7
        %v592 = vsub.s32 %v589, %v591
        %v593 = vrot.slane %v579, %v592
        %v594 = vcombine.high %v586, %v586
        %v595 = vcombine.high %v593, %v593
        %v597 = vunpack.c.l.s4 1966171168
        %v598 = vunpack.c.0.s8 %v597
        %v599 = vlaneseq
        %v600 = vshrl.u32 %v599, 7
        %v601 = vsub.s32 %v598, %v600
        %v602 = vrot.slane %v252, %v601
        %v604 = vunpack.c.l.s4 1966171168
        %v605 = vunpack.c.0.s8 %v604
        %v606 = vlaneseq
        %v607 = vshrl.u32 %v606, 7
        %v608 = vsub.s32 %v605, %v607
        %v609 = vrot.slane %v602, %v608
        %v611 = vunpack.c.l.s4 1966171168
        %v612 = vunpack.c.0.s8 %v611
        %v613 = vlaneseq
        %v614 = vshrl.u32 %v613, 7
        %v615 = vsub.s32 %v612, %v614
        %v616 = vrot.slane %v253, %v615
        %v617 = vcombine.high %v616, %v616
        %v619 = vunpack.c.l.s4 1966171168
        %v620 = vunpack.c.0.s8 %v619
        %v621 = vlaneseq
        %v622 = vshrl.u32 %v621, 7
        %v623 = vsub.s32 %v620, %v622
        %v624 = vrot.slane %v616, %v623
        %v626 = vunpack.c.l.s4 1966171168
        %v627 = vunpack.c.0.s8 %v626
        %v628 = vlaneseq
        %v629 = vshrl.u32 %v628, 7
        %v630 = vsub.s32 %v627, %v629
        %v631 = vrot.slane %v617, %v630
        %v632 = vcombine.high %v624, %v624
        %v633 = vcombine.high %v631, %v631
        %v635 = vunpack.c.l.s4 1966171168
        %v636 = vunpack.c.0.s8 %v635
        %v637 = vlaneseq
        %v638 = vshrl.u32 %v637, 7
        %v639 = vsub.s32 %v636, %v638
        %v640 = vrot.slane %v254, %v639
        %v641 = vcombine.high %v640, %v640
        %v643 = vunpack.c.l.s4 1966171168
        %v644 = vunpack.c.0.s8 %v643
        %v645 = vlaneseq
        %v646 = vshrl.u32 %v645, 7
        %v647 = vsub.s32 %v644, %v646
        %v648 = vrot.slane %v640, %v647
        %v650 = vunpack.c.l.s4 1966171168
        %v651 = vunpack.c.0.s8 %v650
        %v652 = vlaneseq
        %v653 = vshrl.u32 %v652, 7
        %v654 = vsub.s32 %v651, %v653
        %v655 = vrot.slane %v641, %v654
        %v656 = vcombine.high %v648, %v648
        %v657 = vcombine.high %v655, %v655
        %v659 = vunpack.c.l.s4 1966171168
        %v660 = vunpack.c.0.s8 %v659
        %v661 = vlaneseq
        %v662 = vshrl.u32 %v661, 7
        %v663 = vsub.s32 %v660, %v662
        %v664 = vrot.slane %v255, %v663
        %v666 = vunpack.c.l.s4 1966171168
        %v667 = vunpack.c.0.s8 %v666
        %v668 = vlaneseq
        %v669 = vshrl.u32 %v668, 7
        %v670 = vsub.s32 %v667, %v669
        %v671 = vrot.slane %v664, %v670
        %v673 = vunpack.c.l.s4 1966171168
        %v674 = vunpack.c.0.s8 %v673
        %v675 = vlaneseq
        %v676 = vshrl.u32 %v675, 7
        %v677 = vsub.s32 %v674, %v676
        %v678 = vrot.slane %v256, %v677
        %v679 = vcombine.high %v678, %v678
        %v681 = vunpack.c.l.s4 1966171168
        %v682 = vunpack.c.0.s8 %v681
        %v683 = vlaneseq
        %v684 = vshrl.u32 %v683, 7
        %v685 = vsub.s32 %v682, %v684
        %v686 = vrot.slane %v678, %v685
        %v688 = vunpack.c.l.s4 1966171168
        %v689 = vunpack.c.0.s8 %v688
        %v690 = vlaneseq
        %v691 = vshrl.u32 %v690, 7
        %v692 = vsub.s32 %v689, %v691
        %v693 = vrot.slane %v679, %v692
        %v694 = vcombine.high %v686, %v686
        %v695 = vcombine.high %v693, %v693
        %v697 = vunpack.c.l.s4 1966171168
        %v698 = vunpack.c.0.s8 %v697
        %v699 = vlaneseq
        %v700 = vshrl.u32 %v699, 7
        %v701 = vsub.s32 %v698, %v700
        %v702 = vrot.slane %v257, %v701
        %v703 = vcombine.high %v702, %v702
        %v705 = vunpack.c.l.s4 1966171168
        %v706 = vunpack.c.0.s8 %v705
        %v707 = vlaneseq
        %v708 = vshrl.u32 %v707, 7
        %v709 = vsub.s32 %v706, %v708
        %v710 = vrot.slane %v702, %v709
        %v712 = vunpack.c.l.s4 1966171168
        %v713 = vunpack.c.0.s8 %v712
        %v714 = vlaneseq
        %v715 = vshrl.u32 %v714, 7
        %v716 = vsub.s32 %v713, %v715
        %v717 = vrot.slane %v703, %v716
        %v718 = vcombine.high %v710, %v710
        %v719 = vcombine.high %v717, %v717
        %v721 = vunpack.c.l.s4 1966171168
        %v722 = vunpack.c.0.s8 %v721
        %v723 = vlaneseq
        %v724 = vshrl.u32 %v723, 7
        %v725 = vsub.s32 %v722, %v724
        %v726 = vrot.slane %v258, %v725
        %v728 = vunpack.c.l.s4 1966171168
        %v729 = vunpack.c.0.s8 %v728
        %v730 = vlaneseq
        %v731 = vshrl.u32 %v730, 7
        %v732 = vsub.s32 %v729, %v731
        %v733 = vrot.slane %v726, %v732
        %v735 = vunpack.c.l.s4 1966171168
        %v736 = vunpack.c.0.s8 %v735
        %v737 = vlaneseq
        %v738 = vshrl.u32 %v737, 7
        %v739 = vsub.s32 %v736, %v738
        %v740 = vrot.slane %v259, %v739
        %v741 = vcombine.high %v740, %v740
        %v743 = vunpack.c.l.s4 1966171168
        %v744 = vunpack.c.0.s8 %v743
        %v745 = vlaneseq
        %v746 = vshrl.u32 %v745, 7
        %v747 = vsub.s32 %v744, %v746
        %v748 = vrot.slane %v740, %v747
        %v750 = vunpack.c.l.s4 1966171168
        %v751 = vunpack.c.0.s8 %v750
        %v752 = vlaneseq
        %v753 = vshrl.u32 %v752, 7
        %v754 = vsub.s32 %v751, %v753
        %v755 = vrot.slane %v741, %v754
        %v756 = vcombine.high %v748, %v748
        %v757 = vcombine.high %v755, %v755
        %v759 = vunpack.c.l.s4 1966171168
        %v760 = vunpack.c.0.s8 %v759
        %v761 = vlaneseq
        %v762 = vshrl.u32 %v761, 7
        %v763 = vsub.s32 %v760, %v762
        %v764 = vrot.slane %v260, %v763
        %v765 = vcombine.high %v764, %v764
        %v767 = vunpack.c.l.s4 1966171168
        %v768 = vunpack.c.0.s8 %v767
        %v769 = vlaneseq
        %v770 = vshrl.u32 %v769, 7
        %v771 = vsub.s32 %v768, %v770
        %v772 = vrot.slane %v764, %v771
        %v774 = vunpack.c.l.s4 1966171168
        %v775 = vunpack.c.0.s8 %v774
        %v776 = vlaneseq
        %v777 = vshrl.u32 %v776, 7
        %v778 = vsub.s32 %v775, %v777
        %v779 = vrot.slane %v765, %v778
        %v780 = vcombine.high %v772, %v772
        %v781 = vcombine.high %v779, %v779
        %v783 = vunpack.c.l.s4 1966171168
        %v784 = vunpack.c.0.s8 %v783
        %v785 = vlaneseq
        %v786 = vshrl.u32 %v785, 7
        %v787 = vsub.s32 %v784, %v786
        %v788 = vrot.slane %v261, %v787
        %v790 = vunpack.c.l.s4 1966171168
        %v791 = vunpack.c.0.s8 %v790
        %v792 = vlaneseq
        %v793 = vshrl.u32 %v792, 7
        %v794 = vsub.s32 %v791, %v793
        %v795 = vrot.slane %v788, %v794
        %v797 = vunpack.c.l.s4 1966171168
        %v798 = vunpack.c.0.s8 %v797
        %v799 = vlaneseq
        %v800 = vshrl.u32 %v799, 7
        %v801 = vsub.s32 %v798, %v800
        %v802 = vrot.slane %v262, %v801
        %v803 = vcombine.high %v802, %v802
        %v805 = vunpack.c.l.s4 1966171168
        %v806 = vunpack.c.0.s8 %v805
        %v807 = vlaneseq
        %v808 = vshrl.u32 %v807, 7
        %v809 = vsub.s32 %v806, %v808
        %v810 = vrot.slane %v802, %v809
        %v812 = vunpack.c.l.s4 1966171168
        %v813 = vunpack.c.0.s8 %v812
        %v814 = vlaneseq
        %v815 = vshrl.u32 %v814, 7
        %v816 = vsub.s32 %v813, %v815
        %v817 = vrot.slane %v803, %v816
        %v818 = vcombine.high %v810, %v810
        %v819 = vcombine.high %v817, %v817
        %v821 = vunpack.c.l.s4 1966171168
        %v822 = vunpack.c.0.s8 %v821
        %v823 = vlaneseq
        %v824 = vshrl.u32 %v823, 7
        %v825 = vsub.s32 %v822, %v824
        %v826 = vrot.slane %v263, %v825
        %v827 = vcombine.high %v826, %v826
        %v829 = vunpack.c.l.s4 1966171168
        %v830 = vunpack.c.0.s8 %v829
        %v831 = vlaneseq
        %v832 = vshrl.u32 %v831, 7
        %v833 = vsub.s32 %v830, %v832
        %v834 = vrot.slane %v826, %v833
        %v836 = vunpack.c.l.s4 1966171168
        %v837 = vunpack.c.0.s8 %v836
        %v838 = vlaneseq
        %v839 = vshrl.u32 %v838, 7
        %v840 = vsub.s32 %v837, %v839
        %v841 = vrot.slane %v827, %v840
        %v842 = vcombine.high %v834, %v834
        %v843 = vcombine.high %v841, %v841
        %v845 = vunpack.c.l.s4 1966171168
        %v846 = vunpack.c.0.s8 %v845
        %v847 = vlaneseq
        %v848 = vshrl.u32 %v847, 7
        %v849 = vsub.s32 %v846, %v848
        %v850 = vrot.slane %v264, %v849
        %v852 = vunpack.c.l.s4 1966171168
        %v853 = vunpack.c.0.s8 %v852
        %v854 = vlaneseq
        %v855 = vshrl.u32 %v854, 7
        %v856 = vsub.s32 %v853, %v855
        %v857 = vrot.slane %v850, %v856
        %v859 = vunpack.c.l.s4 1966171168
        %v860 = vunpack.c.0.s8 %v859
        %v861 = vlaneseq
        %v862 = vshrl.u32 %v861, 7
        %v863 = vsub.s32 %v860, %v862
        %v864 = vrot.slane %v265, %v863
        %v865 = vcombine.high %v864, %v864
        %v867 = vunpack.c.l.s4 1966171168
        %v868 = vunpack.c.0.s8 %v867
        %v869 = vlaneseq
        %v870 = vshrl.u32 %v869, 7
        %v871 = vsub.s32 %v868, %v870
        %v872 = vrot.slane %v864, %v871
        %v874 = vunpack.c.l.s4 1966171168
        %v875 = vunpack.c.0.s8 %v874
        %v876 = vlaneseq
        %v877 = vshrl.u32 %v876, 7
        %v878 = vsub.s32 %v875, %v877
        %v879 = vrot.slane %v865, %v878
        %v880 = vcombine.high %v872, %v872
        %v881 = vcombine.high %v879, %v879
        %v883 = vunpack.c.l.s4 1966171168
        %v884 = vunpack.c.0.s8 %v883
        %v885 = vlaneseq
        %v886 = vshrl.u32 %v885, 7
        %v887 = vsub.s32 %v884, %v886
        %v888 = vrot.slane %v266, %v887
        %v889 = vcombine.high %v888, %v888
        %v891 = vunpack.c.l.s4 1966171168
        %v892 = vunpack.c.0.s8 %v891
        %v893 = vlaneseq
        %v894 = vshrl.u32 %v893, 7
        %v895 = vsub.s32 %v892, %v894
        %v896 = vrot.slane %v888, %v895
        %v898 = vunpack.c.l.s4 1966171168
        %v899 = vunpack.c.0.s8 %v898
        %v900 = vlaneseq
        %v901 = vshrl.u32 %v900, 7
        %v902 = vsub.s32 %v899, %v901
        %v903 = vrot.slane %v889, %v902
        %v904 = vcombine.high %v896, %v896
        %v905 = vcombine.high %v903, %v903
        %v907 = vunpack.c.l.s4 1966171168
        %v908 = vunpack.c.0.s8 %v907
        %v909 = vlaneseq
        %v910 = vshrl.u32 %v909, 7
        %v911 = vsub.s32 %v908, %v910
        %v912 = vrot.slane %v267, %v911
        %v914 = vunpack.c.l.s4 1966171168
        %v915 = vunpack.c.0.s8 %v914
        %v916 = vlaneseq
        %v917 = vshrl.u32 %v916, 7
        %v918 = vsub.s32 %v915, %v917
        %v919 = vrot.slane %v912, %v918
        %v921 = vunpack.c.l.s4 1966171168
        %v922 = vunpack.c.0.s8 %v921
        %v923 = vlaneseq
        %v924 = vshrl.u32 %v923, 7
        %v925 = vsub.s32 %v922, %v924
        %v926 = vrot.slane %v268, %v925
        %v928 = vunpack.c.l.s4 1966171168
        %v929 = vunpack.c.0.s8 %v928
        %v930 = vlaneseq
        %v931 = vshrl.u32 %v930, 7
        %v932 = vsub.s32 %v929, %v931
        %v933 = vrot.slane %v926, %v932
        %934 = vst [vmem:[#allocation2] sm:$0xff] 0.0
        %935 = vst [vmem:[#allocation2 + $0x8] sm:$0xff] 0.0
        %936 = vst [vmem:[#allocation2 + $0x10] sm:$0xff] 0.0
        %937 = vst [vmem:[#allocation2 + $0x18] sm:$0xff] 0.0
        %938 = vst [vmem:[#allocation2 + $0x20] sm:$0xff] 0.0
        %939 = vst [vmem:[#allocation2 + $0x28] sm:$0xff] 0.0
        %940 = vst [vmem:[#allocation2 + $0x30] sm:$0xff] 0.0
        %941 = vst [vmem:[#allocation2 + $0x38] sm:$0xff] 0.0
        %942 = vst [vmem:[#allocation2 + $0x40] sm:$0xff] 0.0
        %943 = vst [vmem:[#allocation2 + $0x48] sm:$0xff] 0.0
        %944 = vst [vmem:[#allocation2 + $0x50] sm:$0xff] 0.0
        %945 = vst [vmem:[#allocation2 + $0x58] sm:$0xff] 0.0
        %946 = vst [vmem:[#allocation2 + $0x60] sm:$0xff] 0.0
        %947 = vst [vmem:[#allocation2 + $0x68] sm:$0xff] 0.0
        %948 = vst [vmem:[#allocation2 + $0x70] sm:$0xff] 0.0
        %949 = vst [vmem:[#allocation2 + $0x78] sm:$0xff] 0.0
        %950 = vst [vmem:[#allocation2 + $0x80] sm:$0xff] 0.0
        %951 = vst [vmem:[#allocation2 + $0x88] sm:$0xff] 0.0
        %v952 = vld [vmem:[#allocation2] sm:$0xff]
        %v953 = vld [vmem:[#allocation2 + $0x8] sm:$0xff]
        %v954 = vld [vmem:[#allocation2 + $0x10] sm:$0xff]
        %v955 = vld [vmem:[#allocation2 + $0x18] sm:$0xff]
        %v956 = vld [vmem:[#allocation2 + $0x20] sm:$0xff]
        %v957 = vld [vmem:[#allocation2 + $0x28] sm:$0xff]
        %v958 = vld [vmem:[#allocation2 + $0x30] sm:$0xff]
        %v959 = vld [vmem:[#allocation2 + $0x38] sm:$0xff]
        %v960 = vld [vmem:[#allocation2 + $0x40] sm:$0xff]
        %v961 = vld [vmem:[#allocation2 + $0x48] sm:$0xff]
        %v962 = vld [vmem:[#allocation2 + $0x50] sm:$0xff]
        %v963 = vld [vmem:[#allocation2 + $0x58] sm:$0xff]
        %v964 = vld [vmem:[#allocation2 + $0x60] sm:$0xff]
        %v965 = vld [vmem:[#allocation2 + $0x68] sm:$0xff]
        %v966 = vld [vmem:[#allocation2 + $0x70] sm:$0xff]
        %v967 = vld [vmem:[#allocation2 + $0x78] sm:$0xff]
        %v968 = vld [vmem:[#allocation2 + $0x80] sm:$0xff]
        %v969 = vld [vmem:[#allocation2 + $0x88] sm:$0xff]
        %v970 = vld [vmem:[%s233] sm:$0x3]
        %v971 = vcombine.low %v314, %v321
        %v972 = vcombine.low %v322, %v323
        %v973 = vcombine.low %v338, %v345
        %v974 = vcombine.low %v346, %v347
        %v976 = vunpack.c.l.s4 1966171168
        %v977 = vunpack.c.0.s8 %v976
        %v978 = vlaneseq
        %v979 = vshrl.u32 %v978, 7
        %v980 = vsub.s32 %v977, %v979
        %v981 = vrot.slane %v971, %v980
        %v983 = vunpack.c.l.s4 1966171168
        %v984 = vunpack.c.0.s8 %v983
        %v985 = vlaneseq
        %v986 = vshrl.u32 %v985, 7
        %v987 = vsub.s32 %v984, %v986
        %v988 = vrot.slane %v972, %v987
        %v990 = vunpack.c.l.s4 1966171168
        %v991 = vunpack.c.0.s8 %v990
        %v992 = vlaneseq
        %v993 = vshrl.u32 %v992, 7
        %v994 = vsub.s32 %v991, %v993
        %v995 = vrot.slane %v973, %v994
        %v997 = vunpack.c.l.s4 1966171168
        %v998 = vunpack.c.0.s8 %v997
        %v999 = vlaneseq
        %v1000 = vshrl.u32 %v999, 7
        %v1001 = vsub.s32 %v998, %v1000
        %v1002 = vrot.slane %v974, %v1001
        %v1003 = vcombine.low %v981, %v988
        %v1004 = vcombine.low %v995, %v1002
        %v1006 = vunpack.c.l.s4 1966171168
        %v1007 = vunpack.c.0.s8 %v1006
        %v1008 = vlaneseq
        %v1009 = vshrl.u32 %v1008, 7
        %v1010 = vsub.s32 %v1007, %v1009
        %v1011 = vrot.slane %v1003, %v1010
        %v1013 = vunpack.c.l.s4 1966171168
        %v1014 = vunpack.c.0.s8 %v1013
        %v1015 = vlaneseq
        %v1016 = vshrl.u32 %v1015, 7
        %v1017 = vsub.s32 %v1014, %v1016
        %v1018 = vrot.slane %v1004, %v1017
        %v1019 = vcombine.low %v1011, %v1018
        %v1020 = vcombine.low %v361, %v376
        %v1021 = vcombine.low %v383, %v384
        %v1022 = vcombine.low %v385, %v400
        %v1023 = vcombine.low %v407, %v408
        %v1025 = vunpack.c.l.s4 1966171168
        %v1026 = vunpack.c.0.s8 %v1025
        %v1027 = vlaneseq
        %v1028 = vshrl.u32 %v1027, 7
        %v1029 = vsub.s32 %v1026, %v1028
        %v1030 = vrot.slane %v1020, %v1029
        %v1032 = vunpack.c.l.s4 1966171168
        %v1033 = vunpack.c.0.s8 %v1032
        %v1034 = vlaneseq
        %v1035 = vshrl.u32 %v1034, 7
        %v1036 = vsub.s32 %v1033, %v1035
        %v1037 = vrot.slane %v1021, %v1036
        %v1039 = vunpack.c.l.s4 1966171168
        %v1040 = vunpack.c.0.s8 %v1039
        %v1041 = vlaneseq
        %v1042 = vshrl.u32 %v1041, 7
        %v1043 = vsub.s32 %v1040, %v1042
        %v1044 = vrot.slane %v1022, %v1043
        %v1046 = vunpack.c.l.s4 1966171168
        %v1047 = vunpack.c.0.s8 %v1046
        %v1048 = vlaneseq
        %v1049 = vshrl.u32 %v1048, 7
        %v1050 = vsub.s32 %v1047, %v1049
        %v1051 = vrot.slane %v1023, %v1050
        %v1052 = vcombine.low %v1030, %v1037
        %v1053 = vcombine.low %v1044, %v1051
        %v1055 = vunpack.c.l.s4 1966171168
        %v1056 = vunpack.c.0.s8 %v1055
        %v1057 = vlaneseq
        %v1058 = vshrl.u32 %v1057, 7
        %v1059 = vsub.s32 %v1056, %v1058
        %v1060 = vrot.slane %v1052, %v1059
        %v1062 = vunpack.c.l.s4 1966171168
        %v1063 = vunpack.c.0.s8 %v1062
        %v1064 = vlaneseq
        %v1065 = vshrl.u32 %v1064, 7
        %v1066 = vsub.s32 %v1063, %v1065
        %v1067 = vrot.slane %v1053, %v1066
        %v1068 = vcombine.low %v1060, %v1067
        %v1069 = vcombine.low %v409, %v423
        %v1070 = vcombine.low %v438, %v445
        %v1071 = vcombine.low %v446, %v447
        %v1072 = vcombine.low %v462, %v469
        %v1074 = vunpack.c.l.s4 1966171168
        %v1075 = vunpack.c.0.s8 %v1074
        %v1076 = vlaneseq
        %v1077 = vshrl.u32 %v1076, 7
        %v1078 = vsub.s32 %v1075, %v1077
        %v1079 = vrot.slane %v1069, %v1078
        %v1081 = vunpack.c.l.s4 1966171168
        %v1082 = vunpack.c.0.s8 %v1081
        %v1083 = vlaneseq
        %v1084 = vshrl.u32 %v1083, 7
        %v1085 = vsub.s32 %v1082, %v1084
        %v1086 = vrot.slane %v1070, %v1085
        %v1088 = vunpack.c.l.s4 1966171168
        %v1089 = vunpack.c.0.s8 %v1088
        %v1090 = vlaneseq
        %v1091 = vshrl.u32 %v1090, 7
        %v1092 = vsub.s32 %v1089, %v1091
        %v1093 = vrot.slane %v1071, %v1092
        %v1095 = vunpack.c.l.s4 1966171168
        %v1096 = vunpack.c.0.s8 %v1095
        %v1097 = vlaneseq
        %v1098 = vshrl.u32 %v1097, 7
        %v1099 = vsub.s32 %v1096, %v1098
        %v1100 = vrot.slane %v1072, %v1099
        %v1101 = vcombine.low %v1079, %v1086
        %v1102 = vcombine.low %v1093, %v1100
        %v1104 = vunpack.c.l.s4 1966171168
        %v1105 = vunpack.c.0.s8 %v1104
        %v1106 = vlaneseq
        %v1107 = vshrl.u32 %v1106, 7
        %v1108 = vsub.s32 %v1105, %v1107
        %v1109 = vrot.slane %v1101, %v1108
        %v1111 = vunpack.c.l.s4 1966171168
        %v1112 = vunpack.c.0.s8 %v1111
        %v1113 = vlaneseq
        %v1114 = vshrl.u32 %v1113, 7
        %v1115 = vsub.s32 %v1112, %v1114
        %v1116 = vrot.slane %v1102, %v1115
        %v1117 = vcombine.low %v1109, %v1116
        %v1118 = vcombine.low %v470, %v471
        %v1119 = vcombine.low %v485, %v500
        %v1120 = vcombine.low %v507, %v508
        %v1121 = vcombine.low %v509, %v524
        %v1123 = vunpack.c.l.s4 1966171168
        %v1124 = vunpack.c.0.s8 %v1123
        %v1125 = vlaneseq
        %v1126 = vshrl.u32 %v1125, 7
        %v1127 = vsub.s32 %v1124, %v1126
        %v1128 = vrot.slane %v1118, %v1127
        %v1130 = vunpack.c.l.s4 1966171168
        %v1131 = vunpack.c.0.s8 %v1130
        %v1132 = vlaneseq
        %v1133 = vshrl.u32 %v1132, 7
        %v1134 = vsub.s32 %v1131, %v1133
        %v1135 = vrot.slane %v1119, %v1134
        %v1137 = vunpack.c.l.s4 1966171168
        %v1138 = vunpack.c.0.s8 %v1137
        %v1139 = vlaneseq
        %v1140 = vshrl.u32 %v1139, 7
        %v1141 = vsub.s32 %v1138, %v1140
        %v1142 = vrot.slane %v1120, %v1141
        %v1144 = vunpack.c.l.s4 1966171168
        %v1145 = vunpack.c.0.s8 %v1144
        %v1146 = vlaneseq
        %v1147 = vshrl.u32 %v1146, 7
        %v1148 = vsub.s32 %v1145, %v1147
        %v1149 = vrot.slane %v1121, %v1148
        %v1150 = vcombine.low %v1128, %v1135
        %v1151 = vcombine.low %v1142, %v1149
        %v1153 = vunpack.c.l.s4 1966171168
        %v1154 = vunpack.c.0.s8 %v1153
        %v1155 = vlaneseq
        %v1156 = vshrl.u32 %v1155, 7
        %v1157 = vsub.s32 %v1154, %v1156
        %v1158 = vrot.slane %v1150, %v1157
        %v1160 = vunpack.c.l.s4 1966171168
        %v1161 = vunpack.c.0.s8 %v1160
        %v1162 = vlaneseq
        %v1163 = vshrl.u32 %v1162, 7
        %v1164 = vsub.s32 %v1161, %v1163
        %v1165 = vrot.slane %v1151, %v1164
        %v1166 = vcombine.low %v1158, %v1165
        %v1167 = vcombine.low %v531, %v532
        %v1168 = vcombine.low %v533, %v547
        %v1169 = vcombine.low %v562, %v569
        %v1170 = vcombine.low %v570, %v571
        %v1172 = vunpack.c.l.s4 1966171168
        %v1173 = vunpack.c.0.s8 %v1172
        %v1174 = vlaneseq
        %v1175 = vshrl.u32 %v1174, 7
        %v1176 = vsub.s32 %v1173, %v1175
        %v1177 = vrot.slane %v1167, %v1176
        %v1179 = vunpack.c.l.s4 1966171168
        %v1180 = vunpack.c.0.s8 %v1179
        %v1181 = vlaneseq
        %v1182 = vshrl.u32 %v1181, 7
        %v1183 = vsub.s32 %v1180, %v1182
        %v1184 = vrot.slane %v1168, %v1183
        %v1186 = vunpack.c.l.s4 1966171168
        %v1187 = vunpack.c.0.s8 %v1186
        %v1188 = vlaneseq
        %v1189 = vshrl.u32 %v1188, 7
        %v1190 = vsub.s32 %v1187, %v1189
        %v1191 = vrot.slane %v1169, %v1190
        %v1193 = vunpack.c.l.s4 1966171168
        %v1194 = vunpack.c.0.s8 %v1193
        %v1195 = vlaneseq
        %v1196 = vshrl.u32 %v1195, 7
        %v1197 = vsub.s32 %v1194, %v1196
        %v1198 = vrot.slane %v1170, %v1197
        %v1199 = vcombine.low %v1177, %v1184
        %v1200 = vcombine.low %v1191, %v1198
        %v1202 = vunpack.c.l.s4 1966171168
        %v1203 = vunpack.c.0.s8 %v1202
        %v1204 = vlaneseq
        %v1205 = vshrl.u32 %v1204, 7
        %v1206 = vsub.s32 %v1203, %v1205
        %v1207 = vrot.slane %v1199, %v1206
        %v1209 = vunpack.c.l.s4 1966171168
        %v1210 = vunpack.c.0.s8 %v1209
        %v1211 = vlaneseq
        %v1212 = vshrl.u32 %v1211, 7
        %v1213 = vsub.s32 %v1210, %v1212
        %v1214 = vrot.slane %v1200, %v1213
        %v1215 = vcombine.low %v1207, %v1214
        %v1216 = vcombine.low %v586, %v593
        %v1217 = vcombine.low %v594, %v595
        %v1218 = vcombine.low %v609, %v624
        %v1219 = vcombine.low %v631, %v632
        %v1221 = vunpack.c.l.s4 1966171168
        %v1222 = vunpack.c.0.s8 %v1221
        %v1223 = vlaneseq
        %v1224 = vshrl.u32 %v1223, 7
        %v1225 = vsub.s32 %v1222, %v1224
        %v1226 = vrot.slane %v1216, %v1225
        %v1228 = vunpack.c.l.s4 1966171168
        %v1229 = vunpack.c.0.s8 %v1228
        %v1230 = vlaneseq
        %v1231 = vshrl.u32 %v1230, 7
        %v1232 = vsub.s32 %v1229, %v1231
        %v1233 = vrot.slane %v1217, %v1232
        %v1235 = vunpack.c.l.s4 1966171168
        %v1236 = vunpack.c.0.s8 %v1235
        %v1237 = vlaneseq
        %v1238 = vshrl.u32 %v1237, 7
        %v1239 = vsub.s32 %v1236, %v1238
        %v1240 = vrot.slane %v1218, %v1239
        %v1242 = vunpack.c.l.s4 1966171168
        %v1243 = vunpack.c.0.s8 %v1242
        %v1244 = vlaneseq
        %v1245 = vshrl.u32 %v1244, 7
        %v1246 = vsub.s32 %v1243, %v1245
        %v1247 = vrot.slane %v1219, %v1246
        %v1248 = vcombine.low %v1226, %v1233
        %v1249 = vcombine.low %v1240, %v1247
        %v1251 = vunpack.c.l.s4 1966171168
        %v1252 = vunpack.c.0.s8 %v1251
        %v1253 = vlaneseq
        %v1254 = vshrl.u32 %v1253, 7
        %v1255 = vsub.s32 %v1252, %v1254
        %v1256 = vrot.slane %v1248, %v1255
        %v1258 = vunpack.c.l.s4 1966171168
        %v1259 = vunpack.c.0.s8 %v1258
        %v1260 = vlaneseq
        %v1261 = vshrl.u32 %v1260, 7
        %v1262 = vsub.s32 %v1259, %v1261
        %v1263 = vrot.slane %v1249, %v1262
        %v1264 = vcombine.low %v1256, %v1263
        %v1265 = vcombine.low %v633, %v648
        %v1266 = vcombine.low %v655, %v656
        %v1267 = vcombine.low %v657, %v671
        %v1268 = vcombine.low %v686, %v693
        %v1270 = vunpack.c.l.s4 1966171168
        %v1271 = vunpack.c.0.s8 %v1270
        %v1272 = vlaneseq
        %v1273 = vshrl.u32 %v1272, 7
        %v1274 = vsub.s32 %v1271, %v1273
        %v1275 = vrot.slane %v1265, %v1274
        %v1277 = vunpack.c.l.s4 1966171168
        %v1278 = vunpack.c.0.s8 %v1277
        %v1279 = vlaneseq
        %v1280 = vshrl.u32 %v1279, 7
        %v1281 = vsub.s32 %v1278, %v1280
        %v1282 = vrot.slane %v1266, %v1281
        %v1284 = vunpack.c.l.s4 1966171168
        %v1285 = vunpack.c.0.s8 %v1284
        %v1286 = vlaneseq
        %v1287 = vshrl.u32 %v1286, 7
        %v1288 = vsub.s32 %v1285, %v1287
        %v1289 = vrot.slane %v1267, %v1288
        %v1291 = vunpack.c.l.s4 1966171168
        %v1292 = vunpack.c.0.s8 %v1291
        %v1293 = vlaneseq
        %v1294 = vshrl.u32 %v1293, 7
        %v1295 = vsub.s32 %v1292, %v1294
        %v1296 = vrot.slane %v1268, %v1295
        %v1297 = vcombine.low %v1275, %v1282
        %v1298 = vcombine.low %v1289, %v1296
        %v1300 = vunpack.c.l.s4 1966171168
        %v1301 = vunpack.c.0.s8 %v1300
        %v1302 = vlaneseq
        %v1303 = vshrl.u32 %v1302, 7
        %v1304 = vsub.s32 %v1301, %v1303
        %v1305 = vrot.slane %v1297, %v1304
        %v1307 = vunpack.c.l.s4 1966171168
        %v1308 = vunpack.c.0.s8 %v1307
        %v1309 = vlaneseq
        %v1310 = vshrl.u32 %v1309, 7
        %v1311 = vsub.s32 %v1308, %v1310
        %v1312 = vrot.slane %v1298, %v1311
        %v1313 = vcombine.low %v1305, %v1312
        %v1314 = vcombine.low %v694, %v695
        %v1315 = vcombine.low %v710, %v717
        %v1316 = vcombine.low %v718, %v719
        %v1317 = vcombine.low %v733, %v748
        %v1319 = vunpack.c.l.s4 1966171168
        %v1320 = vunpack.c.0.s8 %v1319
        %v1321 = vlaneseq
        %v1322 = vshrl.u32 %v1321, 7
        %v1323 = vsub.s32 %v1320, %v1322
        %v1324 = vrot.slane %v1314, %v1323
        %v1326 = vunpack.c.l.s4 1966171168
        %v1327 = vunpack.c.0.s8 %v1326
        %v1328 = vlaneseq
        %v1329 = vshrl.u32 %v1328, 7
        %v1330 = vsub.s32 %v1327, %v1329
        %v1331 = vrot.slane %v1315, %v1330
        %v1333 = vunpack.c.l.s4 1966171168
        %v1334 = vunpack.c.0.s8 %v1333
        %v1335 = vlaneseq
        %v1336 = vshrl.u32 %v1335, 7
        %v1337 = vsub.s32 %v1334, %v1336
        %v1338 = vrot.slane %v1316, %v1337
        %v1340 = vunpack.c.l.s4 1966171168
        %v1341 = vunpack.c.0.s8 %v1340
        %v1342 = vlaneseq
        %v1343 = vshrl.u32 %v1342, 7
        %v1344 = vsub.s32 %v1341, %v1343
        %v1345 = vrot.slane %v1317, %v1344
        %v1346 = vcombine.low %v1324, %v1331
        %v1347 = vcombine.low %v1338, %v1345
        %v1349 = vunpack.c.l.s4 1966171168
        %v1350 = vunpack.c.0.s8 %v1349
        %v1351 = vlaneseq
        %v1352 = vshrl.u32 %v1351, 7
        %v1353 = vsub.s32 %v1350, %v1352
        %v1354 = vrot.slane %v1346, %v1353
        %v1356 = vunpack.c.l.s4 1966171168
        %v1357 = vunpack.c.0.s8 %v1356
        %v1358 = vlaneseq
        %v1359 = vshrl.u32 %v1358, 7
        %v1360 = vsub.s32 %v1357, %v1359
        %v1361 = vrot.slane %v1347, %v1360
        %v1362 = vcombine.low %v1354, %v1361
        %v1363 = vcombine.low %v755, %v756
        %v1364 = vcombine.low %v757, %v772
        %v1365 = vcombine.low %v779, %v780
        %v1366 = vcombine.low %v781, %v795
        %v1368 = vunpack.c.l.s4 1966171168
        %v1369 = vunpack.c.0.s8 %v1368
        %v1370 = vlaneseq
        %v1371 = vshrl.u32 %v1370, 7
        %v1372 = vsub.s32 %v1369, %v1371
        %v1373 = vrot.slane %v1363, %v1372
        %v1375 = vunpack.c.l.s4 1966171168
        %v1376 = vunpack.c.0.s8 %v1375
        %v1377 = vlaneseq
        %v1378 = vshrl.u32 %v1377, 7
        %v1379 = vsub.s32 %v1376, %v1378
        %v1380 = vrot.slane %v1364, %v1379
        %v1382 = vunpack.c.l.s4 1966171168
        %v1383 = vunpack.c.0.s8 %v1382
        %v1384 = vlaneseq
        %v1385 = vshrl.u32 %v1384, 7
        %v1386 = vsub.s32 %v1383, %v1385
        %v1387 = vrot.slane %v1365, %v1386
        %v1389 = vunpack.c.l.s4 1966171168
        %v1390 = vunpack.c.0.s8 %v1389
        %v1391 = vlaneseq
        %v1392 = vshrl.u32 %v1391, 7
        %v1393 = vsub.s32 %v1390, %v1392
        %v1394 = vrot.slane %v1366, %v1393
        %v1395 = vcombine.low %v1373, %v1380
        %v1396 = vcombine.low %v1387, %v1394
        %v1398 = vunpack.c.l.s4 1966171168
        %v1399 = vunpack.c.0.s8 %v1398
        %v1400 = vlaneseq
        %v1401 = vshrl.u32 %v1400, 7
        %v1402 = vsub.s32 %v1399, %v1401
        %v1403 = vrot.slane %v1395, %v1402
        %v1405 = vunpack.c.l.s4 1966171168
        %v1406 = vunpack.c.0.s8 %v1405
        %v1407 = vlaneseq
        %v1408 = vshrl.u32 %v1407, 7
        %v1409 = vsub.s32 %v1406, %v1408
        %v1410 = vrot.slane %v1396, %v1409
        %v1411 = vcombine.low %v1403, %v1410
        %vm1412 = vcmask 31744
        %v1414 = vsel %vm1412, %v1019, 0
        %v1417 = vsel %vm1412, %v1068, 0
        %v1420 = vsel %vm1412, %v1117, 0
        %v1423 = vsel %vm1412, %v1166, 0
        %v1426 = vsel %vm1412, %v1215, 0
        %v1429 = vsel %vm1412, %v1264, 0
        %v1432 = vsel %vm1412, %v1313, 0
        %v1435 = vsel %vm1412, %v1362, 0
        %v1438 = vsel %vm1412, %v1411, 0
        %vm1440 = vcmask 1041408
        %v1442 = vsel %vm1440, %v970, 0
        %1444 = vmatprep.subr.bf16.mxu0 0
        %1445 = vmatpush1.bf16.msra.mxu0 %v1442
        %1446 = vmatprep.subr.bf16.mxu0 0
        %1447 = vmatpush1.bf16.msra.mxu0 0
        %1448 = vmatprep.subr.bf16.mxu0 0
        %1449 = vmatpush1.bf16.msra.mxu0 0
        %1450 = vmatprep.subr.bf16.mxu0 0
        %1451 = vmatpush1.bf16.msra.mxu0 0
        %1452 = vmatprep.subr.bf16.mxu0 0
        %1453 = vmatpush1.bf16.msra.mxu0 0
        %1454 = vmatprep.subr.bf16.mxu0 0
        %1455 = vmatpush1.bf16.msra.mxu0 0
        %1456 = vmatprep.subr.bf16.mxu0 0
        %1457 = vmatpush1.bf16.msra.mxu0 0
        %1458 = vmatprep.subr.bf16.mxu0 0
        %1459 = vmatpush1.bf16.msra.mxu0 0
        %1460 = vmatprep.subr.bf16.mxu0 0
        %1461 = vmatpush1.bf16.msra.mxu0 0
        %1462 = vmatprep.subr.bf16.mxu0 0
        %1463 = vmatpush1.bf16.msra.mxu0 0
        %1464 = vmatprep.subr.bf16.mxu0 0
        %1465 = vmatpush1.bf16.msra.mxu0 0
        %1466 = vmatprep.subr.bf16.mxu0 0
        %1467 = vmatpush1.bf16.msra.mxu0 0
        %1468 = vmatprep.subr.bf16.mxu0 0
        %1469 = vmatpush1.bf16.msra.mxu0 0
        %1470 = vmatprep.subr.bf16.mxu0 0
        %1471 = vmatpush1.bf16.msra.mxu0 0
        %1472 = vmatprep.subr.bf16.mxu0 0
        %1473 = vmatpush1.bf16.msra.mxu0 0
        %1474 = vmatprep.subr.bf16.mxu0 0
        %1475 = vmatpush1.bf16.msra.mxu0 0
        %1476 = vmatprep.mubr.bf16.mxu0 0
        %1477 = vmatmul.mubr.bf16.gmra.mrb[0].mxu0 %v1414
        %v1478 = vpop.f32.mrb[0].mxu0
        %v1479 = vadd.f32 0.0, %v1478
        %v1480 = vpop.f32.mrb[0].mxu0
        %v1481 = vpop.f32.mrb[0].mxu0
        %v1482 = vadd.f32 0.0, %v1481
        %v1483 = vpop.f32.mrb[0].mxu0
        %1484 = vmatprep.mubr.bf16.mxu0 0
        %1485 = vmatmul.mubr.bf16.gmra.mrb[0].mxu0 %v1417
        %v1486 = vpop.f32.mrb[0].mxu0
        %v1487 = vadd.f32 0.0, %v1486
        %v1488 = vpop.f32.mrb[0].mxu0
        %v1489 = vpop.f32.mrb[0].mxu0
        %v1490 = vadd.f32 0.0, %v1489
        %v1491 = vpop.f32.mrb[0].mxu0
        %1492 = vmatprep.mubr.bf16.mxu0 0
        %1493 = vmatmul.mubr.bf16.gmra.mrb[0].mxu0 %v1420
        %v1494 = vpop.f32.mrb[0].mxu0
        %v1495 = vadd.f32 0.0, %v1494
        %v1496 = vpop.f32.mrb[0].mxu0
        %v1497 = vpop.f32.mrb[0].mxu0
        %v1498 = vadd.f32 0.0, %v1497
        %v1499 = vpop.f32.mrb[0].mxu0
        %1500 = vmatprep.mubr.bf16.mxu0 0
        %1501 = vmatmul.mubr.bf16.gmra.mrb[0].mxu0 %v1423
        %v1502 = vpop.f32.mrb[0].mxu0
        %v1503 = vadd.f32 0.0, %v1502
        %v1504 = vpop.f32.mrb[0].mxu0
        %v1505 = vpop.f32.mrb[0].mxu0
        %v1506 = vadd.f32 0.0, %v1505
        %v1507 = vpop.f32.mrb[0].mxu0
        %1508 = vmatprep.mubr.bf16.mxu0 0
        %1509 = vmatmul.mubr.bf16.gmra.mrb[0].mxu0 %v1426
        %v1510 = vpop.f32.mrb[0].mxu0
        %v1511 = vadd.f32 0.0, %v1510
        %v1512 = vpop.f32.mrb[0].mxu0
        %v1513 = vpop.f32.mrb[0].mxu0
        %v1514 = vadd.f32 0.0, %v1513
        %v1515 = vpop.f32.mrb[0].mxu0
        %1516 = vmatprep.mubr.bf16.mxu0 0
        %1517 = vmatmul.mubr.bf16.gmra.mrb[0].mxu0 %v1429
        %v1518 = vpop.f32.mrb[0].mxu0
        %v1519 = vadd.f32 0.0, %v1518
        %v1520 = vpop.f32.mrb[0].mxu0
        %v1521 = vpop.f32.mrb[0].mxu0
        %v1522 = vadd.f32 0.0, %v1521
        %v1523 = vpop.f32.mrb[0].mxu0
        %1524 = vmatprep.mubr.bf16.mxu0 0
        %1525 = vmatmul.mubr.bf16.gmra.mrb[0].mxu0 %v1432
        %v1526 = vpop.f32.mrb[0].mxu0
        %v1527 = vadd.f32 0.0, %v1526
        %v1528 = vpop.f32.mrb[0].mxu0
        %v1529 = vpop.f32.mrb[0].mxu0
        %v1530 = vadd.f32 0.0, %v1529
        %v1531 = vpop.f32.mrb[0].mxu0
        %1532 = vmatprep.mubr.bf16.mxu0 0
        %1533 = vmatmul.mubr.bf16.gmra.mrb[0].mxu0 %v1435
        %v1534 = vpop.f32.mrb[0].mxu0
        %v1535 = vadd.f32 0.0, %v1534
        %v1536 = vpop.f32.mrb[0].mxu0
        %v1537 = vpop.f32.mrb[0].mxu0
        %v1538 = vadd.f32 0.0, %v1537
        %v1539 = vpop.f32.mrb[0].mxu0
        %1540 = vmatprep.mubr.bf16.mxu0 0
        %1541 = vmatmul.mubr.bf16.gmra.mrb[0].mxu0 %v1438
        %v1542 = vpop.f32.mrb[0].mxu0
        %v1543 = vadd.f32 0.0, %v1542
        %v1544 = vpop.f32.mrb[0].mxu0
        %v1545 = vpop.f32.mrb[0].mxu0
        %v1546 = vadd.f32 0.0, %v1545
        %v1547 = vpop.f32.mrb[0].mxu0
        %1548 = vdwg.mxu0
        %v1549 = vadd.f32 %v952, %v1479
        %v1550 = vadd.f32 %v953, %v1482
        %v1551 = vadd.f32 %v954, %v1487
        %v1552 = vadd.f32 %v955, %v1490
        %v1553 = vadd.f32 %v956, %v1495
        %v1554 = vadd.f32 %v957, %v1498
        %v1555 = vadd.f32 %v958, %v1503
        %v1556 = vadd.f32 %v959, %v1506
        %v1557 = vadd.f32 %v960, %v1511
        %v1558 = vadd.f32 %v961, %v1514
        %v1559 = vadd.f32 %v962, %v1519
        %v1560 = vadd.f32 %v963, %v1522
        %v1561 = vadd.f32 %v964, %v1527
        %v1562 = vadd.f32 %v965, %v1530
        %v1563 = vadd.f32 %v966, %v1535
        %v1564 = vadd.f32 %v967, %v1538
        %v1565 = vadd.f32 %v968, %v1543
        %v1566 = vadd.f32 %v969, %v1546
        %1567 = vst [vmem:[#allocation2] sm:$0xff] %v1549
        %1568 = vst [vmem:[#allocation2 + $0x8] sm:$0xff] %v1550
        %1569 = vst [vmem:[#allocation2 + $0x10] sm:$0xff] %v1551
        %1570 = vst [vmem:[#allocation2 + $0x18] sm:$0xff] %v1552
        %1571 = vst [vmem:[#allocation2 + $0x20] sm:$0xff] %v1553
        %1572 = vst [vmem:[#allocation2 + $0x28] sm:$0xff] %v1554
        %1573 = vst [vmem:[#allocation2 + $0x30] sm:$0xff] %v1555
        %1574 = vst [vmem:[#allocation2 + $0x38] sm:$0xff] %v1556
        %1575 = vst [vmem:[#allocation2 + $0x40] sm:$0xff] %v1557
        %1576 = vst [vmem:[#allocation2 + $0x48] sm:$0xff] %v1558
        %1577 = vst [vmem:[#allocation2 + $0x50] sm:$0xff] %v1559
        %1578 = vst [vmem:[#allocation2 + $0x58] sm:$0xff] %v1560
        %1579 = vst [vmem:[#allocation2 + $0x60] sm:$0xff] %v1561
        %1580 = vst [vmem:[#allocation2 + $0x68] sm:$0xff] %v1562
        %1581 = vst [vmem:[#allocation2 + $0x70] sm:$0xff] %v1563
        %1582 = vst [vmem:[#allocation2 + $0x78] sm:$0xff] %v1564
        %1583 = vst [vmem:[#allocation2 + $0x80] sm:$0xff] %v1565
        %1584 = vst [vmem:[#allocation2 + $0x88] sm:$0xff] %v1566
        %v1585 = vld [vmem:[#allocation2] sm:$0xff]
        %v1586 = vld [vmem:[#allocation2 + $0x8] sm:$0xff]
        %v1587 = vld [vmem:[#allocation2 + $0x10] sm:$0xff]
        %v1588 = vld [vmem:[#allocation2 + $0x18] sm:$0xff]
        %v1589 = vld [vmem:[#allocation2 + $0x20] sm:$0xff]
        %v1590 = vld [vmem:[#allocation2 + $0x28] sm:$0xff]
        %v1591 = vld [vmem:[#allocation2 + $0x30] sm:$0xff]
        %v1592 = vld [vmem:[#allocation2 + $0x38] sm:$0xff]
        %v1593 = vld [vmem:[#allocation2 + $0x40] sm:$0xff]
        %v1594 = vld [vmem:[#allocation2 + $0x48] sm:$0xff]
        %v1595 = vld [vmem:[#allocation2 + $0x50] sm:$0xff]
        %v1596 = vld [vmem:[#allocation2 + $0x58] sm:$0xff]
        %v1597 = vld [vmem:[#allocation2 + $0x60] sm:$0xff]
        %v1598 = vld [vmem:[#allocation2 + $0x68] sm:$0xff]
        %v1599 = vld [vmem:[#allocation2 + $0x70] sm:$0xff]
        %v1600 = vld [vmem:[#allocation2 + $0x78] sm:$0xff]
        %v1601 = vld [vmem:[#allocation2 + $0x80] sm:$0xff]
        %v1602 = vld [vmem:[#allocation2 + $0x88] sm:$0xff]
        %s1603 = scalar_lea.vmem %s233, 2
        %v1604 = vld [vmem:[%s1603] sm:$0x3]
        %v1606 = vunpack.c.l.s4 1966171168
        %v1607 = vunpack.c.0.s8 %v1606
        %v1608 = vlaneseq
        %v1609 = vshrl.u32 %v1608, 7
        %v1610 = vsub.s32 %v1607, %v1609
        %v1611 = vrot.slane %v810, %v1610
        %v1613 = vunpack.c.l.s4 1966171168
        %v1614 = vunpack.c.0.s8 %v1613
        %v1615 = vlaneseq
        %v1616 = vshrl.u32 %v1615, 7
        %v1617 = vsub.s32 %v1614, %v1616
        %v1618 = vrot.slane %v1611, %v1617
        %vm1619 = vsmask.f32 7424
        %v1620 = vshrl.u32 %v1019, 16
        %v1622 = vshll.u32 %v1019, 16
        %v1624 = vrot.slane %v1622, 1
        %v1625 = vor.u32 %v1620, %v1624
        %v1626 = vshll.u32 %v1068, 16
        %v1628 = vrot.slane %v1626, 1
        %v1629 = vsel %vm1619, %v1625, %v1628
        %v1630 = vshrl.u32 %v1068, 16
        %v1632 = vor.u32 %v1630, %v1628
        %v1633 = vshll.u32 %v1117, 16
        %v1635 = vrot.slane %v1633, 1
        %v1636 = vsel %vm1619, %v1632, %v1635
        %v1637 = vshrl.u32 %v1117, 16
        %v1639 = vor.u32 %v1637, %v1635
        %v1640 = vshll.u32 %v1166, 16
        %v1642 = vrot.slane %v1640, 1
        %v1643 = vsel %vm1619, %v1639, %v1642
        %v1644 = vshrl.u32 %v1166, 16
        %v1646 = vor.u32 %v1644, %v1642
        %v1647 = vshll.u32 %v1215, 16
        %v1649 = vrot.slane %v1647, 1
        %v1650 = vsel %vm1619, %v1646, %v1649
        %v1651 = vshrl.u32 %v1215, 16
        %v1653 = vor.u32 %v1651, %v1649
        %v1654 = vshll.u32 %v1264, 16
        %v1656 = vrot.slane %v1654, 1
        %v1657 = vsel %vm1619, %v1653, %v1656
        %v1658 = vshrl.u32 %v1264, 16
        %v1660 = vor.u32 %v1658, %v1656
        %v1661 = vshll.u32 %v1313, 16
        %v1663 = vrot.slane %v1661, 1
        %v1664 = vsel %vm1619, %v1660, %v1663
        %v1665 = vshrl.u32 %v1313, 16
        %v1667 = vor.u32 %v1665, %v1663
        %v1668 = vshll.u32 %v1362, 16
        %v1670 = vrot.slane %v1668, 1
        %v1671 = vsel %vm1619, %v1667, %v1670
        %v1672 = vshrl.u32 %v1362, 16
        %v1674 = vor.u32 %v1672, %v1670
        %v1675 = vshll.u32 %v1411, 16
        %v1677 = vrot.slane %v1675, 1
        %v1678 = vsel %vm1619, %v1674, %v1677
        %v1679 = vshrl.u32 %v1411, 16
        %v1681 = vor.u32 %v1679, %v1677
        %v1683 = vshll.u32 %v1618, 16
        %v1685 = vrot.slane %v1683, 1
        %v1686 = vsel %vm1619, %v1681, %v1685
        %v1688 = vsel %vm1412, %v1629, 0
        %v1691 = vsel %vm1412, %v1636, 0
        %v1694 = vsel %vm1412, %v1643, 0
        %v1697 = vsel %vm1412, %v1650, 0
        %v1700 = vsel %vm1412, %v1657, 0
        %v1703 = vsel %vm1412, %v1664, 0
        %v1706 = vsel %vm1412, %v1671, 0
        %v1709 = vsel %vm1412, %v1678, 0
        %v1712 = vsel %vm1412, %v1686, 0
        %v1715 = vsel %vm1440, %v1604, 0
        %1717 = vmatprep.subr.bf16.mxu0 0
        %1718 = vmatpush1.bf16.msra.mxu0 %v1715
        %1719 = vmatprep.subr.bf16.mxu0 0
        %1720 = vmatpush1.bf16.msra.mxu0 0
        %1721 = vmatprep.subr.bf16.mxu0 0
        %1722 = vmatpush1.bf16.msra.mxu0 0
        %1723 = vmatprep.subr.bf16.mxu0 0
        %1724 = vmatpush1.bf16.msra.mxu0 0
        %1725 = vmatprep.subr.bf16.mxu0 0
        %1726 = vmatpush1.bf16.msra.mxu0 0
        %1727 = vmatprep.subr.bf16.mxu0 0
        %1728 = vmatpush1.bf16.msra.mxu0 0
        %1729 = vmatprep.subr.bf16.mxu0 0
        %1730 = vmatpush1.bf16.msra.mxu0 0
        %1731 = vmatprep.subr.bf16.mxu0 0
        %1732 = vmatpush1.bf16.msra.mxu0 0
        %1733 = vmatprep.subr.bf16.mxu0 0
        %1734 = vmatpush1.bf16.msra.mxu0 0
        %1735 = vmatprep.subr.bf16.mxu0 0
        %1736 = vmatpush1.bf16.msra.mxu0 0
        %1737 = vmatprep.subr.bf16.mxu0 0
        %1738 = vmatpush1.bf16.msra.mxu0 0
        %1739 = vmatprep.subr.bf16.mxu0 0
        %1740 = vmatpush1.bf16.msra.mxu0 0
        %1741 = vmatprep.subr.bf16.mxu0 0
        %1742 = vmatpush1.bf16.msra.mxu0 0
        %1743 = vmatprep.subr.bf16.mxu0 0
        %1744 = vmatpush1.bf16.msra.mxu0 0
        %1745 = vmatprep.subr.bf16.mxu0 0
        %1746 = vmatpush1.bf16.msra.mxu0 0
        %1747 = vmatprep.subr.bf16.mxu0 0
        %1748 = vmatpush1.bf16.msra.mxu0 0
        %1749 = vmatprep.mubr.bf16.mxu0 0
        %1750 = vmatmul.mubr.bf16.gmra.mrb[0].mxu0 %v1688
        %v1751 = vpop.f32.mrb[0].mxu0
        %v1752 = vadd.f32 0.0, %v1751
        %v1753 = vpop.f32.mrb[0].mxu0
        %v1754 = vpop.f32.mrb[0].mxu0
        %v1755 = vadd.f32 0.0, %v1754
        %v1756 = vpop.f32.mrb[0].mxu0
        %1757 = vmatprep.mubr.bf16.mxu0 0
        %1758 = vmatmul.mubr.bf16.gmra.mrb[0].mxu0 %v1691
        %v1759 = vpop.f32.mrb[0].mxu0
        %v1760 = vadd.f32 0.0, %v1759
        %v1761 = vpop.f32.mrb[0].mxu0
        %v1762 = vpop.f32.mrb[0].mxu0
        %v1763 = vadd.f32 0.0, %v1762
        %v1764 = vpop.f32.mrb[0].mxu0
        %1765 = vmatprep.mubr.bf16.mxu0 0
        %1766 = vmatmul.mubr.bf16.gmra.mrb[0].mxu0 %v1694
        %v1767 = vpop.f32.mrb[0].mxu0
        %v1768 = vadd.f32 0.0, %v1767
        %v1769 = vpop.f32.mrb[0].mxu0
        %v1770 = vpop.f32.mrb[0].mxu0
        %v1771 = vadd.f32 0.0, %v1770
        %v1772 = vpop.f32.mrb[0].mxu0
        %1773 = vmatprep.mubr.bf16.mxu0 0
        %1774 = vmatmul.mubr.bf16.gmra.mrb[0].mxu0 %v1697
        %v1775 = vpop.f32.mrb[0].mxu0
        %v1776 = vadd.f32 0.0, %v1775
        %v1777 = vpop.f32.mrb[0].mxu0
        %v1778 = vpop.f32.mrb[0].mxu0
        %v1779 = vadd.f32 0.0, %v1778
        %v1780 = vpop.f32.mrb[0].mxu0
        %1781 = vmatprep.mubr.bf16.mxu0 0
        %1782 = vmatmul.mubr.bf16.gmra.mrb[0].mxu0 %v1700
        %v1783 = vpop.f32.mrb[0].mxu0
        %v1784 = vadd.f32 0.0, %v1783
        %v1785 = vpop.f32.mrb[0].mxu0
        %v1786 = vpop.f32.mrb[0].mxu0
        %v1787 = vadd.f32 0.0, %v1786
        %v1788 = vpop.f32.mrb[0].mxu0
        %1789 = vmatprep.mubr.bf16.mxu0 0
        %1790 = vmatmul.mubr.bf16.gmra.mrb[0].mxu0 %v1703
        %v1791 = vpop.f32.mrb[0].mxu0
        %v1792 = vadd.f32 0.0, %v1791
        %v1793 = vpop.f32.mrb[0].mxu0
        %v1794 = vpop.f32.mrb[0].mxu0
        %v1795 = vadd.f32 0.0, %v1794
        %v1796 = vpop.f32.mrb[0].mxu0
        %1797 = vmatprep.mubr.bf16.mxu0 0
        %1798 = vmatmul.mubr.bf16.gmra.mrb[0].mxu0 %v1706
        %v1799 = vpop.f32.mrb[0].mxu0
        %v1800 = vadd.f32 0.0, %v1799
        %v1801 = vpop.f32.mrb[0].mxu0
        %v1802 = vpop.f32.mrb[0].mxu0
        %v1803 = vadd.f32 0.0, %v1802
        %v1804 = vpop.f32.mrb[0].mxu0
        %1805 = vmatprep.mubr.bf16.mxu0 0
        %1806 = vmatmul.mubr.bf16.gmra.mrb[0].mxu0 %v1709
        %v1807 = vpop.f32.mrb[0].mxu0
        %v1808 = vadd.f32 0.0, %v1807
        %v1809 = vpop.f32.mrb[0].mxu0
        %v1810 = vpop.f32.mrb[0].mxu0
        %v1811 = vadd.f32 0.0, %v1810
        %v1812 = vpop.f32.mrb[0].mxu0
        %1813 = vmatprep.mubr.bf16.mxu0 0
        %1814 = vmatmul.mubr.bf16.gmra.mrb[0].mxu0 %v1712
        %v1815 = vpop.f32.mrb[0].mxu0
        %v1816 = vadd.f32 0.0, %v1815
        %v1817 = vpop.f32.mrb[0].mxu0
        %v1818 = vpop.f32.mrb[0].mxu0
        %v1819 = vadd.f32 0.0, %v1818
        %v1820 = vpop.f32.mrb[0].mxu0
        %1821 = vdwg.mxu0
        %v1822 = vadd.f32 %v1585, %v1752
        %v1823 = vadd.f32 %v1586, %v1755
        %v1824 = vadd.f32 %v1587, %v1760
        %v1825 = vadd.f32 %v1588, %v1763
        %v1826 = vadd.f32 %v1589, %v1768
        %v1827 = vadd.f32 %v1590, %v1771
        %v1828 = vadd.f32 %v1591, %v1776
        %v1829 = vadd.f32 %v1592, %v1779
        %v1830 = vadd.f32 %v1593, %v1784
        %v1831 = vadd.f32 %v1594, %v1787
        %v1832 = vadd.f32 %v1595, %v1792
        %v1833 = vadd.f32 %v1596, %v1795
        %v1834 = vadd.f32 %v1597, %v1800
        %v1835 = vadd.f32 %v1598, %v1803
        %v1836 = vadd.f32 %v1599, %v1808
        %v1837 = vadd.f32 %v1600, %v1811
        %v1838 = vadd.f32 %v1601, %v1816
        %v1839 = vadd.f32 %v1602, %v1819
        %1840 = vst [vmem:[#allocation2] sm:$0xff] %v1822
        %1841 = vst [vmem:[#allocation2 + $0x8] sm:$0xff] %v1823
        %1842 = vst [vmem:[#allocation2 + $0x10] sm:$0xff] %v1824
        %1843 = vst [vmem:[#allocation2 + $0x18] sm:$0xff] %v1825
        %1844 = vst [vmem:[#allocation2 + $0x20] sm:$0xff] %v1826
        %1845 = vst [vmem:[#allocation2 + $0x28] sm:$0xff] %v1827
        %1846 = vst [vmem:[#allocation2 + $0x30] sm:$0xff] %v1828
        %1847 = vst [vmem:[#allocation2 + $0x38] sm:$0xff] %v1829
        %1848 = vst [vmem:[#allocation2 + $0x40] sm:$0xff] %v1830
        %1849 = vst [vmem:[#allocation2 + $0x48] sm:$0xff] %v1831
        %1850 = vst [vmem:[#allocation2 + $0x50] sm:$0xff] %v1832
        %1851 = vst [vmem:[#allocation2 + $0x58] sm:$0xff] %v1833
        %1852 = vst [vmem:[#allocation2 + $0x60] sm:$0xff] %v1834
        %1853 = vst [vmem:[#allocation2 + $0x68] sm:$0xff] %v1835
        %1854 = vst [vmem:[#allocation2 + $0x70] sm:$0xff] %v1836
        %1855 = vst [vmem:[#allocation2 + $0x78] sm:$0xff] %v1837
        %1856 = vst [vmem:[#allocation2 + $0x80] sm:$0xff] %v1838
        %1857 = vst [vmem:[#allocation2 + $0x88] sm:$0xff] %v1839
        %v1858 = vld [vmem:[#allocation2] sm:$0xff]
        %v1859 = vld [vmem:[#allocation2 + $0x8] sm:$0xff]
        %v1860 = vld [vmem:[#allocation2 + $0x10] sm:$0xff]
        %v1861 = vld [vmem:[#allocation2 + $0x18] sm:$0xff]
        %v1862 = vld [vmem:[#allocation2 + $0x20] sm:$0xff]
        %v1863 = vld [vmem:[#allocation2 + $0x28] sm:$0xff]
        %v1864 = vld [vmem:[#allocation2 + $0x30] sm:$0xff]
        %v1865 = vld [vmem:[#allocation2 + $0x38] sm:$0xff]
        %v1866 = vld [vmem:[#allocation2 + $0x40] sm:$0xff]
        %v1867 = vld [vmem:[#allocation2 + $0x48] sm:$0xff]
        %v1868 = vld [vmem:[#allocation2 + $0x50] sm:$0xff]
        %v1869 = vld [vmem:[#allocation2 + $0x58] sm:$0xff]
        %v1870 = vld [vmem:[#allocation2 + $0x60] sm:$0xff]
        %v1871 = vld [vmem:[#allocation2 + $0x68] sm:$0xff]
        %v1872 = vld [vmem:[#allocation2 + $0x70] sm:$0xff]
        %v1873 = vld [vmem:[#allocation2 + $0x78] sm:$0xff]
        %v1874 = vld [vmem:[#allocation2 + $0x80] sm:$0xff]
        %v1875 = vld [vmem:[#allocation2 + $0x88] sm:$0xff]
        %s1876 = scalar_lea.vmem %s233, 4
        %v1877 = vld [vmem:[%s1876] sm:$0x3]
        %v1878 = vcombine.low %v321, %v322
        %v1879 = vcombine.low %v323, %v338
        %v1880 = vcombine.low %v345, %v346
        %v1881 = vcombine.low %v347, %v361
        %v1883 = vunpack.c.l.s4 1966171168
        %v1884 = vunpack.c.0.s8 %v1883
        %v1885 = vlaneseq
        %v1886 = vshrl.u32 %v1885, 7
        %v1887 = vsub.s32 %v1884, %v1886
        %v1888 = vrot.slane %v1878, %v1887
        %v1890 = vunpack.c.l.s4 1966171168
        %v1891 = vunpack.c.0.s8 %v1890
        %v1892 = vlaneseq
        %v1893 = vshrl.u32 %v1892, 7
        %v1894 = vsub.s32 %v1891, %v1893
        %v1895 = vrot.slane %v1879, %v1894
        %v1897 = vunpack.c.l.s4 1966171168
        %v1898 = vunpack.c.0.s8 %v1897
        %v1899 = vlaneseq
        %v1900 = vshrl.u32 %v1899, 7
        %v1901 = vsub.s32 %v1898, %v1900
        %v1902 = vrot.slane %v1880, %v1901
        %v1904 = vunpack.c.l.s4 1966171168
        %v1905 = vunpack.c.0.s8 %v1904
        %v1906 = vlaneseq
        %v1907 = vshrl.u32 %v1906, 7
        %v1908 = vsub.s32 %v1905, %v1907
        %v1909 = vrot.slane %v1881, %v1908
        %v1910 = vcombine.low %v1888, %v1895
        %v1911 = vcombine.low %v1902, %v1909
        %v1913 = vunpack.c.l.s4 1966171168
        %v1914 = vunpack.c.0.s8 %v1913
        %v1915 = vlaneseq
        %v1916 = vshrl.u32 %v1915, 7
        %v1917 = vsub.s32 %v1914, %v1916
        %v1918 = vrot.slane %v1910, %v1917
        %v1920 = vunpack.c.l.s4 1966171168
        %v1921 = vunpack.c.0.s8 %v1920
        %v1922 = vlaneseq
        %v1923 = vshrl.u32 %v1922, 7
        %v1924 = vsub.s32 %v1921, %v1923
        %v1925 = vrot.slane %v1911, %v1924
        %v1926 = vcombine.low %v1918, %v1925
        %v1927 = vcombine.low %v376, %v383
        %v1928 = vcombine.low %v384, %v385
        %v1929 = vcombine.low %v400, %v407
        %v1930 = vcombine.low %v408, %v409
        %v1932 = vunpack.c.l.s4 1966171168
        %v1933 = vunpack.c.0.s8 %v1932
        %v1934 = vlaneseq
        %v1935 = vshrl.u32 %v1934, 7
        %v1936 = vsub.s32 %v1933, %v1935
        %v1937 = vrot.slane %v1927, %v1936
        %v1939 = vunpack.c.l.s4 1966171168
        %v1940 = vunpack.c.0.s8 %v1939
        %v1941 = vlaneseq
        %v1942 = vshrl.u32 %v1941, 7
        %v1943 = vsub.s32 %v1940, %v1942
        %v1944 = vrot.slane %v1928, %v1943
        %v1946 = vunpack.c.l.s4 1966171168
        %v1947 = vunpack.c.0.s8 %v1946
        %v1948 = vlaneseq
        %v1949 = vshrl.u32 %v1948, 7
        %v1950 = vsub.s32 %v1947, %v1949
        %v1951 = vrot.slane %v1929, %v1950
        %v1953 = vunpack.c.l.s4 1966171168
        %v1954 = vunpack.c.0.s8 %v1953
        %v1955 = vlaneseq
        %v1956 = vshrl.u32 %v1955, 7
        %v1957 = vsub.s32 %v1954, %v1956
        %v1958 = vrot.slane %v1930, %v1957
        %v1959 = vcombine.low %v1937, %v1944
        %v1960 = vcombine.low %v1951, %v1958
        %v1962 = vunpack.c.l.s4 1966171168
        %v1963 = vunpack.c.0.s8 %v1962
        %v1964 = vlaneseq
        %v1965 = vshrl.u32 %v1964, 7
        %v1966 = vsub.s32 %v1963, %v1965
        %v1967 = vrot.slane %v1959, %v1966
        %v1969 = vunpack.c.l.s4 1966171168
        %v1970 = vunpack.c.0.s8 %v1969
        %v1971 = vlaneseq
        %v1972 = vshrl.u32 %v1971, 7
        %v1973 = vsub.s32 %v1970, %v1972
        %v1974 = vrot.slane %v1960, %v1973
        %v1975 = vcombine.low %v1967, %v1974
        %v1976 = vcombine.low %v423, %v438
        %v1977 = vcombine.low %v445, %v446
        %v1978 = vcombine.low %v447, %v462
        %v1979 = vcombine.low %v469, %v470
        %v1981 = vunpack.c.l.s4 1966171168
        %v1982 = vunpack.c.0.s8 %v1981
        %v1983 = vlaneseq
        %v1984 = vshrl.u32 %v1983, 7
        %v1985 = vsub.s32 %v1982, %v1984
        %v1986 = vrot.slane %v1976, %v1985
        %v1988 = vunpack.c.l.s4 1966171168
        %v1989 = vunpack.c.0.s8 %v1988
        %v1990 = vlaneseq
        %v1991 = vshrl.u32 %v1990, 7
        %v1992 = vsub.s32 %v1989, %v1991
        %v1993 = vrot.slane %v1977, %v1992
        %v1995 = vunpack.c.l.s4 1966171168
        %v1996 = vunpack.c.0.s8 %v1995
        %v1997 = vlaneseq
        %v1998 = vshrl.u32 %v1997, 7
        %v1999 = vsub.s32 %v1996, %v1998
        %v2000 = vrot.slane %v1978, %v1999
        %v2002 = vunpack.c.l.s4 1966171168
        %v2003 = vunpack.c.0.s8 %v2002
        %v2004 = vlaneseq
        %v2005 = vshrl.u32 %v2004, 7
        %v2006 = vsub.s32 %v2003, %v2005
        %v2007 = vrot.slane %v1979, %v2006
        %v2008 = vcombine.low %v1986, %v1993
        %v2009 = vcombine.low %v2000, %v2007
        %v2011 = vunpack.c.l.s4 1966171168
        %v2012 = vunpack.c.0.s8 %v2011
        %v2013 = vlaneseq
        %v2014 = vshrl.u32 %v2013, 7
        %v2015 = vsub.s32 %v2012, %v2014
        %v2016 = vrot.slane %v2008, %v2015
        %v2018 = vunpack.c.l.s4 1966171168
        %v2019 = vunpack.c.0.s8 %v2018
        %v2020 = vlaneseq
        %v2021 = vshrl.u32 %v2020, 7
        %v2022 = vsub.s32 %v2019, %v2021
        %v2023 = vrot.slane %v2009, %v2022
        %v2024 = vcombine.low %v2016, %v2023
        %v2025 = vcombine.low %v471, %v485
        %v2026 = vcombine.low %v500, %v507
        %v2027 = vcombine.low %v508, %v509
        %v2028 = vcombine.low %v524, %v531
        %v2030 = vunpack.c.l.s4 1966171168
        %v2031 = vunpack.c.0.s8 %v2030
        %v2032 = vlaneseq
        %v2033 = vshrl.u32 %v2032, 7
        %v2034 = vsub.s32 %v2031, %v2033
        %v2035 = vrot.slane %v2025, %v2034
        %v2037 = vunpack.c.l.s4 1966171168
        %v2038 = vunpack.c.0.s8 %v2037
        %v2039 = vlaneseq
        %v2040 = vshrl.u32 %v2039, 7
        %v2041 = vsub.s32 %v2038, %v2040
        %v2042 = vrot.slane %v2026, %v2041
        %v2044 = vunpack.c.l.s4 1966171168
        %v2045 = vunpack.c.0.s8 %v2044
        %v2046 = vlaneseq
        %v2047 = vshrl.u32 %v2046, 7
        %v2048 = vsub.s32 %v2045, %v2047
        %v2049 = vrot.slane %v2027, %v2048
        %v2051 = vunpack.c.l.s4 1966171168
        %v2052 = vunpack.c.0.s8 %v2051
        %v2053 = vlaneseq
        %v2054 = vshrl.u32 %v2053, 7
        %v2055 = vsub.s32 %v2052, %v2054
        %v2056 = vrot.slane %v2028, %v2055
        %v2057 = vcombine.low %v2035, %v2042
        %v2058 = vcombine.low %v2049, %v2056
        %v2060 = vunpack.c.l.s4 1966171168
        %v2061 = vunpack.c.0.s8 %v2060
        %v2062 = vlaneseq
        %v2063 = vshrl.u32 %v2062, 7
        %v2064 = vsub.s32 %v2061, %v2063
        %v2065 = vrot.slane %v2057, %v2064
        %v2067 = vunpack.c.l.s4 1966171168
        %v2068 = vunpack.c.0.s8 %v2067
        %v2069 = vlaneseq
        %v2070 = vshrl.u32 %v2069, 7
        %v2071 = vsub.s32 %v2068, %v2070
        %v2072 = vrot.slane %v2058, %v2071
        %v2073 = vcombine.low %v2065, %v2072
        %v2074 = vcombine.low %v532, %v533
        %v2075 = vcombine.low %v547, %v562
        %v2076 = vcombine.low %v569, %v570
        %v2077 = vcombine.low %v571, %v586
        %v2079 = vunpack.c.l.s4 1966171168
        %v2080 = vunpack.c.0.s8 %v2079
        %v2081 = vlaneseq
        %v2082 = vshrl.u32 %v2081, 7
        %v2083 = vsub.s32 %v2080, %v2082
        %v2084 = vrot.slane %v2074, %v2083
        %v2086 = vunpack.c.l.s4 1966171168
        %v2087 = vunpack.c.0.s8 %v2086
        %v2088 = vlaneseq
        %v2089 = vshrl.u32 %v2088, 7
        %v2090 = vsub.s32 %v2087, %v2089
        %v2091 = vrot.slane %v2075, %v2090
        %v2093 = vunpack.c.l.s4 1966171168
        %v2094 = vunpack.c.0.s8 %v2093
        %v2095 = vlaneseq
        %v2096 = vshrl.u32 %v2095, 7
        %v2097 = vsub.s32 %v2094, %v2096
        %v2098 = vrot.slane %v2076, %v2097
        %v2100 = vunpack.c.l.s4 1966171168
        %v2101 = vunpack.c.0.s8 %v2100
        %v2102 = vlaneseq
        %v2103 = vshrl.u32 %v2102, 7
        %v2104 = vsub.s32 %v2101, %v2103
        %v2105 = vrot.slane %v2077, %v2104
        %v2106 = vcombine.low %v2084, %v2091
        %v2107 = vcombine.low %v2098, %v2105
        %v2109 = vunpack.c.l.s4 1966171168
        %v2110 = vunpack.c.0.s8 %v2109
        %v2111 = vlaneseq
        %v2112 = vshrl.u32 %v2111, 7
        %v2113 = vsub.s32 %v2110, %v2112
        %v2114 = vrot.slane %v2106, %v2113
        %v2116 = vunpack.c.l.s4 1966171168
        %v2117 = vunpack.c.0.s8 %v2116
        %v2118 = vlaneseq
        %v2119 = vshrl.u32 %v2118, 7
        %v2120 = vsub.s32 %v2117, %v2119
        %v2121 = vrot.slane %v2107, %v2120
        %v2122 = vcombine.low %v2114, %v2121
        %v2123 = vcombine.low %v593, %v594
        %v2124 = vcombine.low %v595, %v609
        %v2125 = vcombine.low %v624, %v631
        %v2126 = vcombine.low %v632, %v633
        %v2128 = vunpack.c.l.s4 1966171168
        %v2129 = vunpack.c.0.s8 %v2128
        %v2130 = vlaneseq
        %v2131 = vshrl.u32 %v2130, 7
        %v2132 = vsub.s32 %v2129, %v2131
        %v2133 = vrot.slane %v2123, %v2132
        %v2135 = vunpack.c.l.s4 1966171168
        %v2136 = vunpack.c.0.s8 %v2135
        %v2137 = vlaneseq
        %v2138 = vshrl.u32 %v2137, 7
        %v2139 = vsub.s32 %v2136, %v2138
        %v2140 = vrot.slane %v2124, %v2139
        %v2142 = vunpack.c.l.s4 1966171168
        %v2143 = vunpack.c.0.s8 %v2142
        %v2144 = vlaneseq
        %v2145 = vshrl.u32 %v2144, 7
        %v2146 = vsub.s32 %v2143, %v2145
        %v2147 = vrot.slane %v2125, %v2146
        %v2149 = vunpack.c.l.s4 1966171168
        %v2150 = vunpack.c.0.s8 %v2149
        %v2151 = vlaneseq
        %v2152 = vshrl.u32 %v2151, 7
        %v2153 = vsub.s32 %v2150, %v2152
        %v2154 = vrot.slane %v2126, %v2153
        %v2155 = vcombine.low %v2133, %v2140
        %v2156 = vcombine.low %v2147, %v2154
        %v2158 = vunpack.c.l.s4 1966171168
        %v2159 = vunpack.c.0.s8 %v2158
        %v2160 = vlaneseq
        %v2161 = vshrl.u32 %v2160, 7
        %v2162 = vsub.s32 %v2159, %v2161
        %v2163 = vrot.slane %v2155, %v2162
        %v2165 = vunpack.c.l.s4 1966171168
        %v2166 = vunpack.c.0.s8 %v2165
        %v2167 = vlaneseq
        %v2168 = vshrl.u32 %v2167, 7
        %v2169 = vsub.s32 %v2166, %v2168
        %v2170 = vrot.slane %v2156, %v2169
        %v2171 = vcombine.low %v2163, %v2170
        %v2172 = vcombine.low %v648, %v655
        %v2173 = vcombine.low %v656, %v657
        %v2174 = vcombine.low %v671, %v686
        %v2175 = vcombine.low %v693, %v694
        %v2177 = vunpack.c.l.s4 1966171168
        %v2178 = vunpack.c.0.s8 %v2177
        %v2179 = vlaneseq
        %v2180 = vshrl.u32 %v2179, 7
        %v2181 = vsub.s32 %v2178, %v2180
        %v2182 = vrot.slane %v2172, %v2181
        %v2184 = vunpack.c.l.s4 1966171168
        %v2185 = vunpack.c.0.s8 %v2184
        %v2186 = vlaneseq
        %v2187 = vshrl.u32 %v2186, 7
        %v2188 = vsub.s32 %v2185, %v2187
        %v2189 = vrot.slane %v2173, %v2188
        %v2191 = vunpack.c.l.s4 1966171168
        %v2192 = vunpack.c.0.s8 %v2191
        %v2193 = vlaneseq
        %v2194 = vshrl.u32 %v2193, 7
        %v2195 = vsub.s32 %v2192, %v2194
        %v2196 = vrot.slane %v2174, %v2195
        %v2198 = vunpack.c.l.s4 1966171168
        %v2199 = vunpack.c.0.s8 %v2198
        %v2200 = vlaneseq
        %v2201 = vshrl.u32 %v2200, 7
        %v2202 = vsub.s32 %v2199, %v2201
        %v2203 = vrot.slane %v2175, %v2202
        %v2204 = vcombine.low %v2182, %v2189
        %v2205 = vcombine.low %v2196, %v2203
        %v2207 = vunpack.c.l.s4 1966171168
        %v2208 = vunpack.c.0.s8 %v2207
        %v2209 = vlaneseq
        %v2210 = vshrl.u32 %v2209, 7
        %v2211 = vsub.s32 %v2208, %v2210
        %v2212 = vrot.slane %v2204, %v2211
        %v2214 = vunpack.c.l.s4 1966171168
        %v2215 = vunpack.c.0.s8 %v2214
        %v2216 = vlaneseq
        %v2217 = vshrl.u32 %v2216, 7
        %v2218 = vsub.s32 %v2215, %v2217
        %v2219 = vrot.slane %v2205, %v2218
        %v2220 = vcombine.low %v2212, %v2219
        %v2221 = vcombine.low %v695, %v710
        %v2222 = vcombine.low %v717, %v718
        %v2223 = vcombine.low %v719, %v733
        %v2224 = vcombine.low %v748, %v755
        %v2226 = vunpack.c.l.s4 1966171168
        %v2227 = vunpack.c.0.s8 %v2226
        %v2228 = vlaneseq
        %v2229 = vshrl.u32 %v2228, 7
        %v2230 = vsub.s32 %v2227, %v2229
        %v2231 = vrot.slane %v2221, %v2230
        %v2233 = vunpack.c.l.s4 1966171168
        %v2234 = vunpack.c.0.s8 %v2233
        %v2235 = vlaneseq
        %v2236 = vshrl.u32 %v2235, 7
        %v2237 = vsub.s32 %v2234, %v2236
        %v2238 = vrot.slane %v2222, %v2237
        %v2240 = vunpack.c.l.s4 1966171168
        %v2241 = vunpack.c.0.s8 %v2240
        %v2242 = vlaneseq
        %v2243 = vshrl.u32 %v2242, 7
        %v2244 = vsub.s32 %v2241, %v2243
        %v2245 = vrot.slane %v2223, %v2244
        %v2247 = vunpack.c.l.s4 1966171168
        %v2248 = vunpack.c.0.s8 %v2247
        %v2249 = vlaneseq
        %v2250 = vshrl.u32 %v2249, 7
        %v2251 = vsub.s32 %v2248, %v2250
        %v2252 = vrot.slane %v2224, %v2251
        %v2253 = vcombine.low %v2231, %v2238
        %v2254 = vcombine.low %v2245, %v2252
        %v2256 = vunpack.c.l.s4 1966171168
        %v2257 = vunpack.c.0.s8 %v2256
        %v2258 = vlaneseq
        %v2259 = vshrl.u32 %v2258, 7
        %v2260 = vsub.s32 %v2257, %v2259
        %v2261 = vrot.slane %v2253, %v2260
        %v2263 = vunpack.c.l.s4 1966171168
        %v2264 = vunpack.c.0.s8 %v2263
        %v2265 = vlaneseq
        %v2266 = vshrl.u32 %v2265, 7
        %v2267 = vsub.s32 %v2264, %v2266
        %v2268 = vrot.slane %v2254, %v2267
        %v2269 = vcombine.low %v2261, %v2268
        %v2270 = vcombine.low %v756, %v757
        %v2271 = vcombine.low %v772, %v779
        %v2272 = vcombine.low %v780, %v781
        %v2273 = vcombine.low %v795, %v810
        %v2275 = vunpack.c.l.s4 1966171168
        %v2276 = vunpack.c.0.s8 %v2275
        %v2277 = vlaneseq
        %v2278 = vshrl.u32 %v2277, 7
        %v2279 = vsub.s32 %v2276, %v2278
        %v2280 = vrot.slane %v2270, %v2279
        %v2282 = vunpack.c.l.s4 1966171168
        %v2283 = vunpack.c.0.s8 %v2282
        %v2284 = vlaneseq
        %v2285 = vshrl.u32 %v2284, 7
        %v2286 = vsub.s32 %v2283, %v2285
        %v2287 = vrot.slane %v2271, %v2286
        %v2289 = vunpack.c.l.s4 1966171168
        %v2290 = vunpack.c.0.s8 %v2289
        %v2291 = vlaneseq
        %v2292 = vshrl.u32 %v2291, 7
        %v2293 = vsub.s32 %v2290, %v2292
        %v2294 = vrot.slane %v2272, %v2293
        %v2296 = vunpack.c.l.s4 1966171168
        %v2297 = vunpack.c.0.s8 %v2296
        %v2298 = vlaneseq
        %v2299 = vshrl.u32 %v2298, 7
        %v2300 = vsub.s32 %v2297, %v2299
        %v2301 = vrot.slane %v2273, %v2300
        %v2302 = vcombine.low %v2280, %v2287
        %v2303 = vcombine.low %v2294, %v2301
        %v2305 = vunpack.c.l.s4 1966171168
        %v2306 = vunpack.c.0.s8 %v2305
        %v2307 = vlaneseq
        %v2308 = vshrl.u32 %v2307, 7
        %v2309 = vsub.s32 %v2306, %v2308
        %v2310 = vrot.slane %v2302, %v2309
        %v2312 = vunpack.c.l.s4 1966171168
        %v2313 = vunpack.c.0.s8 %v2312
        %v2314 = vlaneseq
        %v2315 = vshrl.u32 %v2314, 7
        %v2316 = vsub.s32 %v2313, %v2315
        %v2317 = vrot.slane %v2303, %v2316
        %v2318 = vcombine.low %v2310, %v2317
        %v2320 = vsel %vm1412, %v1926, 0
        %v2323 = vsel %vm1412, %v1975, 0
        %v2326 = vsel %vm1412, %v2024, 0
        %v2329 = vsel %vm1412, %v2073, 0
        %v2332 = vsel %vm1412, %v2122, 0
        %v2335 = vsel %vm1412, %v2171, 0
        %v2338 = vsel %vm1412, %v2220, 0
        %v2341 = vsel %vm1412, %v2269, 0
        %v2344 = vsel %vm1412, %v2318, 0
        %v2347 = vsel %vm1440, %v1877, 0
        %2349 = vmatprep.subr.bf16.mxu0 0
        %2350 = vmatpush1.bf16.msra.mxu0 %v2347
        %2351 = vmatprep.subr.bf16.mxu0 0
        %2352 = vmatpush1.bf16.msra.mxu0 0
        %2353 = vmatprep.subr.bf16.mxu0 0
        %2354 = vmatpush1.bf16.msra.mxu0 0
        %2355 = vmatprep.subr.bf16.mxu0 0
        %2356 = vmatpush1.bf16.msra.mxu0 0
        %2357 = vmatprep.subr.bf16.mxu0 0
        %2358 = vmatpush1.bf16.msra.mxu0 0
        %2359 = vmatprep.subr.bf16.mxu0 0
        %2360 = vmatpush1.bf16.msra.mxu0 0
        %2361 = vmatprep.subr.bf16.mxu0 0
        %2362 = vmatpush1.bf16.msra.mxu0 0
        %2363 = vmatprep.subr.bf16.mxu0 0
        %2364 = vmatpush1.bf16.msra.mxu0 0
        %2365 = vmatprep.subr.bf16.mxu0 0
        %2366 = vmatpush1.bf16.msra.mxu0 0
        %2367 = vmatprep.subr.bf16.mxu0 0
        %2368 = vmatpush1.bf16.msra.mxu0 0
        %2369 = vmatprep.subr.bf16.mxu0 0
        %2370 = vmatpush1.bf16.msra.mxu0 0
        %2371 = vmatprep.subr.bf16.mxu0 0
        %2372 = vmatpush1.bf16.msra.mxu0 0
        %2373 = vmatprep.subr.bf16.mxu0 0
        %2374 = vmatpush1.bf16.msra.mxu0 0
        %2375 = vmatprep.subr.bf16.mxu0 0
        %2376 = vmatpush1.bf16.msra.mxu0 0
        %2377 = vmatprep.subr.bf16.mxu0 0
        %2378 = vmatpush1.bf16.msra.mxu0 0
        %2379 = vmatprep.subr.bf16.mxu0 0
        %2380 = vmatpush1.bf16.msra.mxu0 0
        %2381 = vmatprep.mubr.bf16.mxu0 0
        %2382 = vmatmul.mubr.bf16.gmra.mrb[0].mxu0 %v2320
        %v2383 = vpop.f32.mrb[0].mxu0
        %v2384 = vadd.f32 0.0, %v2383
        %v2385 = vpop.f32.mrb[0].mxu0
        %v2386 = vpop.f32.mrb[0].mxu0
        %v2387 = vadd.f32 0.0, %v2386
        %v2388 = vpop.f32.mrb[0].mxu0
        %2389 = vmatprep.mubr.bf16.mxu0 0
        %2390 = vmatmul.mubr.bf16.gmra.mrb[0].mxu0 %v2323
        %v2391 = vpop.f32.mrb[0].mxu0
        %v2392 = vadd.f32 0.0, %v2391
        %v2393 = vpop.f32.mrb[0].mxu0
        %v2394 = vpop.f32.mrb[0].mxu0
        %v2395 = vadd.f32 0.0, %v2394
        %v2396 = vpop.f32.mrb[0].mxu0
        %2397 = vmatprep.mubr.bf16.mxu0 0
        %2398 = vmatmul.mubr.bf16.gmra.mrb[0].mxu0 %v2326
        %v2399 = vpop.f32.mrb[0].mxu0
        %v2400 = vadd.f32 0.0, %v2399
        %v2401 = vpop.f32.mrb[0].mxu0
        %v2402 = vpop.f32.mrb[0].mxu0
        %v2403 = vadd.f32 0.0, %v2402
        %v2404 = vpop.f32.mrb[0].mxu0
        %2405 = vmatprep.mubr.bf16.mxu0 0
        %2406 = vmatmul.mubr.bf16.gmra.mrb[0].mxu0 %v2329
        %v2407 = vpop.f32.mrb[0].mxu0
        %v2408 = vadd.f32 0.0, %v2407
        %v2409 = vpop.f32.mrb[0].mxu0
        %v2410 = vpop.f32.mrb[0].mxu0
        %v2411 = vadd.f32 0.0, %v2410
        %v2412 = vpop.f32.mrb[0].mxu0
        %2413 = vmatprep.mubr.bf16.mxu0 0
        %2414 = vmatmul.mubr.bf16.gmra.mrb[0].mxu0 %v2332
        %v2415 = vpop.f32.mrb[0].mxu0
        %v2416 = vadd.f32 0.0, %v2415
        %v2417 = vpop.f32.mrb[0].mxu0
        %v2418 = vpop.f32.mrb[0].mxu0
        %v2419 = vadd.f32 0.0, %v2418
        %v2420 = vpop.f32.mrb[0].mxu0
        %2421 = vmatprep.mubr.bf16.mxu0 0
        %2422 = vmatmul.mubr.bf16.gmra.mrb[0].mxu0 %v2335
        %v2423 = vpop.f32.mrb[0].mxu0
        %v2424 = vadd.f32 0.0, %v2423
        %v2425 = vpop.f32.mrb[0].mxu0
        %v2426 = vpop.f32.mrb[0].mxu0
        %v2427 = vadd.f32 0.0, %v2426
        %v2428 = vpop.f32.mrb[0].mxu0
        %2429 = vmatprep.mubr.bf16.mxu0 0
        %2430 = vmatmul.mubr.bf16.gmra.mrb[0].mxu0 %v2338
        %v2431 = vpop.f32.mrb[0].mxu0
        %v2432 = vadd.f32 0.0, %v2431
        %v2433 = vpop.f32.mrb[0].mxu0
        %v2434 = vpop.f32.mrb[0].mxu0
        %v2435 = vadd.f32 0.0, %v2434
        %v2436 = vpop.f32.mrb[0].mxu0
        %2437 = vmatprep.mubr.bf16.mxu0 0
        %2438 = vmatmul.mubr.bf16.gmra.mrb[0].mxu0 %v2341
        %v2439 = vpop.f32.mrb[0].mxu0
        %v2440 = vadd.f32 0.0, %v2439
        %v2441 = vpop.f32.mrb[0].mxu0
        %v2442 = vpop.f32.mrb[0].mxu0
        %v2443 = vadd.f32 0.0, %v2442
        %v2444 = vpop.f32.mrb[0].mxu0
        %2445 = vmatprep.mubr.bf16.mxu0 0
        %2446 = vmatmul.mubr.bf16.gmra.mrb[0].mxu0 %v2344
        %v2447 = vpop.f32.mrb[0].mxu0
        %v2448 = vadd.f32 0.0, %v2447
        %v2449 = vpop.f32.mrb[0].mxu0
        %v2450 = vpop.f32.mrb[0].mxu0
        %v2451 = vadd.f32 0.0, %v2450
        %v2452 = vpop.f32.mrb[0].mxu0
        %2453 = vdwg.mxu0
        %v2454 = vadd.f32 %v1858, %v2384
        %v2455 = vadd.f32 %v1859, %v2387
        %v2456 = vadd.f32 %v1860, %v2392
        %v2457 = vadd.f32 %v1861, %v2395
        %v2458 = vadd.f32 %v1862, %v2400
        %v2459 = vadd.f32 %v1863, %v2403
        %v2460 = vadd.f32 %v1864, %v2408
        %v2461 = vadd.f32 %v1865, %v2411
        %v2462 = vadd.f32 %v1866, %v2416
        %v2463 = vadd.f32 %v1867, %v2419
        %v2464 = vadd.f32 %v1868, %v2424
        %v2465 = vadd.f32 %v1869, %v2427
        %v2466 = vadd.f32 %v1870, %v2432
        %v2467 = vadd.f32 %v1871, %v2435
        %v2468 = vadd.f32 %v1872, %v2440
        %v2469 = vadd.f32 %v1873, %v2443
        %v2470 = vadd.f32 %v1874, %v2448
        %v2471 = vadd.f32 %v1875, %v2451
        %2472 = vst [vmem:[#allocation2] sm:$0xff] %v2454
        %2473 = vst [vmem:[#allocation2 + $0x8] sm:$0xff] %v2455
        %2474 = vst [vmem:[#allocation2 + $0x10] sm:$0xff] %v2456
        %2475 = vst [vmem:[#allocation2 + $0x18] sm:$0xff] %v2457
        %2476 = vst [vmem:[#allocation2 + $0x20] sm:$0xff] %v2458
        %2477 = vst [vmem:[#allocation2 + $0x28] sm:$0xff] %v2459
        %2478 = vst [vmem:[#allocation2 + $0x30] sm:$0xff] %v2460
        %2479 = vst [vmem:[#allocation2 + $0x38] sm:$0xff] %v2461
        %2480 = vst [vmem:[#allocation2 + $0x40] sm:$0xff] %v2462
        %2481 = vst [vmem:[#allocation2 + $0x48] sm:$0xff] %v2463
        %2482 = vst [vmem:[#allocation2 + $0x50] sm:$0xff] %v2464
        %2483 = vst [vmem:[#allocation2 + $0x58] sm:$0xff] %v2465
        %2484 = vst [vmem:[#allocation2 + $0x60] sm:$0xff] %v2466
        %2485 = vst [vmem:[#allocation2 + $0x68] sm:$0xff] %v2467
        %2486 = vst [vmem:[#allocation2 + $0x70] sm:$0xff] %v2468
        %2487 = vst [vmem:[#allocation2 + $0x78] sm:$0xff] %v2469
        %2488 = vst [vmem:[#allocation2 + $0x80] sm:$0xff] %v2470
        %2489 = vst [vmem:[#allocation2 + $0x88] sm:$0xff] %v2471
        %v2490 = vld [vmem:[#allocation2] sm:$0xff]
        %v2491 = vld [vmem:[#allocation2 + $0x8] sm:$0xff]
        %v2492 = vld [vmem:[#allocation2 + $0x10] sm:$0xff]
        %v2493 = vld [vmem:[#allocation2 + $0x18] sm:$0xff]
        %v2494 = vld [vmem:[#allocation2 + $0x20] sm:$0xff]
        %v2495 = vld [vmem:[#allocation2 + $0x28] sm:$0xff]
        %v2496 = vld [vmem:[#allocation2 + $0x30] sm:$0xff]
        %v2497 = vld [vmem:[#allocation2 + $0x38] sm:$0xff]
        %v2498 = vld [vmem:[#allocation2 + $0x40] sm:$0xff]
        %v2499 = vld [vmem:[#allocation2 + $0x48] sm:$0xff]
        %v2500 = vld [vmem:[#allocation2 + $0x50] sm:$0xff]
        %v2501 = vld [vmem:[#allocation2 + $0x58] sm:$0xff]
        %v2502 = vld [vmem:[#allocation2 + $0x60] sm:$0xff]
        %v2503 = vld [vmem:[#allocation2 + $0x68] sm:$0xff]
        %v2504 = vld [vmem:[#allocation2 + $0x70] sm:$0xff]
        %v2505 = vld [vmem:[#allocation2 + $0x78] sm:$0xff]
        %v2506 = vld [vmem:[#allocation2 + $0x80] sm:$0xff]
        %v2507 = vld [vmem:[#allocation2 + $0x88] sm:$0xff]
        %s2508 = scalar_lea.vmem %s233, 6
        %v2509 = vld [vmem:[%s2508] sm:$0x3]
        %v2510 = vcombine.low %v817, %v818
        %v2511 = vcombine.low %v819, %v834
        %v2512 = vcombine.low %v841, %v842
        %v2513 = vcombine.low %v843, %v857
        %v2515 = vunpack.c.l.s4 1966171168
        %v2516 = vunpack.c.0.s8 %v2515
        %v2517 = vlaneseq
        %v2518 = vshrl.u32 %v2517, 7
        %v2519 = vsub.s32 %v2516, %v2518
        %v2520 = vrot.slane %v2510, %v2519
        %v2522 = vunpack.c.l.s4 1966171168
        %v2523 = vunpack.c.0.s8 %v2522
        %v2524 = vlaneseq
        %v2525 = vshrl.u32 %v2524, 7
        %v2526 = vsub.s32 %v2523, %v2525
        %v2527 = vrot.slane %v2511, %v2526
        %v2529 = vunpack.c.l.s4 1966171168
        %v2530 = vunpack.c.0.s8 %v2529
        %v2531 = vlaneseq
        %v2532 = vshrl.u32 %v2531, 7
        %v2533 = vsub.s32 %v2530, %v2532
        %v2534 = vrot.slane %v2512, %v2533
        %v2536 = vunpack.c.l.s4 1966171168
        %v2537 = vunpack.c.0.s8 %v2536
        %v2538 = vlaneseq
        %v2539 = vshrl.u32 %v2538, 7
        %v2540 = vsub.s32 %v2537, %v2539
        %v2541 = vrot.slane %v2513, %v2540
        %v2542 = vcombine.low %v2520, %v2527
        %v2543 = vcombine.low %v2534, %v2541
        %v2545 = vunpack.c.l.s4 1966171168
        %v2546 = vunpack.c.0.s8 %v2545
        %v2547 = vlaneseq
        %v2548 = vshrl.u32 %v2547, 7
        %v2549 = vsub.s32 %v2546, %v2548
        %v2550 = vrot.slane %v2542, %v2549
        %v2552 = vunpack.c.l.s4 1966171168
        %v2553 = vunpack.c.0.s8 %v2552
        %v2554 = vlaneseq
        %v2555 = vshrl.u32 %v2554, 7
        %v2556 = vsub.s32 %v2553, %v2555
        %v2557 = vrot.slane %v2543, %v2556
        %v2558 = vcombine.low %v2550, %v2557
        %v2560 = vsel %vm1412, %v2558, 0
        %v2563 = vsel %vm1440, %v2509, 0
        %2565 = vmatprep.subr.bf16.mxu0 0
        %2566 = vmatpush1.bf16.msra.mxu0 %v2563
        %2567 = vmatprep.subr.bf16.mxu0 0
        %2568 = vmatpush1.bf16.msra.mxu0 0
        %2569 = vmatprep.subr.bf16.mxu0 0
        %2570 = vmatpush1.bf16.msra.mxu0 0
        %2571 = vmatprep.subr.bf16.mxu0 0
        %2572 = vmatpush1.bf16.msra.mxu0 0
        %2573 = vmatprep.subr.bf16.mxu0 0
        %2574 = vmatpush1.bf16.msra.mxu0 0
        %2575 = vmatprep.subr.bf16.mxu0 0
        %2576 = vmatpush1.bf16.msra.mxu0 0
        %2577 = vmatprep.subr.bf16.mxu0 0
        %2578 = vmatpush1.bf16.msra.mxu0 0
        %2579 = vmatprep.subr.bf16.mxu0 0
        %2580 = vmatpush1.bf16.msra.mxu0 0
        %2581 = vmatprep.subr.bf16.mxu0 0
        %2582 = vmatpush1.bf16.msra.mxu0 0
        %2583 = vmatprep.subr.bf16.mxu0 0
        %2584 = vmatpush1.bf16.msra.mxu0 0
        %2585 = vmatprep.subr.bf16.mxu0 0
        %2586 = vmatpush1.bf16.msra.mxu0 0
        %2587 = vmatprep.subr.bf16.mxu0 0
        %2588 = vmatpush1.bf16.msra.mxu0 0
        %2589 = vmatprep.subr.bf16.mxu0 0
        %2590 = vmatpush1.bf16.msra.mxu0 0
        %2591 = vmatprep.subr.bf16.mxu0 0
        %2592 = vmatpush1.bf16.msra.mxu0 0
        %2593 = vmatprep.subr.bf16.mxu0 0
        %2594 = vmatpush1.bf16.msra.mxu0 0
        %2595 = vmatprep.subr.bf16.mxu0 0
        %2596 = vmatpush1.bf16.msra.mxu0 0
        %2597 = vmatprep.mubr.bf16.mxu0 0
        %2598 = vmatmul.mubr.bf16.gmra.mrb[0].mxu0 %v2323
        %v2599 = vpop.f32.mrb[0].mxu0
        %v2600 = vadd.f32 0.0, %v2599
        %v2601 = vpop.f32.mrb[0].mxu0
        %v2602 = vpop.f32.mrb[0].mxu0
        %v2603 = vadd.f32 0.0, %v2602
        %v2604 = vpop.f32.mrb[0].mxu0
        %2605 = vmatprep.mubr.bf16.mxu0 0
        %2606 = vmatmul.mubr.bf16.gmra.mrb[0].mxu0 %v2326
        %v2607 = vpop.f32.mrb[0].mxu0
        %v2608 = vadd.f32 0.0, %v2607
        %v2609 = vpop.f32.mrb[0].mxu0
        %v2610 = vpop.f32.mrb[0].mxu0
        %v2611 = vadd.f32 0.0, %v2610
        %v2612 = vpop.f32.mrb[0].mxu0
        %2613 = vmatprep.mubr.bf16.mxu0 0
        %2614 = vmatmul.mubr.bf16.gmra.mrb[0].mxu0 %v2329
        %v2615 = vpop.f32.mrb[0].mxu0
        %v2616 = vadd.f32 0.0, %v2615
        %v2617 = vpop.f32.mrb[0].mxu0
        %v2618 = vpop.f32.mrb[0].mxu0
        %v2619 = vadd.f32 0.0, %v2618
        %v2620 = vpop.f32.mrb[0].mxu0
        %2621 = vmatprep.mubr.bf16.mxu0 0
        %2622 = vmatmul.mubr.bf16.gmra.mrb[0].mxu0 %v2332
        %v2623 = vpop.f32.mrb[0].mxu0
        %v2624 = vadd.f32 0.0, %v2623
        %v2625 = vpop.f32.mrb[0].mxu0
        %v2626 = vpop.f32.mrb[0].mxu0
        %v2627 = vadd.f32 0.0, %v2626
        %v2628 = vpop.f32.mrb[0].mxu0
        %2629 = vmatprep.mubr.bf16.mxu0 0
        %2630 = vmatmul.mubr.bf16.gmra.mrb[0].mxu0 %v2335
        %v2631 = vpop.f32.mrb[0].mxu0
        %v2632 = vadd.f32 0.0, %v2631
        %v2633 = vpop.f32.mrb[0].mxu0
        %v2634 = vpop.f32.mrb[0].mxu0
        %v2635 = vadd.f32 0.0, %v2634
        %v2636 = vpop.f32.mrb[0].mxu0
        %2637 = vmatprep.mubr.bf16.mxu0 0
        %2638 = vmatmul.mubr.bf16.gmra.mrb[0].mxu0 %v2338
        %v2639 = vpop.f32.mrb[0].mxu0
        %v2640 = vadd.f32 0.0, %v2639
        %v2641 = vpop.f32.mrb[0].mxu0
        %v2642 = vpop.f32.mrb[0].mxu0
        %v2643 = vadd.f32 0.0, %v2642
        %v2644 = vpop.f32.mrb[0].mxu0
        %2645 = vmatprep.mubr.bf16.mxu0 0
        %2646 = vmatmul.mubr.bf16.gmra.mrb[0].mxu0 %v2341
        %v2647 = vpop.f32.mrb[0].mxu0
        %v2648 = vadd.f32 0.0, %v2647
        %v2649 = vpop.f32.mrb[0].mxu0
        %v2650 = vpop.f32.mrb[0].mxu0
        %v2651 = vadd.f32 0.0, %v2650
        %v2652 = vpop.f32.mrb[0].mxu0
        %2653 = vmatprep.mubr.bf16.mxu0 0
        %2654 = vmatmul.mubr.bf16.gmra.mrb[0].mxu0 %v2344
        %v2655 = vpop.f32.mrb[0].mxu0
        %v2656 = vadd.f32 0.0, %v2655
        %v2657 = vpop.f32.mrb[0].mxu0
        %v2658 = vpop.f32.mrb[0].mxu0
        %v2659 = vadd.f32 0.0, %v2658
        %v2660 = vpop.f32.mrb[0].mxu0
        %2661 = vmatprep.mubr.bf16.mxu0 0
        %2662 = vmatmul.mubr.bf16.gmra.mrb[0].mxu0 %v2560
        %v2663 = vpop.f32.mrb[0].mxu0
        %v2664 = vadd.f32 0.0, %v2663
        %v2665 = vpop.f32.mrb[0].mxu0
        %v2666 = vpop.f32.mrb[0].mxu0
        %v2667 = vadd.f32 0.0, %v2666
        %v2668 = vpop.f32.mrb[0].mxu0
        %2669 = vdwg.mxu0
        %v2670 = vadd.f32 %v2490, %v2600
        %v2671 = vadd.f32 %v2491, %v2603
        %v2672 = vadd.f32 %v2492, %v2608
        %v2673 = vadd.f32 %v2493, %v2611
        %v2674 = vadd.f32 %v2494, %v2616
        %v2675 = vadd.f32 %v2495, %v2619
        %v2676 = vadd.f32 %v2496, %v2624
        %v2677 = vadd.f32 %v2497, %v2627
        %v2678 = vadd.f32 %v2498, %v2632
        %v2679 = vadd.f32 %v2499, %v2635
        %v2680 = vadd.f32 %v2500, %v2640
        %v2681 = vadd.f32 %v2501, %v2643
        %v2682 = vadd.f32 %v2502, %v2648
        %v2683 = vadd.f32 %v2503, %v2651
        %v2684 = vadd.f32 %v2504, %v2656
        %v2685 = vadd.f32 %v2505, %v2659
        %v2686 = vadd.f32 %v2506, %v2664
        %v2687 = vadd.f32 %v2507, %v2667
        %2688 = vst [vmem:[#allocation2] sm:$0xff] %v2670
        %2689 = vst [vmem:[#allocation2 + $0x8] sm:$0xff] %v2671
        %2690 = vst [vmem:[#allocation2 + $0x10] sm:$0xff] %v2672
        %2691 = vst [vmem:[#allocation2 + $0x18] sm:$0xff] %v2673
        %2692 = vst [vmem:[#allocation2 + $0x20] sm:$0xff] %v2674
        %2693 = vst [vmem:[#allocation2 + $0x28] sm:$0xff] %v2675
        %2694 = vst [vmem:[#allocation2 + $0x30] sm:$0xff] %v2676
        %2695 = vst [vmem:[#allocation2 + $0x38] sm:$0xff] %v2677
        %2696 = vst [vmem:[#allocation2 + $0x40] sm:$0xff] %v2678
        %2697 = vst [vmem:[#allocation2 + $0x48] sm:$0xff] %v2679
        %2698 = vst [vmem:[#allocation2 + $0x50] sm:$0xff] %v2680
        %2699 = vst [vmem:[#allocation2 + $0x58] sm:$0xff] %v2681
        %2700 = vst [vmem:[#allocation2 + $0x60] sm:$0xff] %v2682
        %2701 = vst [vmem:[#allocation2 + $0x68] sm:$0xff] %v2683
        %2702 = vst [vmem:[#allocation2 + $0x70] sm:$0xff] %v2684
        %2703 = vst [vmem:[#allocation2 + $0x78] sm:$0xff] %v2685
        %2704 = vst [vmem:[#allocation2 + $0x80] sm:$0xff] %v2686
        %2705 = vst [vmem:[#allocation2 + $0x88] sm:$0xff] %v2687
        %v2706 = vld [vmem:[#allocation2] sm:$0xff]
        %v2707 = vld [vmem:[#allocation2 + $0x8] sm:$0xff]
        %v2708 = vld [vmem:[#allocation2 + $0x10] sm:$0xff]
        %v2709 = vld [vmem:[#allocation2 + $0x18] sm:$0xff]
        %v2710 = vld [vmem:[#allocation2 + $0x20] sm:$0xff]
        %v2711 = vld [vmem:[#allocation2 + $0x28] sm:$0xff]
        %v2712 = vld [vmem:[#allocation2 + $0x30] sm:$0xff]
        %v2713 = vld [vmem:[#allocation2 + $0x38] sm:$0xff]
        %v2714 = vld [vmem:[#allocation2 + $0x40] sm:$0xff]
        %v2715 = vld [vmem:[#allocation2 + $0x48] sm:$0xff]
        %v2716 = vld [vmem:[#allocation2 + $0x50] sm:$0xff]
        %v2717 = vld [vmem:[#allocation2 + $0x58] sm:$0xff]
        %v2718 = vld [vmem:[#allocation2 + $0x60] sm:$0xff]
        %v2719 = vld [vmem:[#allocation2 + $0x68] sm:$0xff]
        %v2720 = vld [vmem:[#allocation2 + $0x70] sm:$0xff]
        %v2721 = vld [vmem:[#allocation2 + $0x78] sm:$0xff]
        %v2722 = vld [vmem:[#allocation2 + $0x80] sm:$0xff]
        %v2723 = vld [vmem:[#allocation2 + $0x88] sm:$0xff]
        %s2724 = scalar_lea.vmem %s233, 8
        %v2725 = vld [vmem:[%s2724] sm:$0x3]
        %v2727 = vunpack.c.l.s4 1966171168
        %v2728 = vunpack.c.0.s8 %v2727
        %v2729 = vlaneseq
        %v2730 = vshrl.u32 %v2729, 7
        %v2731 = vsub.s32 %v2728, %v2730
        %v2732 = vrot.slane %v872, %v2731
        %v2734 = vunpack.c.l.s4 1966171168
        %v2735 = vunpack.c.0.s8 %v2734
        %v2736 = vlaneseq
        %v2737 = vshrl.u32 %v2736, 7
        %v2738 = vsub.s32 %v2735, %v2737
        %v2739 = vrot.slane %v2732, %v2738
        %v2740 = vshrl.u32 %v1975, 16
        %v2742 = vshll.u32 %v1975, 16
        %v2744 = vrot.slane %v2742, 1
        %v2745 = vor.u32 %v2740, %v2744
        %v2746 = vshll.u32 %v2024, 16
        %v2748 = vrot.slane %v2746, 1
        %v2749 = vsel %vm1619, %v2745, %v2748
        %v2750 = vshrl.u32 %v2024, 16
        %v2752 = vor.u32 %v2750, %v2748
        %v2753 = vshll.u32 %v2073, 16
        %v2755 = vrot.slane %v2753, 1
        %v2756 = vsel %vm1619, %v2752, %v2755
        %v2757 = vshrl.u32 %v2073, 16
        %v2759 = vor.u32 %v2757, %v2755
        %v2760 = vshll.u32 %v2122, 16
        %v2762 = vrot.slane %v2760, 1
        %v2763 = vsel %vm1619, %v2759, %v2762
        %v2764 = vshrl.u32 %v2122, 16
        %v2766 = vor.u32 %v2764, %v2762
        %v2767 = vshll.u32 %v2171, 16
        %v2769 = vrot.slane %v2767, 1
        %v2770 = vsel %vm1619, %v2766, %v2769
        %v2771 = vshrl.u32 %v2171, 16
        %v2773 = vor.u32 %v2771, %v2769
        %v2774 = vshll.u32 %v2220, 16
        %v2776 = vrot.slane %v2774, 1
        %v2777 = vsel %vm1619, %v2773, %v2776
        %v2778 = vshrl.u32 %v2220, 16
        %v2780 = vor.u32 %v2778, %v2776
        %v2781 = vshll.u32 %v2269, 16
        %v2783 = vrot.slane %v2781, 1
        %v2784 = vsel %vm1619, %v2780, %v2783
        %v2785 = vshrl.u32 %v2269, 16
        %v2787 = vor.u32 %v2785, %v2783
        %v2788 = vshll.u32 %v2318, 16
        %v2790 = vrot.slane %v2788, 1
        %v2791 = vsel %vm1619, %v2787, %v2790
        %v2792 = vshrl.u32 %v2318, 16
        %v2794 = vor.u32 %v2792, %v2790
        %v2795 = vshll.u32 %v2558, 16
        %v2797 = vrot.slane %v2795, 1
        %v2798 = vsel %vm1619, %v2794, %v2797
        %v2799 = vshrl.u32 %v2558, 16
        %v2801 = vor.u32 %v2799, %v2797
        %v2803 = vshll.u32 %v2739, 16
        %v2805 = vrot.slane %v2803, 1
        %v2806 = vsel %vm1619, %v2801, %v2805
        %v2808 = vsel %vm1412, %v2749, 0
        %v2811 = vsel %vm1412, %v2756, 0
        %v2814 = vsel %vm1412, %v2763, 0
        %v2817 = vsel %vm1412, %v2770, 0
        %v2820 = vsel %vm1412, %v2777, 0
        %v2823 = vsel %vm1412, %v2784, 0
        %v2826 = vsel %vm1412, %v2791, 0
        %v2829 = vsel %vm1412, %v2798, 0
        %v2832 = vsel %vm1412, %v2806, 0
        %v2835 = vsel %vm1440, %v2725, 0
        %2837 = vmatprep.subr.bf16.mxu0 0
        %2838 = vmatpush1.bf16.msra.mxu0 %v2835
        %2839 = vmatprep.subr.bf16.mxu0 0
        %2840 = vmatpush1.bf16.msra.mxu0 0
        %2841 = vmatprep.subr.bf16.mxu0 0
        %2842 = vmatpush1.bf16.msra.mxu0 0
        %2843 = vmatprep.subr.bf16.mxu0 0
        %2844 = vmatpush1.bf16.msra.mxu0 0
        %2845 = vmatprep.subr.bf16.mxu0 0
        %2846 = vmatpush1.bf16.msra.mxu0 0
        %2847 = vmatprep.subr.bf16.mxu0 0
        %2848 = vmatpush1.bf16.msra.mxu0 0
        %2849 = vmatprep.subr.bf16.mxu0 0
        %2850 = vmatpush1.bf16.msra.mxu0 0
        %2851 = vmatprep.subr.bf16.mxu0 0
        %2852 = vmatpush1.bf16.msra.mxu0 0
        %2853 = vmatprep.subr.bf16.mxu0 0
        %2854 = vmatpush1.bf16.msra.mxu0 0
        %2855 = vmatprep.subr.bf16.mxu0 0
        %2856 = vmatpush1.bf16.msra.mxu0 0
        %2857 = vmatprep.subr.bf16.mxu0 0
        %2858 = vmatpush1.bf16.msra.mxu0 0
        %2859 = vmatprep.subr.bf16.mxu0 0
        %2860 = vmatpush1.bf16.msra.mxu0 0
        %2861 = vmatprep.subr.bf16.mxu0 0
        %2862 = vmatpush1.bf16.msra.mxu0 0
        %2863 = vmatprep.subr.bf16.mxu0 0
        %2864 = vmatpush1.bf16.msra.mxu0 0
        %2865 = vmatprep.subr.bf16.mxu0 0
        %2866 = vmatpush1.bf16.msra.mxu0 0
        %2867 = vmatprep.subr.bf16.mxu0 0
        %2868 = vmatpush1.bf16.msra.mxu0 0
        %2869 = vmatprep.mubr.bf16.mxu0 0
        %2870 = vmatmul.mubr.bf16.gmra.mrb[0].mxu0 %v2808
        %v2871 = vpop.f32.mrb[0].mxu0
        %v2872 = vadd.f32 0.0, %v2871
        %v2873 = vpop.f32.mrb[0].mxu0
        %v2874 = vpop.f32.mrb[0].mxu0
        %v2875 = vadd.f32 0.0, %v2874
        %v2876 = vpop.f32.mrb[0].mxu0
        %2877 = vmatprep.mubr.bf16.mxu0 0
        %2878 = vmatmul.mubr.bf16.gmra.mrb[0].mxu0 %v2811
        %v2879 = vpop.f32.mrb[0].mxu0
        %v2880 = vadd.f32 0.0, %v2879
        %v2881 = vpop.f32.mrb[0].mxu0
        %v2882 = vpop.f32.mrb[0].mxu0
        %v2883 = vadd.f32 0.0, %v2882
        %v2884 = vpop.f32.mrb[0].mxu0
        %2885 = vmatprep.mubr.bf16.mxu0 0
        %2886 = vmatmul.mubr.bf16.gmra.mrb[0].mxu0 %v2814
        %v2887 = vpop.f32.mrb[0].mxu0
        %v2888 = vadd.f32 0.0, %v2887
        %v2889 = vpop.f32.mrb[0].mxu0
        %v2890 = vpop.f32.mrb[0].mxu0
        %v2891 = vadd.f32 0.0, %v2890
        %v2892 = vpop.f32.mrb[0].mxu0
        %2893 = vmatprep.mubr.bf16.mxu0 0
        %2894 = vmatmul.mubr.bf16.gmra.mrb[0].mxu0 %v2817
        %v2895 = vpop.f32.mrb[0].mxu0
        %v2896 = vadd.f32 0.0, %v2895
        %v2897 = vpop.f32.mrb[0].mxu0
        %v2898 = vpop.f32.mrb[0].mxu0
        %v2899 = vadd.f32 0.0, %v2898
        %v2900 = vpop.f32.mrb[0].mxu0
        %2901 = vmatprep.mubr.bf16.mxu0 0
        %2902 = vmatmul.mubr.bf16.gmra.mrb[0].mxu0 %v2820
        %v2903 = vpop.f32.mrb[0].mxu0
        %v2904 = vadd.f32 0.0, %v2903
        %v2905 = vpop.f32.mrb[0].mxu0
        %v2906 = vpop.f32.mrb[0].mxu0
        %v2907 = vadd.f32 0.0, %v2906
        %v2908 = vpop.f32.mrb[0].mxu0
        %2909 = vmatprep.mubr.bf16.mxu0 0
        %2910 = vmatmul.mubr.bf16.gmra.mrb[0].mxu0 %v2823
        %v2911 = vpop.f32.mrb[0].mxu0
        %v2912 = vadd.f32 0.0, %v2911
        %v2913 = vpop.f32.mrb[0].mxu0
        %v2914 = vpop.f32.mrb[0].mxu0
        %v2915 = vadd.f32 0.0, %v2914
        %v2916 = vpop.f32.mrb[0].mxu0
        %2917 = vmatprep.mubr.bf16.mxu0 0
        %2918 = vmatmul.mubr.bf16.gmra.mrb[0].mxu0 %v2826
        %v2919 = vpop.f32.mrb[0].mxu0
        %v2920 = vadd.f32 0.0, %v2919
        %v2921 = vpop.f32.mrb[0].mxu0
        %v2922 = vpop.f32.mrb[0].mxu0
        %v2923 = vadd.f32 0.0, %v2922
        %v2924 = vpop.f32.mrb[0].mxu0
        %2925 = vmatprep.mubr.bf16.mxu0 0
        %2926 = vmatmul.mubr.bf16.gmra.mrb[0].mxu0 %v2829
        %v2927 = vpop.f32.mrb[0].mxu0
        %v2928 = vadd.f32 0.0, %v2927
        %v2929 = vpop.f32.mrb[0].mxu0
        %v2930 = vpop.f32.mrb[0].mxu0
        %v2931 = vadd.f32 0.0, %v2930
        %v2932 = vpop.f32.mrb[0].mxu0
        %2933 = vmatprep.mubr.bf16.mxu0 0
        %2934 = vmatmul.mubr.bf16.gmra.mrb[0].mxu0 %v2832
        %v2935 = vpop.f32.mrb[0].mxu0
        %v2936 = vadd.f32 0.0, %v2935
        %v2937 = vpop.f32.mrb[0].mxu0
        %v2938 = vpop.f32.mrb[0].mxu0
        %v2939 = vadd.f32 0.0, %v2938
        %v2940 = vpop.f32.mrb[0].mxu0
        %2941 = vdwg.mxu0
        %v2942 = vadd.f32 %v2706, %v2872
        %v2943 = vadd.f32 %v2707, %v2875
        %v2944 = vadd.f32 %v2708, %v2880
        %v2945 = vadd.f32 %v2709, %v2883
        %v2946 = vadd.f32 %v2710, %v2888
        %v2947 = vadd.f32 %v2711, %v2891
        %v2948 = vadd.f32 %v2712, %v2896
        %v2949 = vadd.f32 %v2713, %v2899
        %v2950 = vadd.f32 %v2714, %v2904
        %v2951 = vadd.f32 %v2715, %v2907
        %v2952 = vadd.f32 %v2716, %v2912
        %v2953 = vadd.f32 %v2717, %v2915
        %v2954 = vadd.f32 %v2718, %v2920
        %v2955 = vadd.f32 %v2719, %v2923
        %v2956 = vadd.f32 %v2720, %v2928
        %v2957 = vadd.f32 %v2721, %v2931
        %v2958 = vadd.f32 %v2722, %v2936
        %v2959 = vadd.f32 %v2723, %v2939
        %2960 = vst [vmem:[#allocation2] sm:$0xff] %v2942
        %2961 = vst [vmem:[#allocation2 + $0x8] sm:$0xff] %v2943
        %2962 = vst [vmem:[#allocation2 + $0x10] sm:$0xff] %v2944
        %2963 = vst [vmem:[#allocation2 + $0x18] sm:$0xff] %v2945
        %2964 = vst [vmem:[#allocation2 + $0x20] sm:$0xff] %v2946
        %2965 = vst [vmem:[#allocation2 + $0x28] sm:$0xff] %v2947
        %2966 = vst [vmem:[#allocation2 + $0x30] sm:$0xff] %v2948
        %2967 = vst [vmem:[#allocation2 + $0x38] sm:$0xff] %v2949
        %2968 = vst [vmem:[#allocation2 + $0x40] sm:$0xff] %v2950
        %2969 = vst [vmem:[#allocation2 + $0x48] sm:$0xff] %v2951
        %2970 = vst [vmem:[#allocation2 + $0x50] sm:$0xff] %v2952
        %2971 = vst [vmem:[#allocation2 + $0x58] sm:$0xff] %v2953
        %2972 = vst [vmem:[#allocation2 + $0x60] sm:$0xff] %v2954
        %2973 = vst [vmem:[#allocation2 + $0x68] sm:$0xff] %v2955
        %2974 = vst [vmem:[#allocation2 + $0x70] sm:$0xff] %v2956
        %2975 = vst [vmem:[#allocation2 + $0x78] sm:$0xff] %v2957
        %2976 = vst [vmem:[#allocation2 + $0x80] sm:$0xff] %v2958
        %2977 = vst [vmem:[#allocation2 + $0x88] sm:$0xff] %v2959
        %v2978 = vld [vmem:[#allocation2] sm:$0xff]
        %v2979 = vld [vmem:[#allocation2 + $0x8] sm:$0xff]
        %v2980 = vld [vmem:[#allocation2 + $0x10] sm:$0xff]
        %v2981 = vld [vmem:[#allocation2 + $0x18] sm:$0xff]
        %v2982 = vld [vmem:[#allocation2 + $0x20] sm:$0xff]
        %v2983 = vld [vmem:[#allocation2 + $0x28] sm:$0xff]
        %v2984 = vld [vmem:[#allocation2 + $0x30] sm:$0xff]
        %v2985 = vld [vmem:[#allocation2 + $0x38] sm:$0xff]
        %v2986 = vld [vmem:[#allocation2 + $0x40] sm:$0xff]
        %v2987 = vld [vmem:[#allocation2 + $0x48] sm:$0xff]
        %v2988 = vld [vmem:[#allocation2 + $0x50] sm:$0xff]
        %v2989 = vld [vmem:[#allocation2 + $0x58] sm:$0xff]
        %v2990 = vld [vmem:[#allocation2 + $0x60] sm:$0xff]
        %v2991 = vld [vmem:[#allocation2 + $0x68] sm:$0xff]
        %v2992 = vld [vmem:[#allocation2 + $0x70] sm:$0xff]
        %v2993 = vld [vmem:[#allocation2 + $0x78] sm:$0xff]
        %v2994 = vld [vmem:[#allocation2 + $0x80] sm:$0xff]
        %v2995 = vld [vmem:[#allocation2 + $0x88] sm:$0xff]
        %s2996 = scalar_lea.vmem %s233, 10
        %v2997 = vld [vmem:[%s2996] sm:$0x3]
        %v2998 = vcombine.low %v1037, %v1044
        %v2999 = vcombine.low %v1051, %v1079
        %v3001 = vunpack.c.l.s4 1966171168
        %v3002 = vunpack.c.0.s8 %v3001
        %v3003 = vlaneseq
        %v3004 = vshrl.u32 %v3003, 7
        %v3005 = vsub.s32 %v3002, %v3004
        %v3006 = vrot.slane %v2998, %v3005
        %v3008 = vunpack.c.l.s4 1966171168
        %v3009 = vunpack.c.0.s8 %v3008
        %v3010 = vlaneseq
        %v3011 = vshrl.u32 %v3010, 7
        %v3012 = vsub.s32 %v3009, %v3011
        %v3013 = vrot.slane %v2999, %v3012
        %v3014 = vcombine.low %v3006, %v3013
        %v3015 = vcombine.low %v1086, %v1093
        %v3016 = vcombine.low %v1100, %v1128
        %v3018 = vunpack.c.l.s4 1966171168
        %v3019 = vunpack.c.0.s8 %v3018
        %v3020 = vlaneseq
        %v3021 = vshrl.u32 %v3020, 7
        %v3022 = vsub.s32 %v3019, %v3021
        %v3023 = vrot.slane %v3015, %v3022
        %v3025 = vunpack.c.l.s4 1966171168
        %v3026 = vunpack.c.0.s8 %v3025
        %v3027 = vlaneseq
        %v3028 = vshrl.u32 %v3027, 7
        %v3029 = vsub.s32 %v3026, %v3028
        %v3030 = vrot.slane %v3016, %v3029
        %v3031 = vcombine.low %v3023, %v3030
        %v3032 = vcombine.low %v1135, %v1142
        %v3033 = vcombine.low %v1149, %v1177
        %v3035 = vunpack.c.l.s4 1966171168
        %v3036 = vunpack.c.0.s8 %v3035
        %v3037 = vlaneseq
        %v3038 = vshrl.u32 %v3037, 7
        %v3039 = vsub.s32 %v3036, %v3038
        %v3040 = vrot.slane %v3032, %v3039
        %v3042 = vunpack.c.l.s4 1966171168
        %v3043 = vunpack.c.0.s8 %v3042
        %v3044 = vlaneseq
        %v3045 = vshrl.u32 %v3044, 7
        %v3046 = vsub.s32 %v3043, %v3045
        %v3047 = vrot.slane %v3033, %v3046
        %v3048 = vcombine.low %v3040, %v3047
        %v3049 = vcombine.low %v1184, %v1191
        %v3050 = vcombine.low %v1198, %v1226
        %v3052 = vunpack.c.l.s4 1966171168
        %v3053 = vunpack.c.0.s8 %v3052
        %v3054 = vlaneseq
        %v3055 = vshrl.u32 %v3054, 7
        %v3056 = vsub.s32 %v3053, %v3055
        %v3057 = vrot.slane %v3049, %v3056
        %v3059 = vunpack.c.l.s4 1966171168
        %v3060 = vunpack.c.0.s8 %v3059
        %v3061 = vlaneseq
        %v3062 = vshrl.u32 %v3061, 7
        %v3063 = vsub.s32 %v3060, %v3062
        %v3064 = vrot.slane %v3050, %v3063
        %v3065 = vcombine.low %v3057, %v3064
        %v3066 = vcombine.low %v1233, %v1240
        %v3067 = vcombine.low %v1247, %v1275
        %v3069 = vunpack.c.l.s4 1966171168
        %v3070 = vunpack.c.0.s8 %v3069
        %v3071 = vlaneseq
        %v3072 = vshrl.u32 %v3071, 7
        %v3073 = vsub.s32 %v3070, %v3072
        %v3074 = vrot.slane %v3066, %v3073
        %v3076 = vunpack.c.l.s4 1966171168
        %v3077 = vunpack.c.0.s8 %v3076
        %v3078 = vlaneseq
        %v3079 = vshrl.u32 %v3078, 7
        %v3080 = vsub.s32 %v3077, %v3079
        %v3081 = vrot.slane %v3067, %v3080
        %v3082 = vcombine.low %v3074, %v3081
        %v3083 = vcombine.low %v1282, %v1289
        %v3084 = vcombine.low %v1296, %v1324
        %v3086 = vunpack.c.l.s4 1966171168
        %v3087 = vunpack.c.0.s8 %v3086
        %v3088 = vlaneseq
        %v3089 = vshrl.u32 %v3088, 7
        %v3090 = vsub.s32 %v3087, %v3089
        %v3091 = vrot.slane %v3083, %v3090
        %v3093 = vunpack.c.l.s4 1966171168
        %v3094 = vunpack.c.0.s8 %v3093
        %v3095 = vlaneseq
        %v3096 = vshrl.u32 %v3095, 7
        %v3097 = vsub.s32 %v3094, %v3096
        %v3098 = vrot.slane %v3084, %v3097
        %v3099 = vcombine.low %v3091, %v3098
        %v3100 = vcombine.low %v1331, %v1338
        %v3101 = vcombine.low %v1345, %v1373
        %v3103 = vunpack.c.l.s4 1966171168
        %v3104 = vunpack.c.0.s8 %v3103
        %v3105 = vlaneseq
        %v3106 = vshrl.u32 %v3105, 7
        %v3107 = vsub.s32 %v3104, %v3106
        %v3108 = vrot.slane %v3100, %v3107
        %v3110 = vunpack.c.l.s4 1966171168
        %v3111 = vunpack.c.0.s8 %v3110
        %v3112 = vlaneseq
        %v3113 = vshrl.u32 %v3112, 7
        %v3114 = vsub.s32 %v3111, %v3113
        %v3115 = vrot.slane %v3101, %v3114
        %v3116 = vcombine.low %v3108, %v3115
        %v3117 = vcombine.low %v810, %v817
        %v3119 = vunpack.c.l.s4 1966171168
        %v3120 = vunpack.c.0.s8 %v3119
        %v3121 = vlaneseq
        %v3122 = vshrl.u32 %v3121, 7
        %v3123 = vsub.s32 %v3120, %v3122
        %v3124 = vrot.slane %v3117, %v3123
        %v3125 = vcombine.low %v1380, %v1387
        %v3126 = vcombine.low %v1394, %v3124
        %v3128 = vunpack.c.l.s4 1966171168
        %v3129 = vunpack.c.0.s8 %v3128
        %v3130 = vlaneseq
        %v3131 = vshrl.u32 %v3130, 7
        %v3132 = vsub.s32 %v3129, %v3131
        %v3133 = vrot.slane %v3125, %v3132
        %v3135 = vunpack.c.l.s4 1966171168
        %v3136 = vunpack.c.0.s8 %v3135
        %v3137 = vlaneseq
        %v3138 = vshrl.u32 %v3137, 7
        %v3139 = vsub.s32 %v3136, %v3138
        %v3140 = vrot.slane %v3126, %v3139
        %v3141 = vcombine.low %v3133, %v3140
        %v3142 = vcombine.low %v818, %v819
        %v3143 = vcombine.low %v834, %v841
        %v3144 = vcombine.low %v842, %v843
        %v3145 = vcombine.low %v857, %v872
        %v3147 = vunpack.c.l.s4 1966171168
        %v3148 = vunpack.c.0.s8 %v3147
        %v3149 = vlaneseq
        %v3150 = vshrl.u32 %v3149, 7
        %v3151 = vsub.s32 %v3148, %v3150
        %v3152 = vrot.slane %v3142, %v3151
        %v3154 = vunpack.c.l.s4 1966171168
        %v3155 = vunpack.c.0.s8 %v3154
        %v3156 = vlaneseq
        %v3157 = vshrl.u32 %v3156, 7
        %v3158 = vsub.s32 %v3155, %v3157
        %v3159 = vrot.slane %v3143, %v3158
        %v3161 = vunpack.c.l.s4 1966171168
        %v3162 = vunpack.c.0.s8 %v3161
        %v3163 = vlaneseq
        %v3164 = vshrl.u32 %v3163, 7
        %v3165 = vsub.s32 %v3162, %v3164
        %v3166 = vrot.slane %v3144, %v3165
        %v3168 = vunpack.c.l.s4 1966171168
        %v3169 = vunpack.c.0.s8 %v3168
        %v3170 = vlaneseq
        %v3171 = vshrl.u32 %v3170, 7
        %v3172 = vsub.s32 %v3169, %v3171
        %v3173 = vrot.slane %v3145, %v3172
        %v3174 = vcombine.low %v3152, %v3159
        %v3175 = vcombine.low %v3166, %v3173
        %v3177 = vunpack.c.l.s4 1966171168
        %v3178 = vunpack.c.0.s8 %v3177
        %v3179 = vlaneseq
        %v3180 = vshrl.u32 %v3179, 7
        %v3181 = vsub.s32 %v3178, %v3180
        %v3182 = vrot.slane %v3174, %v3181
        %v3184 = vunpack.c.l.s4 1966171168
        %v3185 = vunpack.c.0.s8 %v3184
        %v3186 = vlaneseq
        %v3187 = vshrl.u32 %v3186, 7
        %v3188 = vsub.s32 %v3185, %v3187
        %v3189 = vrot.slane %v3175, %v3188
        %v3190 = vcombine.low %v3182, %v3189
        %v3192 = vsel %vm1412, %v3014, 0
        %v3195 = vsel %vm1412, %v3031, 0
        %v3198 = vsel %vm1412, %v3048, 0
        %v3201 = vsel %vm1412, %v3065, 0
        %v3204 = vsel %vm1412, %v3082, 0
        %v3207 = vsel %vm1412, %v3099, 0
        %v3210 = vsel %vm1412, %v3116, 0
        %v3213 = vsel %vm1412, %v3141, 0
        %v3216 = vsel %vm1412, %v3190, 0
        %v3219 = vsel %vm1440, %v2997, 0
        %3221 = vmatprep.subr.bf16.mxu0 0
        %3222 = vmatpush1.bf16.msra.mxu0 %v3219
        %3223 = vmatprep.subr.bf16.mxu0 0
        %3224 = vmatpush1.bf16.msra.mxu0 0
        %3225 = vmatprep.subr.bf16.mxu0 0
        %3226 = vmatpush1.bf16.msra.mxu0 0
        %3227 = vmatprep.subr.bf16.mxu0 0
        %3228 = vmatpush1.bf16.msra.mxu0 0
        %3229 = vmatprep.subr.bf16.mxu0 0
        %3230 = vmatpush1.bf16.msra.mxu0 0
        %3231 = vmatprep.subr.bf16.mxu0 0
        %3232 = vmatpush1.bf16.msra.mxu0 0
        %3233 = vmatprep.subr.bf16.mxu0 0
        %3234 = vmatpush1.bf16.msra.mxu0 0
        %3235 = vmatprep.subr.bf16.mxu0 0
        %3236 = vmatpush1.bf16.msra.mxu0 0
        %3237 = vmatprep.subr.bf16.mxu0 0
        %3238 = vmatpush1.bf16.msra.mxu0 0
        %3239 = vmatprep.subr.bf16.mxu0 0
        %3240 = vmatpush1.bf16.msra.mxu0 0
        %3241 = vmatprep.subr.bf16.mxu0 0
        %3242 = vmatpush1.bf16.msra.mxu0 0
        %3243 = vmatprep.subr.bf16.mxu0 0
        %3244 = vmatpush1.bf16.msra.mxu0 0
        %3245 = vmatprep.subr.bf16.mxu0 0
        %3246 = vmatpush1.bf16.msra.mxu0 0
        %3247 = vmatprep.subr.bf16.mxu0 0
        %3248 = vmatpush1.bf16.msra.mxu0 0
        %3249 = vmatprep.subr.bf16.mxu0 0
        %3250 = vmatpush1.bf16.msra.mxu0 0
        %3251 = vmatprep.subr.bf16.mxu0 0
        %3252 = vmatpush1.bf16.msra.mxu0 0
        %3253 = vmatprep.mubr.bf16.mxu0 0
        %3254 = vmatmul.mubr.bf16.gmra.mrb[0].mxu0 %v3192
        %v3255 = vpop.f32.mrb[0].mxu0
        %v3256 = vadd.f32 0.0, %v3255
        %v3257 = vpop.f32.mrb[0].mxu0
        %v3258 = vpop.f32.mrb[0].mxu0
        %v3259 = vadd.f32 0.0, %v3258
        %v3260 = vpop.f32.mrb[0].mxu0
        %3261 = vmatprep.mubr.bf16.mxu0 0
        %3262 = vmatmul.mubr.bf16.gmra.mrb[0].mxu0 %v3195
        %v3263 = vpop.f32.mrb[0].mxu0
        %v3264 = vadd.f32 0.0, %v3263
        %v3265 = vpop.f32.mrb[0].mxu0
        %v3266 = vpop.f32.mrb[0].mxu0
        %v3267 = vadd.f32 0.0, %v3266
        %v3268 = vpop.f32.mrb[0].mxu0
        %3269 = vmatprep.mubr.bf16.mxu0 0
        %3270 = vmatmul.mubr.bf16.gmra.mrb[0].mxu0 %v3198
        %v3271 = vpop.f32.mrb[0].mxu0
        %v3272 = vadd.f32 0.0, %v3271
        %v3273 = vpop.f32.mrb[0].mxu0
        %v3274 = vpop.f32.mrb[0].mxu0
        %v3275 = vadd.f32 0.0, %v3274
        %v3276 = vpop.f32.mrb[0].mxu0
        %3277 = vmatprep.mubr.bf16.mxu0 0
        %3278 = vmatmul.mubr.bf16.gmra.mrb[0].mxu0 %v3201
        %v3279 = vpop.f32.mrb[0].mxu0
        %v3280 = vadd.f32 0.0, %v3279
        %v3281 = vpop.f32.mrb[0].mxu0
        %v3282 = vpop.f32.mrb[0].mxu0
        %v3283 = vadd.f32 0.0, %v3282
        %v3284 = vpop.f32.mrb[0].mxu0
        %3285 = vmatprep.mubr.bf16.mxu0 0
        %3286 = vmatmul.mubr.bf16.gmra.mrb[0].mxu0 %v3204
        %v3287 = vpop.f32.mrb[0].mxu0
        %v3288 = vadd.f32 0.0, %v3287
        %v3289 = vpop.f32.mrb[0].mxu0
        %v3290 = vpop.f32.mrb[0].mxu0
        %v3291 = vadd.f32 0.0, %v3290
        %v3292 = vpop.f32.mrb[0].mxu0
        %3293 = vmatprep.mubr.bf16.mxu0 0
        %3294 = vmatmul.mubr.bf16.gmra.mrb[0].mxu0 %v3207
        %v3295 = vpop.f32.mrb[0].mxu0
        %v3296 = vadd.f32 0.0, %v3295
        %v3297 = vpop.f32.mrb[0].mxu0
        %v3298 = vpop.f32.mrb[0].mxu0
        %v3299 = vadd.f32 0.0, %v3298
        %v3300 = vpop.f32.mrb[0].mxu0
        %3301 = vmatprep.mubr.bf16.mxu0 0
        %3302 = vmatmul.mubr.bf16.gmra.mrb[0].mxu0 %v3210
        %v3303 = vpop.f32.mrb[0].mxu0
        %v3304 = vadd.f32 0.0, %v3303
        %v3305 = vpop.f32.mrb[0].mxu0
        %v3306 = vpop.f32.mrb[0].mxu0
        %v3307 = vadd.f32 0.0, %v3306
        %v3308 = vpop.f32.mrb[0].mxu0
        %3309 = vmatprep.mubr.bf16.mxu0 0
        %3310 = vmatmul.mubr.bf16.gmra.mrb[0].mxu0 %v3213
        %v3311 = vpop.f32.mrb[0].mxu0
        %v3312 = vadd.f32 0.0, %v3311
        %v3313 = vpop.f32.mrb[0].mxu0
        %v3314 = vpop.f32.mrb[0].mxu0
        %v3315 = vadd.f32 0.0, %v3314
        %v3316 = vpop.f32.mrb[0].mxu0
        %3317 = vmatprep.mubr.bf16.mxu0 0
        %3318 = vmatmul.mubr.bf16.gmra.mrb[0].mxu0 %v3216
        %v3319 = vpop.f32.mrb[0].mxu0
        %v3320 = vadd.f32 0.0, %v3319
        %v3321 = vpop.f32.mrb[0].mxu0
        %v3322 = vpop.f32.mrb[0].mxu0
        %v3323 = vadd.f32 0.0, %v3322
        %v3324 = vpop.f32.mrb[0].mxu0
        %3325 = vdwg.mxu0
        %v3326 = vadd.f32 %v2978, %v3256
        %v3327 = vadd.f32 %v2979, %v3259
        %v3328 = vadd.f32 %v2980, %v3264
        %v3329 = vadd.f32 %v2981, %v3267
        %v3330 = vadd.f32 %v2982, %v3272
        %v3331 = vadd.f32 %v2983, %v3275
        %v3332 = vadd.f32 %v2984, %v3280
        %v3333 = vadd.f32 %v2985, %v3283
        %v3334 = vadd.f32 %v2986, %v3288
        %v3335 = vadd.f32 %v2987, %v3291
        %v3336 = vadd.f32 %v2988, %v3296
        %v3337 = vadd.f32 %v2989, %v3299
        %v3338 = vadd.f32 %v2990, %v3304
        %v3339 = vadd.f32 %v2991, %v3307
        %v3340 = vadd.f32 %v2992, %v3312
        %v3341 = vadd.f32 %v2993, %v3315
        %v3342 = vadd.f32 %v2994, %v3320
        %v3343 = vadd.f32 %v2995, %v3323
        %3344 = vst [vmem:[#allocation2] sm:$0xff] %v3326
        %3345 = vst [vmem:[#allocation2 + $0x8] sm:$0xff] %v3327
        %3346 = vst [vmem:[#allocation2 + $0x10] sm:$0xff] %v3328
        %3347 = vst [vmem:[#allocation2 + $0x18] sm:$0xff] %v3329
        %3348 = vst [vmem:[#allocation2 + $0x20] sm:$0xff] %v3330
        %3349 = vst [vmem:[#allocation2 + $0x28] sm:$0xff] %v3331
        %3350 = vst [vmem:[#allocation2 + $0x30] sm:$0xff] %v3332
        %3351 = vst [vmem:[#allocation2 + $0x38] sm:$0xff] %v3333
        %3352 = vst [vmem:[#allocation2 + $0x40] sm:$0xff] %v3334
        %3353 = vst [vmem:[#allocation2 + $0x48] sm:$0xff] %v3335
        %3354 = vst [vmem:[#allocation2 + $0x50] sm:$0xff] %v3336
        %3355 = vst [vmem:[#allocation2 + $0x58] sm:$0xff] %v3337
        %3356 = vst [vmem:[#allocation2 + $0x60] sm:$0xff] %v3338
        %3357 = vst [vmem:[#allocation2 + $0x68] sm:$0xff] %v3339
        %3358 = vst [vmem:[#allocation2 + $0x70] sm:$0xff] %v3340
        %3359 = vst [vmem:[#allocation2 + $0x78] sm:$0xff] %v3341
        %3360 = vst [vmem:[#allocation2 + $0x80] sm:$0xff] %v3342
        %3361 = vst [vmem:[#allocation2 + $0x88] sm:$0xff] %v3343
        %v3362 = vld [vmem:[#allocation2] sm:$0xff]
        %v3363 = vld [vmem:[#allocation2 + $0x8] sm:$0xff]
        %v3364 = vld [vmem:[#allocation2 + $0x10] sm:$0xff]
        %v3365 = vld [vmem:[#allocation2 + $0x18] sm:$0xff]
        %v3366 = vld [vmem:[#allocation2 + $0x20] sm:$0xff]
        %v3367 = vld [vmem:[#allocation2 + $0x28] sm:$0xff]
        %v3368 = vld [vmem:[#allocation2 + $0x30] sm:$0xff]
        %v3369 = vld [vmem:[#allocation2 + $0x38] sm:$0xff]
        %v3370 = vld [vmem:[#allocation2 + $0x40] sm:$0xff]
        %v3371 = vld [vmem:[#allocation2 + $0x48] sm:$0xff]
        %v3372 = vld [vmem:[#allocation2 + $0x50] sm:$0xff]
        %v3373 = vld [vmem:[#allocation2 + $0x58] sm:$0xff]
        %v3374 = vld [vmem:[#allocation2 + $0x60] sm:$0xff]
        %v3375 = vld [vmem:[#allocation2 + $0x68] sm:$0xff]
        %v3376 = vld [vmem:[#allocation2 + $0x70] sm:$0xff]
        %v3377 = vld [vmem:[#allocation2 + $0x78] sm:$0xff]
        %v3378 = vld [vmem:[#allocation2 + $0x80] sm:$0xff]
        %v3379 = vld [vmem:[#allocation2 + $0x88] sm:$0xff]
        %s3380 = scalar_lea.vmem %s233, 12
        %v3381 = vld [vmem:[%s3380] sm:$0x3]
        %v3382 = vcombine.low %v879, %v880
        %v3383 = vcombine.low %v881, %v896
        %v3384 = vcombine.low %v903, %v904
        %v3385 = vcombine.low %v905, %v919
        %v3387 = vunpack.c.l.s4 1966171168
        %v3388 = vunpack.c.0.s8 %v3387
        %v3389 = vlaneseq
        %v3390 = vshrl.u32 %v3389, 7
        %v3391 = vsub.s32 %v3388, %v3390
        %v3392 = vrot.slane %v3382, %v3391
        %v3394 = vunpack.c.l.s4 1966171168
        %v3395 = vunpack.c.0.s8 %v3394
        %v3396 = vlaneseq
        %v3397 = vshrl.u32 %v3396, 7
        %v3398 = vsub.s32 %v3395, %v3397
        %v3399 = vrot.slane %v3383, %v3398
        %v3401 = vunpack.c.l.s4 1966171168
        %v3402 = vunpack.c.0.s8 %v3401
        %v3403 = vlaneseq
        %v3404 = vshrl.u32 %v3403, 7
        %v3405 = vsub.s32 %v3402, %v3404
        %v3406 = vrot.slane %v3384, %v3405
        %v3408 = vunpack.c.l.s4 1966171168
        %v3409 = vunpack.c.0.s8 %v3408
        %v3410 = vlaneseq
        %v3411 = vshrl.u32 %v3410, 7
        %v3412 = vsub.s32 %v3409, %v3411
        %v3413 = vrot.slane %v3385, %v3412
        %v3414 = vcombine.low %v3392, %v3399
        %v3415 = vcombine.low %v3406, %v3413
        %v3417 = vunpack.c.l.s4 1966171168
        %v3418 = vunpack.c.0.s8 %v3417
        %v3419 = vlaneseq
        %v3420 = vshrl.u32 %v3419, 7
        %v3421 = vsub.s32 %v3418, %v3420
        %v3422 = vrot.slane %v3414, %v3421
        %v3424 = vunpack.c.l.s4 1966171168
        %v3425 = vunpack.c.0.s8 %v3424
        %v3426 = vlaneseq
        %v3427 = vshrl.u32 %v3426, 7
        %v3428 = vsub.s32 %v3425, %v3427
        %v3429 = vrot.slane %v3415, %v3428
        %v3430 = vcombine.low %v3422, %v3429
        %v3432 = vsel %vm1412, %v3430, 0
        %v3435 = vsel %vm1440, %v3381, 0
        %3437 = vmatprep.subr.bf16.mxu0 0
        %3438 = vmatpush1.bf16.msra.mxu0 %v3435
        %3439 = vmatprep.subr.bf16.mxu0 0
        %3440 = vmatpush1.bf16.msra.mxu0 0
        %3441 = vmatprep.subr.bf16.mxu0 0
        %3442 = vmatpush1.bf16.msra.mxu0 0
        %3443 = vmatprep.subr.bf16.mxu0 0
        %3444 = vmatpush1.bf16.msra.mxu0 0
        %3445 = vmatprep.subr.bf16.mxu0 0
        %3446 = vmatpush1.bf16.msra.mxu0 0
        %3447 = vmatprep.subr.bf16.mxu0 0
        %3448 = vmatpush1.bf16.msra.mxu0 0
        %3449 = vmatprep.subr.bf16.mxu0 0
        %3450 = vmatpush1.bf16.msra.mxu0 0
        %3451 = vmatprep.subr.bf16.mxu0 0
        %3452 = vmatpush1.bf16.msra.mxu0 0
        %3453 = vmatprep.subr.bf16.mxu0 0
        %3454 = vmatpush1.bf16.msra.mxu0 0
        %3455 = vmatprep.subr.bf16.mxu0 0
        %3456 = vmatpush1.bf16.msra.mxu0 0
        %3457 = vmatprep.subr.bf16.mxu0 0
        %3458 = vmatpush1.bf16.msra.mxu0 0
        %3459 = vmatprep.subr.bf16.mxu0 0
        %3460 = vmatpush1.bf16.msra.mxu0 0
        %3461 = vmatprep.subr.bf16.mxu0 0
        %3462 = vmatpush1.bf16.msra.mxu0 0
        %3463 = vmatprep.subr.bf16.mxu0 0
        %3464 = vmatpush1.bf16.msra.mxu0 0
        %3465 = vmatprep.subr.bf16.mxu0 0
        %3466 = vmatpush1.bf16.msra.mxu0 0
        %3467 = vmatprep.subr.bf16.mxu0 0
        %3468 = vmatpush1.bf16.msra.mxu0 0
        %3469 = vmatprep.mubr.bf16.mxu0 0
        %3470 = vmatmul.mubr.bf16.gmra.mrb[0].mxu0 %v3195
        %v3471 = vpop.f32.mrb[0].mxu0
        %v3472 = vadd.f32 0.0, %v3471
        %v3473 = vpop.f32.mrb[0].mxu0
        %v3474 = vpop.f32.mrb[0].mxu0
        %v3475 = vadd.f32 0.0, %v3474
        %v3476 = vpop.f32.mrb[0].mxu0
        %3477 = vmatprep.mubr.bf16.mxu0 0
        %3478 = vmatmul.mubr.bf16.gmra.mrb[0].mxu0 %v3198
        %v3479 = vpop.f32.mrb[0].mxu0
        %v3480 = vadd.f32 0.0, %v3479
        %v3481 = vpop.f32.mrb[0].mxu0
        %v3482 = vpop.f32.mrb[0].mxu0
        %v3483 = vadd.f32 0.0, %v3482
        %v3484 = vpop.f32.mrb[0].mxu0
        %3485 = vmatprep.mubr.bf16.mxu0 0
        %3486 = vmatmul.mubr.bf16.gmra.mrb[0].mxu0 %v3201
        %v3487 = vpop.f32.mrb[0].mxu0
        %v3488 = vadd.f32 0.0, %v3487
        %v3489 = vpop.f32.mrb[0].mxu0
        %v3490 = vpop.f32.mrb[0].mxu0
        %v3491 = vadd.f32 0.0, %v3490
        %v3492 = vpop.f32.mrb[0].mxu0
        %3493 = vmatprep.mubr.bf16.mxu0 0
        %3494 = vmatmul.mubr.bf16.gmra.mrb[0].mxu0 %v3204
        %v3495 = vpop.f32.mrb[0].mxu0
        %v3496 = vadd.f32 0.0, %v3495
        %v3497 = vpop.f32.mrb[0].mxu0
        %v3498 = vpop.f32.mrb[0].mxu0
        %v3499 = vadd.f32 0.0, %v3498
        %v3500 = vpop.f32.mrb[0].mxu0
        %3501 = vmatprep.mubr.bf16.mxu0 0
        %3502 = vmatmul.mubr.bf16.gmra.mrb[0].mxu0 %v3207
        %v3503 = vpop.f32.mrb[0].mxu0
        %v3504 = vadd.f32 0.0, %v3503
        %v3505 = vpop.f32.mrb[0].mxu0
        %v3506 = vpop.f32.mrb[0].mxu0
        %v3507 = vadd.f32 0.0, %v3506
        %v3508 = vpop.f32.mrb[0].mxu0
        %3509 = vmatprep.mubr.bf16.mxu0 0
        %3510 = vmatmul.mubr.bf16.gmra.mrb[0].mxu0 %v3210
        %v3511 = vpop.f32.mrb[0].mxu0
        %v3512 = vadd.f32 0.0, %v3511
        %v3513 = vpop.f32.mrb[0].mxu0
        %v3514 = vpop.f32.mrb[0].mxu0
        %v3515 = vadd.f32 0.0, %v3514
        %v3516 = vpop.f32.mrb[0].mxu0
        %3517 = vmatprep.mubr.bf16.mxu0 0
        %3518 = vmatmul.mubr.bf16.gmra.mrb[0].mxu0 %v3213
        %v3519 = vpop.f32.mrb[0].mxu0
        %v3520 = vadd.f32 0.0, %v3519
        %v3521 = vpop.f32.mrb[0].mxu0
        %v3522 = vpop.f32.mrb[0].mxu0
        %v3523 = vadd.f32 0.0, %v3522
        %v3524 = vpop.f32.mrb[0].mxu0
        %3525 = vmatprep.mubr.bf16.mxu0 0
        %3526 = vmatmul.mubr.bf16.gmra.mrb[0].mxu0 %v3216
        %v3527 = vpop.f32.mrb[0].mxu0
        %v3528 = vadd.f32 0.0, %v3527
        %v3529 = vpop.f32.mrb[0].mxu0
        %v3530 = vpop.f32.mrb[0].mxu0
        %v3531 = vadd.f32 0.0, %v3530
        %v3532 = vpop.f32.mrb[0].mxu0
        %3533 = vmatprep.mubr.bf16.mxu0 0
        %3534 = vmatmul.mubr.bf16.gmra.mrb[0].mxu0 %v3432
        %v3535 = vpop.f32.mrb[0].mxu0
        %v3536 = vadd.f32 0.0, %v3535
        %v3537 = vpop.f32.mrb[0].mxu0
        %v3538 = vpop.f32.mrb[0].mxu0
        %v3539 = vadd.f32 0.0, %v3538
        %v3540 = vpop.f32.mrb[0].mxu0
        %3541 = vdwg.mxu0
        %v3542 = vadd.f32 %v3362, %v3472
        %v3543 = vadd.f32 %v3363, %v3475
        %v3544 = vadd.f32 %v3364, %v3480
        %v3545 = vadd.f32 %v3365, %v3483
        %v3546 = vadd.f32 %v3366, %v3488
        %v3547 = vadd.f32 %v3367, %v3491
        %v3548 = vadd.f32 %v3368, %v3496
        %v3549 = vadd.f32 %v3369, %v3499
        %v3550 = vadd.f32 %v3370, %v3504
        %v3551 = vadd.f32 %v3371, %v3507
        %v3552 = vadd.f32 %v3372, %v3512
        %v3553 = vadd.f32 %v3373, %v3515
        %v3554 = vadd.f32 %v3374, %v3520
        %v3555 = vadd.f32 %v3375, %v3523
        %v3556 = vadd.f32 %v3376, %v3528
        %v3557 = vadd.f32 %v3377, %v3531
        %v3558 = vadd.f32 %v3378, %v3536
        %v3559 = vadd.f32 %v3379, %v3539
        %3560 = vst [vmem:[#allocation2] sm:$0xff] %v3542
        %3561 = vst [vmem:[#allocation2 + $0x8] sm:$0xff] %v3543
        %3562 = vst [vmem:[#allocation2 + $0x10] sm:$0xff] %v3544
        %3563 = vst [vmem:[#allocation2 + $0x18] sm:$0xff] %v3545
        %3564 = vst [vmem:[#allocation2 + $0x20] sm:$0xff] %v3546
        %3565 = vst [vmem:[#allocation2 + $0x28] sm:$0xff] %v3547
        %3566 = vst [vmem:[#allocation2 + $0x30] sm:$0xff] %v3548
        %3567 = vst [vmem:[#allocation2 + $0x38] sm:$0xff] %v3549
        %3568 = vst [vmem:[#allocation2 + $0x40] sm:$0xff] %v3550
        %3569 = vst [vmem:[#allocation2 + $0x48] sm:$0xff] %v3551
        %3570 = vst [vmem:[#allocation2 + $0x50] sm:$0xff] %v3552
        %3571 = vst [vmem:[#allocation2 + $0x58] sm:$0xff] %v3553
        %3572 = vst [vmem:[#allocation2 + $0x60] sm:$0xff] %v3554
        %3573 = vst [vmem:[#allocation2 + $0x68] sm:$0xff] %v3555
        %3574 = vst [vmem:[#allocation2 + $0x70] sm:$0xff] %v3556
        %3575 = vst [vmem:[#allocation2 + $0x78] sm:$0xff] %v3557
        %3576 = vst [vmem:[#allocation2 + $0x80] sm:$0xff] %v3558
        %3577 = vst [vmem:[#allocation2 + $0x88] sm:$0xff] %v3559
        %v3578 = vld [vmem:[#allocation2] sm:$0xff]
        %v3579 = vld [vmem:[#allocation2 + $0x8] sm:$0xff]
        %v3580 = vld [vmem:[#allocation2 + $0x10] sm:$0xff]
        %v3581 = vld [vmem:[#allocation2 + $0x18] sm:$0xff]
        %v3582 = vld [vmem:[#allocation2 + $0x20] sm:$0xff]
        %v3583 = vld [vmem:[#allocation2 + $0x28] sm:$0xff]
        %v3584 = vld [vmem:[#allocation2 + $0x30] sm:$0xff]
        %v3585 = vld [vmem:[#allocation2 + $0x38] sm:$0xff]
        %v3586 = vld [vmem:[#allocation2 + $0x40] sm:$0xff]
        %v3587 = vld [vmem:[#allocation2 + $0x48] sm:$0xff]
        %v3588 = vld [vmem:[#allocation2 + $0x50] sm:$0xff]
        %v3589 = vld [vmem:[#allocation2 + $0x58] sm:$0xff]
        %v3590 = vld [vmem:[#allocation2 + $0x60] sm:$0xff]
        %v3591 = vld [vmem:[#allocation2 + $0x68] sm:$0xff]
        %v3592 = vld [vmem:[#allocation2 + $0x70] sm:$0xff]
        %v3593 = vld [vmem:[#allocation2 + $0x78] sm:$0xff]
        %v3594 = vld [vmem:[#allocation2 + $0x80] sm:$0xff]
        %v3595 = vld [vmem:[#allocation2 + $0x88] sm:$0xff]
        %s3596 = scalar_lea.vmem %s233, 14
        %v3597 = vld [vmem:[%s3596] sm:$0x3]
        %v3599 = vunpack.c.l.s4 1966171168
        %v3600 = vunpack.c.0.s8 %v3599
        %v3601 = vlaneseq
        %v3602 = vshrl.u32 %v3601, 7
        %v3603 = vsub.s32 %v3600, %v3602
        %v3604 = vrot.slane %v933, %v3603
        %v3606 = vunpack.c.l.s4 1966171168
        %v3607 = vunpack.c.0.s8 %v3606
        %v3608 = vlaneseq
        %v3609 = vshrl.u32 %v3608, 7
        %v3610 = vsub.s32 %v3607, %v3609
        %v3611 = vrot.slane %v3604, %v3610
        %v3612 = vshrl.u32 %v3031, 16
        %v3614 = vshll.u32 %v3031, 16
        %v3616 = vrot.slane %v3614, 1
        %v3617 = vor.u32 %v3612, %v3616
        %v3618 = vshll.u32 %v3048, 16
        %v3620 = vrot.slane %v3618, 1
        %v3621 = vsel %vm1619, %v3617, %v3620
        %v3622 = vshrl.u32 %v3048, 16
        %v3624 = vor.u32 %v3622, %v3620
        %v3625 = vshll.u32 %v3065, 16
        %v3627 = vrot.slane %v3625, 1
        %v3628 = vsel %vm1619, %v3624, %v3627
        %v3629 = vshrl.u32 %v3065, 16
        %v3631 = vor.u32 %v3629, %v3627
        %v3632 = vshll.u32 %v3082, 16
        %v3634 = vrot.slane %v3632, 1
        %v3635 = vsel %vm1619, %v3631, %v3634
        %v3636 = vshrl.u32 %v3082, 16
        %v3638 = vor.u32 %v3636, %v3634
        %v3639 = vshll.u32 %v3099, 16
        %v3641 = vrot.slane %v3639, 1
        %v3642 = vsel %vm1619, %v3638, %v3641
        %v3643 = vshrl.u32 %v3099, 16
        %v3645 = vor.u32 %v3643, %v3641
        %v3646 = vshll.u32 %v3116, 16
        %v3648 = vrot.slane %v3646, 1
        %v3649 = vsel %vm1619, %v3645, %v3648
        %v3650 = vshrl.u32 %v3116, 16
        %v3652 = vor.u32 %v3650, %v3648
        %v3653 = vshll.u32 %v3141, 16
        %v3655 = vrot.slane %v3653, 1
        %v3656 = vsel %vm1619, %v3652, %v3655
        %v3657 = vshrl.u32 %v3141, 16
        %v3659 = vor.u32 %v3657, %v3655
        %v3660 = vshll.u32 %v3190, 16
        %v3662 = vrot.slane %v3660, 1
        %v3663 = vsel %vm1619, %v3659, %v3662
        %v3664 = vshrl.u32 %v3190, 16
        %v3666 = vor.u32 %v3664, %v3662
        %v3667 = vshll.u32 %v3430, 16
        %v3669 = vrot.slane %v3667, 1
        %v3670 = vsel %vm1619, %v3666, %v3669
        %v3671 = vshrl.u32 %v3430, 16
        %v3673 = vor.u32 %v3671, %v3669
        %v3675 = vshll.u32 %v3611, 16
        %v3677 = vrot.slane %v3675, 1
        %v3678 = vsel %vm1619, %v3673, %v3677
        %v3680 = vsel %vm1412, %v3621, 0
        %v3683 = vsel %vm1412, %v3628, 0
        %v3686 = vsel %vm1412, %v3635, 0
        %v3689 = vsel %vm1412, %v3642, 0
        %v3692 = vsel %vm1412, %v3649, 0
        %v3695 = vsel %vm1412, %v3656, 0
        %v3698 = vsel %vm1412, %v3663, 0
        %v3701 = vsel %vm1412, %v3670, 0
        %v3704 = vsel %vm1412, %v3678, 0
        %v3707 = vsel %vm1440, %v3597, 0
        %3709 = vmatprep.subr.bf16.mxu0 0
        %3710 = vmatpush1.bf16.msra.mxu0 %v3707
        %3711 = vmatprep.subr.bf16.mxu0 0
        %3712 = vmatpush1.bf16.msra.mxu0 0
        %3713 = vmatprep.subr.bf16.mxu0 0
        %3714 = vmatpush1.bf16.msra.mxu0 0
        %3715 = vmatprep.subr.bf16.mxu0 0
        %3716 = vmatpush1.bf16.msra.mxu0 0
        %3717 = vmatprep.subr.bf16.mxu0 0
        %3718 = vmatpush1.bf16.msra.mxu0 0
        %3719 = vmatprep.subr.bf16.mxu0 0
        %3720 = vmatpush1.bf16.msra.mxu0 0
        %3721 = vmatprep.subr.bf16.mxu0 0
        %3722 = vmatpush1.bf16.msra.mxu0 0
        %3723 = vmatprep.subr.bf16.mxu0 0
        %3724 = vmatpush1.bf16.msra.mxu0 0
        %3725 = vmatprep.subr.bf16.mxu0 0
        %3726 = vmatpush1.bf16.msra.mxu0 0
        %3727 = vmatprep.subr.bf16.mxu0 0
        %3728 = vmatpush1.bf16.msra.mxu0 0
        %3729 = vmatprep.subr.bf16.mxu0 0
        %3730 = vmatpush1.bf16.msra.mxu0 0
        %3731 = vmatprep.subr.bf16.mxu0 0
        %3732 = vmatpush1.bf16.msra.mxu0 0
        %3733 = vmatprep.subr.bf16.mxu0 0
        %3734 = vmatpush1.bf16.msra.mxu0 0
        %3735 = vmatprep.subr.bf16.mxu0 0
        %3736 = vmatpush1.bf16.msra.mxu0 0
        %3737 = vmatprep.subr.bf16.mxu0 0
        %3738 = vmatpush1.bf16.msra.mxu0 0
        %3739 = vmatprep.subr.bf16.mxu0 0
        %3740 = vmatpush1.bf16.msra.mxu0 0
        %3741 = vmatprep.mubr.bf16.mxu0 0
        %3742 = vmatmul.mubr.bf16.gmra.mrb[0].mxu0 %v3680
        %v3743 = vpop.f32.mrb[0].mxu0
        %v3744 = vadd.f32 0.0, %v3743
        %v3745 = vpop.f32.mrb[0].mxu0
        %v3746 = vpop.f32.mrb[0].mxu0
        %v3747 = vadd.f32 0.0, %v3746
        %v3748 = vpop.f32.mrb[0].mxu0
        %3749 = vmatprep.mubr.bf16.mxu0 0
        %3750 = vmatmul.mubr.bf16.gmra.mrb[0].mxu0 %v3683
        %v3751 = vpop.f32.mrb[0].mxu0
        %v3752 = vadd.f32 0.0, %v3751
        %v3753 = vpop.f32.mrb[0].mxu0
        %v3754 = vpop.f32.mrb[0].mxu0
        %v3755 = vadd.f32 0.0, %v3754
        %v3756 = vpop.f32.mrb[0].mxu0
        %3757 = vmatprep.mubr.bf16.mxu0 0
        %3758 = vmatmul.mubr.bf16.gmra.mrb[0].mxu0 %v3686
        %v3759 = vpop.f32.mrb[0].mxu0
        %v3760 = vadd.f32 0.0, %v3759
        %v3761 = vpop.f32.mrb[0].mxu0
        %v3762 = vpop.f32.mrb[0].mxu0
        %v3763 = vadd.f32 0.0, %v3762
        %v3764 = vpop.f32.mrb[0].mxu0
        %3765 = vmatprep.mubr.bf16.mxu0 0
        %3766 = vmatmul.mubr.bf16.gmra.mrb[0].mxu0 %v3689
        %v3767 = vpop.f32.mrb[0].mxu0
        %v3768 = vadd.f32 0.0, %v3767
        %v3769 = vpop.f32.mrb[0].mxu0
        %v3770 = vpop.f32.mrb[0].mxu0
        %v3771 = vadd.f32 0.0, %v3770
        %v3772 = vpop.f32.mrb[0].mxu0
        %3773 = vmatprep.mubr.bf16.mxu0 0
        %3774 = vmatmul.mubr.bf16.gmra.mrb[0].mxu0 %v3692
        %v3775 = vpop.f32.mrb[0].mxu0
        %v3776 = vadd.f32 0.0, %v3775
        %v3777 = vpop.f32.mrb[0].mxu0
        %v3778 = vpop.f32.mrb[0].mxu0
        %v3779 = vadd.f32 0.0, %v3778
        %v3780 = vpop.f32.mrb[0].mxu0
        %3781 = vmatprep.mubr.bf16.mxu0 0
        %3782 = vmatmul.mubr.bf16.gmra.mrb[0].mxu0 %v3695
        %v3783 = vpop.f32.mrb[0].mxu0
        %v3784 = vadd.f32 0.0, %v3783
        %v3785 = vpop.f32.mrb[0].mxu0
        %v3786 = vpop.f32.mrb[0].mxu0
        %v3787 = vadd.f32 0.0, %v3786
        %v3788 = vpop.f32.mrb[0].mxu0
        %3789 = vmatprep.mubr.bf16.mxu0 0
        %3790 = vmatmul.mubr.bf16.gmra.mrb[0].mxu0 %v3698
        %v3791 = vpop.f32.mrb[0].mxu0
        %v3792 = vadd.f32 0.0, %v3791
        %v3793 = vpop.f32.mrb[0].mxu0
        %v3794 = vpop.f32.mrb[0].mxu0
        %v3795 = vadd.f32 0.0, %v3794
        %v3796 = vpop.f32.mrb[0].mxu0
        %3797 = vmatprep.mubr.bf16.mxu0 0
        %3798 = vmatmul.mubr.bf16.gmra.mrb[0].mxu0 %v3701
        %v3799 = vpop.f32.mrb[0].mxu0
        %v3800 = vadd.f32 0.0, %v3799
        %v3801 = vpop.f32.mrb[0].mxu0
        %v3802 = vpop.f32.mrb[0].mxu0
        %v3803 = vadd.f32 0.0, %v3802
        %v3804 = vpop.f32.mrb[0].mxu0
        %3805 = vmatprep.mubr.bf16.mxu0 0
        %3806 = vmatmul.mubr.bf16.gmra.mrb[0].mxu0 %v3704
        %v3807 = vpop.f32.mrb[0].mxu0
        %v3808 = vadd.f32 0.0, %v3807
        %v3809 = vpop.f32.mrb[0].mxu0
        %v3810 = vpop.f32.mrb[0].mxu0
        %v3811 = vadd.f32 0.0, %v3810
        %v3812 = vpop.f32.mrb[0].mxu0
        %3813 = vdwg.mxu0
        %v3814 = vadd.f32 %v3578, %v3744
        %v3815 = vadd.f32 %v3579, %v3747
        %v3816 = vadd.f32 %v3580, %v3752
        %v3817 = vadd.f32 %v3581, %v3755
        %v3818 = vadd.f32 %v3582, %v3760
        %v3819 = vadd.f32 %v3583, %v3763
        %v3820 = vadd.f32 %v3584, %v3768
        %v3821 = vadd.f32 %v3585, %v3771
        %v3822 = vadd.f32 %v3586, %v3776
        %v3823 = vadd.f32 %v3587, %v3779
        %v3824 = vadd.f32 %v3588, %v3784
        %v3825 = vadd.f32 %v3589, %v3787
        %v3826 = vadd.f32 %v3590, %v3792
        %v3827 = vadd.f32 %v3591, %v3795
        %v3828 = vadd.f32 %v3592, %v3800
        %v3829 = vadd.f32 %v3593, %v3803
        %v3830 = vadd.f32 %v3594, %v3808
        %v3831 = vadd.f32 %v3595, %v3811
        %3832 = vst [vmem:[#allocation2] sm:$0xff] %v3814
        %3833 = vst [vmem:[#allocation2 + $0x8] sm:$0xff] %v3815
        %3834 = vst [vmem:[#allocation2 + $0x10] sm:$0xff] %v3816
        %3835 = vst [vmem:[#allocation2 + $0x18] sm:$0xff] %v3817
        %3836 = vst [vmem:[#allocation2 + $0x20] sm:$0xff] %v3818
        %3837 = vst [vmem:[#allocation2 + $0x28] sm:$0xff] %v3819
        %3838 = vst [vmem:[#allocation2 + $0x30] sm:$0xff] %v3820
        %3839 = vst [vmem:[#allocation2 + $0x38] sm:$0xff] %v3821
        %3840 = vst [vmem:[#allocation2 + $0x40] sm:$0xff] %v3822
        %3841 = vst [vmem:[#allocation2 + $0x48] sm:$0xff] %v3823
        %3842 = vst [vmem:[#allocation2 + $0x50] sm:$0xff] %v3824
        %3843 = vst [vmem:[#allocation2 + $0x58] sm:$0xff] %v3825
        %3844 = vst [vmem:[#allocation2 + $0x60] sm:$0xff] %v3826
        %3845 = vst [vmem:[#allocation2 + $0x68] sm:$0xff] %v3827
        %3846 = vst [vmem:[#allocation2 + $0x70] sm:$0xff] %v3828
        %3847 = vst [vmem:[#allocation2 + $0x78] sm:$0xff] %v3829
        %3848 = vst [vmem:[#allocation2 + $0x80] sm:$0xff] %v3830
        %3849 = vst [vmem:[#allocation2 + $0x88] sm:$0xff] %v3831
        %v3850 = vld [vmem:[#allocation2] sm:$0xff]
        %v3851 = vld [vmem:[#allocation2 + $0x8] sm:$0xff]
        %v3852 = vld [vmem:[#allocation2 + $0x10] sm:$0xff]
        %v3853 = vld [vmem:[#allocation2 + $0x18] sm:$0xff]
        %v3854 = vld [vmem:[#allocation2 + $0x20] sm:$0xff]
        %v3855 = vld [vmem:[#allocation2 + $0x28] sm:$0xff]
        %v3856 = vld [vmem:[#allocation2 + $0x30] sm:$0xff]
        %v3857 = vld [vmem:[#allocation2 + $0x38] sm:$0xff]
        %v3858 = vld [vmem:[#allocation2 + $0x40] sm:$0xff]
        %v3859 = vld [vmem:[#allocation2 + $0x48] sm:$0xff]
        %v3860 = vld [vmem:[#allocation2 + $0x50] sm:$0xff]
        %v3861 = vld [vmem:[#allocation2 + $0x58] sm:$0xff]
        %v3862 = vld [vmem:[#allocation2 + $0x60] sm:$0xff]
        %v3863 = vld [vmem:[#allocation2 + $0x68] sm:$0xff]
        %v3864 = vld [vmem:[#allocation2 + $0x70] sm:$0xff]
        %v3865 = vld [vmem:[#allocation2 + $0x78] sm:$0xff]
        %v3866 = vld [vmem:[#allocation2 + $0x80] sm:$0xff]
        %v3867 = vld [vmem:[#allocation2 + $0x88] sm:$0xff]
        %s3868 = scalar_lea.vmem %s233, 16
        %v3869 = vld [vmem:[%s3868] sm:$0x3]
        %v3870 = vcombine.low %v1993, %v2000
        %v3871 = vcombine.low %v2007, %v2035
        %v3873 = vunpack.c.l.s4 1966171168
        %v3874 = vunpack.c.0.s8 %v3873
        %v3875 = vlaneseq
        %v3876 = vshrl.u32 %v3875, 7
        %v3877 = vsub.s32 %v3874, %v3876
        %v3878 = vrot.slane %v3870, %v3877
        %v3880 = vunpack.c.l.s4 1966171168
        %v3881 = vunpack.c.0.s8 %v3880
        %v3882 = vlaneseq
        %v3883 = vshrl.u32 %v3882, 7
        %v3884 = vsub.s32 %v3881, %v3883
        %v3885 = vrot.slane %v3871, %v3884
        %v3886 = vcombine.low %v3878, %v3885
        %v3887 = vcombine.low %v2042, %v2049
        %v3888 = vcombine.low %v2056, %v2084
        %v3890 = vunpack.c.l.s4 1966171168
        %v3891 = vunpack.c.0.s8 %v3890
        %v3892 = vlaneseq
        %v3893 = vshrl.u32 %v3892, 7
        %v3894 = vsub.s32 %v3891, %v3893
        %v3895 = vrot.slane %v3887, %v3894
        %v3897 = vunpack.c.l.s4 1966171168
        %v3898 = vunpack.c.0.s8 %v3897
        %v3899 = vlaneseq
        %v3900 = vshrl.u32 %v3899, 7
        %v3901 = vsub.s32 %v3898, %v3900
        %v3902 = vrot.slane %v3888, %v3901
        %v3903 = vcombine.low %v3895, %v3902
        %v3904 = vcombine.low %v2091, %v2098
        %v3905 = vcombine.low %v2105, %v2133
        %v3907 = vunpack.c.l.s4 1966171168
        %v3908 = vunpack.c.0.s8 %v3907
        %v3909 = vlaneseq
        %v3910 = vshrl.u32 %v3909, 7
        %v3911 = vsub.s32 %v3908, %v3910
        %v3912 = vrot.slane %v3904, %v3911
        %v3914 = vunpack.c.l.s4 1966171168
        %v3915 = vunpack.c.0.s8 %v3914
        %v3916 = vlaneseq
        %v3917 = vshrl.u32 %v3916, 7
        %v3918 = vsub.s32 %v3915, %v3917
        %v3919 = vrot.slane %v3905, %v3918
        %v3920 = vcombine.low %v3912, %v3919
        %v3921 = vcombine.low %v2140, %v2147
        %v3922 = vcombine.low %v2154, %v2182
        %v3924 = vunpack.c.l.s4 1966171168
        %v3925 = vunpack.c.0.s8 %v3924
        %v3926 = vlaneseq
        %v3927 = vshrl.u32 %v3926, 7
        %v3928 = vsub.s32 %v3925, %v3927
        %v3929 = vrot.slane %v3921, %v3928
        %v3931 = vunpack.c.l.s4 1966171168
        %v3932 = vunpack.c.0.s8 %v3931
        %v3933 = vlaneseq
        %v3934 = vshrl.u32 %v3933, 7
        %v3935 = vsub.s32 %v3932, %v3934
        %v3936 = vrot.slane %v3922, %v3935
        %v3937 = vcombine.low %v3929, %v3936
        %v3938 = vcombine.low %v2189, %v2196
        %v3939 = vcombine.low %v2203, %v2231
        %v3941 = vunpack.c.l.s4 1966171168
        %v3942 = vunpack.c.0.s8 %v3941
        %v3943 = vlaneseq
        %v3944 = vshrl.u32 %v3943, 7
        %v3945 = vsub.s32 %v3942, %v3944
        %v3946 = vrot.slane %v3938, %v3945
        %v3948 = vunpack.c.l.s4 1966171168
        %v3949 = vunpack.c.0.s8 %v3948
        %v3950 = vlaneseq
        %v3951 = vshrl.u32 %v3950, 7
        %v3952 = vsub.s32 %v3949, %v3951
        %v3953 = vrot.slane %v3939, %v3952
        %v3954 = vcombine.low %v3946, %v3953
        %v3955 = vcombine.low %v2238, %v2245
        %v3956 = vcombine.low %v2252, %v2280
        %v3958 = vunpack.c.l.s4 1966171168
        %v3959 = vunpack.c.0.s8 %v3958
        %v3960 = vlaneseq
        %v3961 = vshrl.u32 %v3960, 7
        %v3962 = vsub.s32 %v3959, %v3961
        %v3963 = vrot.slane %v3955, %v3962
        %v3965 = vunpack.c.l.s4 1966171168
        %v3966 = vunpack.c.0.s8 %v3965
        %v3967 = vlaneseq
        %v3968 = vshrl.u32 %v3967, 7
        %v3969 = vsub.s32 %v3966, %v3968
        %v3970 = vrot.slane %v3956, %v3969
        %v3971 = vcombine.low %v3963, %v3970
        %v3972 = vcombine.low %v2287, %v2294
        %v3973 = vcombine.low %v2301, %v2520
        %v3975 = vunpack.c.l.s4 1966171168
        %v3976 = vunpack.c.0.s8 %v3975
        %v3977 = vlaneseq
        %v3978 = vshrl.u32 %v3977, 7
        %v3979 = vsub.s32 %v3976, %v3978
        %v3980 = vrot.slane %v3972, %v3979
        %v3982 = vunpack.c.l.s4 1966171168
        %v3983 = vunpack.c.0.s8 %v3982
        %v3984 = vlaneseq
        %v3985 = vshrl.u32 %v3984, 7
        %v3986 = vsub.s32 %v3983, %v3985
        %v3987 = vrot.slane %v3973, %v3986
        %v3988 = vcombine.low %v3980, %v3987
        %v3989 = vcombine.low %v872, %v879
        %v3991 = vunpack.c.l.s4 1966171168
        %v3992 = vunpack.c.0.s8 %v3991
        %v3993 = vlaneseq
        %v3994 = vshrl.u32 %v3993, 7
        %v3995 = vsub.s32 %v3992, %v3994
        %v3996 = vrot.slane %v3989, %v3995
        %v3997 = vcombine.low %v2527, %v2534
        %v3998 = vcombine.low %v2541, %v3996
        %v4000 = vunpack.c.l.s4 1966171168
        %v4001 = vunpack.c.0.s8 %v4000
        %v4002 = vlaneseq
        %v4003 = vshrl.u32 %v4002, 7
        %v4004 = vsub.s32 %v4001, %v4003
        %v4005 = vrot.slane %v3997, %v4004
        %v4007 = vunpack.c.l.s4 1966171168
        %v4008 = vunpack.c.0.s8 %v4007
        %v4009 = vlaneseq
        %v4010 = vshrl.u32 %v4009, 7
        %v4011 = vsub.s32 %v4008, %v4010
        %v4012 = vrot.slane %v3998, %v4011
        %v4013 = vcombine.low %v4005, %v4012
        %v4014 = vcombine.low %v880, %v881
        %v4015 = vcombine.low %v896, %v903
        %v4016 = vcombine.low %v904, %v905
        %v4017 = vcombine.low %v919, %v933
        %v4019 = vunpack.c.l.s4 1966171168
        %v4020 = vunpack.c.0.s8 %v4019
        %v4021 = vlaneseq
        %v4022 = vshrl.u32 %v4021, 7
        %v4023 = vsub.s32 %v4020, %v4022
        %v4024 = vrot.slane %v4014, %v4023
        %v4026 = vunpack.c.l.s4 1966171168
        %v4027 = vunpack.c.0.s8 %v4026
        %v4028 = vlaneseq
        %v4029 = vshrl.u32 %v4028, 7
        %v4030 = vsub.s32 %v4027, %v4029
        %v4031 = vrot.slane %v4015, %v4030
        %v4033 = vunpack.c.l.s4 1966171168
        %v4034 = vunpack.c.0.s8 %v4033
        %v4035 = vlaneseq
        %v4036 = vshrl.u32 %v4035, 7
        %v4037 = vsub.s32 %v4034, %v4036
        %v4038 = vrot.slane %v4016, %v4037
        %v4040 = vunpack.c.l.s4 1966171168
        %v4041 = vunpack.c.0.s8 %v4040
        %v4042 = vlaneseq
        %v4043 = vshrl.u32 %v4042, 7
        %v4044 = vsub.s32 %v4041, %v4043
        %v4045 = vrot.slane %v4017, %v4044
        %v4046 = vcombine.low %v4024, %v4031
        %v4047 = vcombine.low %v4038, %v4045
        %v4049 = vunpack.c.l.s4 1966171168
        %v4050 = vunpack.c.0.s8 %v4049
        %v4051 = vlaneseq
        %v4052 = vshrl.u32 %v4051, 7
        %v4053 = vsub.s32 %v4050, %v4052
        %v4054 = vrot.slane %v4046, %v4053
        %v4056 = vunpack.c.l.s4 1966171168
        %v4057 = vunpack.c.0.s8 %v4056
        %v4058 = vlaneseq
        %v4059 = vshrl.u32 %v4058, 7
        %v4060 = vsub.s32 %v4057, %v4059
        %v4061 = vrot.slane %v4047, %v4060
        %v4062 = vcombine.low %v4054, %v4061
        %v4064 = vsel %vm1412, %v3886, 0
        %v4067 = vsel %vm1412, %v3903, 0
        %v4070 = vsel %vm1412, %v3920, 0
        %v4073 = vsel %vm1412, %v3937, 0
        %v4076 = vsel %vm1412, %v3954, 0
        %v4079 = vsel %vm1412, %v3971, 0
        %v4082 = vsel %vm1412, %v3988, 0
        %v4085 = vsel %vm1412, %v4013, 0
        %v4088 = vsel %vm1412, %v4062, 0
        %v4091 = vsel %vm1440, %v3869, 0
        %4093 = vmatprep.subr.bf16.mxu0 0
        %4094 = vmatpush1.bf16.msra.mxu0 %v4091
        %4095 = vmatprep.subr.bf16.mxu0 0
        %4096 = vmatpush1.bf16.msra.mxu0 0
        %4097 = vmatprep.subr.bf16.mxu0 0
        %4098 = vmatpush1.bf16.msra.mxu0 0
        %4099 = vmatprep.subr.bf16.mxu0 0
        %4100 = vmatpush1.bf16.msra.mxu0 0
        %4101 = vmatprep.subr.bf16.mxu0 0
        %4102 = vmatpush1.bf16.msra.mxu0 0
        %4103 = vmatprep.subr.bf16.mxu0 0
        %4104 = vmatpush1.bf16.msra.mxu0 0
        %4105 = vmatprep.subr.bf16.mxu0 0
        %4106 = vmatpush1.bf16.msra.mxu0 0
        %4107 = vmatprep.subr.bf16.mxu0 0
        %4108 = vmatpush1.bf16.msra.mxu0 0
        %4109 = vmatprep.subr.bf16.mxu0 0
        %4110 = vmatpush1.bf16.msra.mxu0 0
        %4111 = vmatprep.subr.bf16.mxu0 0
        %4112 = vmatpush1.bf16.msra.mxu0 0
        %4113 = vmatprep.subr.bf16.mxu0 0
        %4114 = vmatpush1.bf16.msra.mxu0 0
        %4115 = vmatprep.subr.bf16.mxu0 0
        %4116 = vmatpush1.bf16.msra.mxu0 0
        %4117 = vmatprep.subr.bf16.mxu0 0
        %4118 = vmatpush1.bf16.msra.mxu0 0
        %4119 = vmatprep.subr.bf16.mxu0 0
        %4120 = vmatpush1.bf16.msra.mxu0 0
        %4121 = vmatprep.subr.bf16.mxu0 0
        %4122 = vmatpush1.bf16.msra.mxu0 0
        %4123 = vmatprep.subr.bf16.mxu0 0
        %4124 = vmatpush1.bf16.msra.mxu0 0
        %4125 = vmatprep.mubr.bf16.mxu0 0
        %4126 = vmatmul.mubr.bf16.gmra.mrb[0].mxu0 %v4064
        %v4127 = vpop.f32.mrb[0].mxu0
        %v4128 = vadd.f32 0.0, %v4127
        %v4129 = vpop.f32.mrb[0].mxu0
        %v4130 = vpop.f32.mrb[0].mxu0
        %v4131 = vadd.f32 0.0, %v4130
        %v4132 = vpop.f32.mrb[0].mxu0
        %4133 = vmatprep.mubr.bf16.mxu0 0
        %4134 = vmatmul.mubr.bf16.gmra.mrb[0].mxu0 %v4067
        %v4135 = vpop.f32.mrb[0].mxu0
        %v4136 = vadd.f32 0.0, %v4135
        %v4137 = vpop.f32.mrb[0].mxu0
        %v4138 = vpop.f32.mrb[0].mxu0
        %v4139 = vadd.f32 0.0, %v4138
        %v4140 = vpop.f32.mrb[0].mxu0
        %4141 = vmatprep.mubr.bf16.mxu0 0
        %4142 = vmatmul.mubr.bf16.gmra.mrb[0].mxu0 %v4070
        %v4143 = vpop.f32.mrb[0].mxu0
        %v4144 = vadd.f32 0.0, %v4143
        %v4145 = vpop.f32.mrb[0].mxu0
        %v4146 = vpop.f32.mrb[0].mxu0
        %v4147 = vadd.f32 0.0, %v4146
        %v4148 = vpop.f32.mrb[0].mxu0
        %4149 = vmatprep.mubr.bf16.mxu0 0
        %4150 = vmatmul.mubr.bf16.gmra.mrb[0].mxu0 %v4073
        %v4151 = vpop.f32.mrb[0].mxu0
        %v4152 = vadd.f32 0.0, %v4151
        %v4153 = vpop.f32.mrb[0].mxu0
        %v4154 = vpop.f32.mrb[0].mxu0
        %v4155 = vadd.f32 0.0, %v4154
        %v4156 = vpop.f32.mrb[0].mxu0
        %4157 = vmatprep.mubr.bf16.mxu0 0
        %4158 = vmatmul.mubr.bf16.gmra.mrb[0].mxu0 %v4076
        %v4159 = vpop.f32.mrb[0].mxu0
        %v4160 = vadd.f32 0.0, %v4159
        %v4161 = vpop.f32.mrb[0].mxu0
        %v4162 = vpop.f32.mrb[0].mxu0
        %v4163 = vadd.f32 0.0, %v4162
        %v4164 = vpop.f32.mrb[0].mxu0
        %4165 = vmatprep.mubr.bf16.mxu0 0
        %4166 = vmatmul.mubr.bf16.gmra.mrb[0].mxu0 %v4079
        %v4167 = vpop.f32.mrb[0].mxu0
        %v4168 = vadd.f32 0.0, %v4167
        %v4169 = vpop.f32.mrb[0].mxu0
        %v4170 = vpop.f32.mrb[0].mxu0
        %v4171 = vadd.f32 0.0, %v4170
        %v4172 = vpop.f32.mrb[0].mxu0
        %4173 = vmatprep.mubr.bf16.mxu0 0
        %4174 = vmatmul.mubr.bf16.gmra.mrb[0].mxu0 %v4082
        %v4175 = vpop.f32.mrb[0].mxu0
        %v4176 = vadd.f32 0.0, %v4175
        %v4177 = vpop.f32.mrb[0].mxu0
        %v4178 = vpop.f32.mrb[0].mxu0
        %v4179 = vadd.f32 0.0, %v4178
        %v4180 = vpop.f32.mrb[0].mxu0
        %4181 = vmatprep.mubr.bf16.mxu0 0
        %4182 = vmatmul.mubr.bf16.gmra.mrb[0].mxu0 %v4085
        %v4183 = vpop.f32.mrb[0].mxu0
        %v4184 = vadd.f32 0.0, %v4183
        %v4185 = vpop.f32.mrb[0].mxu0
        %v4186 = vpop.f32.mrb[0].mxu0
        %v4187 = vadd.f32 0.0, %v4186
        %v4188 = vpop.f32.mrb[0].mxu0
        %4189 = vmatprep.mubr.bf16.mxu0 0
        %4190 = vmatmul.mubr.bf16.gmra.mrb[0].mxu0 %v4088
        %v4191 = vpop.f32.mrb[0].mxu0
        %v4192 = vadd.f32 0.0, %v4191
        %v4193 = vpop.f32.mrb[0].mxu0
        %v4194 = vpop.f32.mrb[0].mxu0
        %v4195 = vadd.f32 0.0, %v4194
        %v4196 = vpop.f32.mrb[0].mxu0
        %4197 = vdwg.mxu0
        %v4198 = vadd.f32 %v3850, %v4128
        %v4199 = vadd.f32 %v3851, %v4131
        %v4200 = vadd.f32 %v3852, %v4136
        %v4201 = vadd.f32 %v3853, %v4139
        %v4202 = vadd.f32 %v3854, %v4144
        %v4203 = vadd.f32 %v3855, %v4147
        %v4204 = vadd.f32 %v3856, %v4152
        %v4205 = vadd.f32 %v3857, %v4155
        %v4206 = vadd.f32 %v3858, %v4160
        %v4207 = vadd.f32 %v3859, %v4163
        %v4208 = vadd.f32 %v3860, %v4168
        %v4209 = vadd.f32 %v3861, %v4171
        %v4210 = vadd.f32 %v3862, %v4176
        %v4211 = vadd.f32 %v3863, %v4179
        %v4212 = vadd.f32 %v3864, %v4184
        %v4213 = vadd.f32 %v3865, %v4187
        %v4214 = vadd.f32 %v3866, %v4192
        %v4215 = vadd.f32 %v3867, %v4195
        %4216 = vst [vmem:[#allocation2] sm:$0xff] %v4198
        %4217 = vst [vmem:[#allocation2 + $0x8] sm:$0xff] %v4199
        %4218 = vst [vmem:[#allocation2 + $0x10] sm:$0xff] %v4200
        %4219 = vst [vmem:[#allocation2 + $0x18] sm:$0xff] %v4201
        %4220 = vst [vmem:[#allocation2 + $0x20] sm:$0xff] %v4202
        %4221 = vst [vmem:[#allocation2 + $0x28] sm:$0xff] %v4203
        %4222 = vst [vmem:[#allocation2 + $0x30] sm:$0xff] %v4204
        %4223 = vst [vmem:[#allocation2 + $0x38] sm:$0xff] %v4205
        %4224 = vst [vmem:[#allocation2 + $0x40] sm:$0xff] %v4206
        %4225 = vst [vmem:[#allocation2 + $0x48] sm:$0xff] %v4207
        %4226 = vst [vmem:[#allocation2 + $0x50] sm:$0xff] %v4208
        %4227 = vst [vmem:[#allocation2 + $0x58] sm:$0xff] %v4209
        %4228 = vst [vmem:[#allocation2 + $0x60] sm:$0xff] %v4210
        %4229 = vst [vmem:[#allocation2 + $0x68] sm:$0xff] %v4211
        %4230 = vst [vmem:[#allocation2 + $0x70] sm:$0xff] %v4212
        %4231 = vst [vmem:[#allocation2 + $0x78] sm:$0xff] %v4213
        %4232 = vst [vmem:[#allocation2 + $0x80] sm:$0xff] %v4214
        %4233 = vst [vmem:[#allocation2 + $0x88] sm:$0xff] %v4215
        %v4234 = vld [vmem:[#allocation2] sm:$0xff]
        %v4235 = vld [vmem:[#allocation2 + $0x8] sm:$0xff]
        %v4236 = vld [vmem:[#allocation2 + $0x10] sm:$0xff]
        %v4237 = vld [vmem:[#allocation2 + $0x18] sm:$0xff]
        %v4238 = vld [vmem:[#allocation2 + $0x20] sm:$0xff]
        %v4239 = vld [vmem:[#allocation2 + $0x28] sm:$0xff]
        %v4240 = vld [vmem:[#allocation2 + $0x30] sm:$0xff]
        %v4241 = vld [vmem:[#allocation2 + $0x38] sm:$0xff]
        %v4242 = vld [vmem:[#allocation2 + $0x40] sm:$0xff]
        %v4243 = vld [vmem:[#allocation2 + $0x48] sm:$0xff]
        %v4244 = vld [vmem:[#allocation2 + $0x50] sm:$0xff]
        %v4245 = vld [vmem:[#allocation2 + $0x58] sm:$0xff]
        %v4246 = vld [vmem:[#allocation2 + $0x60] sm:$0xff]
        %v4247 = vld [vmem:[#allocation2 + $0x68] sm:$0xff]
        %v4248 = vld [vmem:[#allocation2 + $0x70] sm:$0xff]
        %v4249 = vld [vmem:[#allocation2 + $0x78] sm:$0xff]
        %v4250 = vld [vmem:[#allocation2 + $0x80] sm:$0xff]
        %v4251 = vld [vmem:[#allocation2 + $0x88] sm:$0xff]
        %v4252 = vld [vmem:[%s236] sm:$0x1]
        %v4254 = vlaneseq
        %v4255 = vshrl.u32 %v4254, 7
        %v4256 = vsub.s32 0, %v4255
        %v4257 = vrot.slane %v4252, %v4256
        %v4259 = vadd.f32 %v4234, %v4257
        %v4260 = vadd.f32 %v4235, %v4257
        %v4261 = vadd.f32 %v4236, %v4257
        %v4262 = vadd.f32 %v4237, %v4257
        %v4263 = vadd.f32 %v4238, %v4257
        %v4264 = vadd.f32 %v4239, %v4257
        %v4265 = vadd.f32 %v4240, %v4257
        %v4266 = vadd.f32 %v4241, %v4257
        %v4267 = vadd.f32 %v4242, %v4257
        %v4268 = vadd.f32 %v4243, %v4257
        %v4269 = vadd.f32 %v4244, %v4257
        %v4270 = vadd.f32 %v4245, %v4257
        %v4271 = vadd.f32 %v4246, %v4257
        %v4272 = vadd.f32 %v4247, %v4257
        %v4273 = vadd.f32 %v4248, %v4257
        %v4274 = vadd.f32 %v4249, %v4257
        %v4275 = vadd.f32 %v4250, %v4257
        %v4276 = vadd.f32 %v4251, %v4257
        %4277 = vst [vmem:[%s220] sm:$0xff] %v4259
        %4278 = vst [vmem:[%s220 + $0x8] sm:$0xff] %v4260
        %4279 = vst [vmem:[%s220 + $0x10] sm:$0xff] %v4261
        %4280 = vst [vmem:[%s220 + $0x18] sm:$0xff] %v4262
        %4281 = vst [vmem:[%s220 + $0x20] sm:$0xff] %v4263
        %4282 = vst [vmem:[%s220 + $0x28] sm:$0xff] %v4264
        %4283 = vst [vmem:[%s220 + $0x30] sm:$0xff] %v4265
        %4284 = vst [vmem:[%s220 + $0x38] sm:$0xff] %v4266
        %4285 = vst [vmem:[%s220 + $0x40] sm:$0xff] %v4267
        %4286 = vst [vmem:[%s220 + $0x48] sm:$0xff] %v4268
        %4287 = vst [vmem:[%s220 + $0x50] sm:$0xff] %v4269
        %4288 = vst [vmem:[%s220 + $0x58] sm:$0xff] %v4270
        %4289 = vst [vmem:[%s220 + $0x60] sm:$0xff] %v4271
        %4290 = vst [vmem:[%s220 + $0x68] sm:$0xff] %v4272
        %4291 = vst [vmem:[%s220 + $0x70] sm:$0xff] %v4273
        %4292 = vst [vmem:[%s220 + $0x78] sm:$0xff] %v4274
        %4293 = vst [vmem:[%s220 + $0x80] sm:$0xff] %v4275
        %4294 = vst [vmem:[%s220 + $0x88] sm:$0xff] %v4276
        %s4295 = sand.u32 %s128, 1
        %s4296 = scalar_lea.sflag [#allocation4], %s4295
        %s4297 = sand.u32 %s128, 1
        %s4298 = smul.addr %s4297, 144
        %s4299 = scalar_lea.vmem [#allocation3], %s4298
        // Predicated region
        $region33: #{tpu_custom_call.1} parent=31 // pred_check
          %p4300 = pneg %p138
        $region34: #{tpu_custom_call.1} parent=31 // pred_check_branch
          %4302 = sbr.rel (%p4300) target = $region36
        $region35: #{tpu_custom_call.1} parent=31 // pred_region
          %s4304 = ssub.s32 2304, 2304
          %4305 = vsyncadd %s4296, %s4304
          %s4306 = smul.addr %s23, 18
          %s4307 = sadd.s32 %s24, %s4306
          %s4308 = smul.addr %s22, 36
          %s4309 = sadd.s32 %s4307, %s4308
          %s4310 = smul.addr %s4309, 128
          %s4311 = scalar_lea.hbm %s3, %s4310
          %s4312 = sshll.u32 %s4299, 4
          %s4313 = int_to_ptr.vmem [resolvable:$true] %s4312
          %4318 = dma.vmem_to_hbm [thread:$0]  %s4313, 2304, %s4311, %s4296, 128, 128, 8
        $region36: #{tpu_custom_call.1} parent=31 // pred_fallthru
          _
      $region32: #{tpu_custom_call.1} parent=5 // pred_fallthru
        _
      %p4319 = scmp.le.s32.totalorder 2, %s12
      // Predicated region
      $region37: #{tpu_custom_call.1} parent=5 // pred_check
        %p4320 = pneg %p4319
      $region38: #{tpu_custom_call.1} parent=5 // pred_check_branch
        %4322 = sbr.rel (%p4320) target = $region40
      $region39: #{tpu_custom_call.1} parent=5 // pred_region
        %s4323 = ssub.s32 %s12, 2
        // Predicated region
        $region41: #{tpu_custom_call.1} parent=39 // pred_check
          %p4324 = pneg %p144
        $region42: #{tpu_custom_call.1} parent=39 // pred_check_branch
          %4326 = sbr.rel (%p4324) target = $region44
        $region43: #{tpu_custom_call.1} parent=39 // pred_region
          %s4327 = sand.u32 %s129, 1
          %s4328 = scalar_lea.sflag [#allocation4], %s4327
          %s4329 = sand.u32 %s129, 1
          %s4330 = smul.addr %s4329, 144
          %s4331 = scalar_lea.vmem [#allocation3], %s4330
          %4332 = dma.done %s4328, 2304
        $region44: #{tpu_custom_call.1} parent=39 // pred_fallthru
          _
      $region40: #{tpu_custom_call.1} parent=5 // pred_fallthru
        _
    $region6: #{tpu_custom_call.1} parent=1 // loop_footer
      %s16 = sadd.s32 1, %s12
    $region7: #{tpu_custom_call.1} parent=1 // loop_footer_branch
      %11 = sbr.rel target = $region3
    $region8: #{tpu_custom_call.1} parent=1 // loop_exit
      _
    %4333 = vsyncpa [#allocation4], 1
    %s4334 = scalar_lea.sflag [#allocation4], 1
    %4335 = vsyncpa %s4334, 1

</llo_original>
